<compile_context>
chip_gen: v7x
topology: tpu7x:2x2x1
jax: 0.10.0
libtpu: 0.0.40
codegen_flags: <defaults>
</compile_context>

<pallas_src>
import math

import jax
import jax.numpy as jnp
import numpy as np
from jax import lax
from jax.experimental import pallas as pl
from jax.experimental.pallas import tpu as pltpu

WINDOW_SIZE = 11
SIGMA = 1.5
EPS = float(np.spacing(1))          # 2.220446049250313e-16 (parity with the PyTorch module)
C2 = (0.03 * 255.0) ** 2


def _round_up(x, m):
    return ((x + m - 1) // m) * m


def _gaussian_taps(window_size, sigma):
    g = np.array(
        [math.exp(-((x - window_size // 2) ** 2) / float(2 * sigma ** 2))
         for x in range(window_size)], dtype=np.float64)
    g = g / g.sum()
    return tuple(float(v) for v in g)


def _make_kernel(K, H, W, Hp, Wp, window_size):
    half = window_size // 2
    inv_ws2 = 1.0 / float(window_size * window_size)
    inv_hw = 1.0 / float(H * W)
    taps = _gaussian_taps(window_size, SIGMA)
    shifts = [s for s in range(-half, half + 1) if s != 0]

    def band_matrix(n):
        """(n, n) banded Toeplitz matrix of the 1-D Gaussian taps; zeros outside
        the band encode the zero 'same' padding.  Symmetric taps, so the same
        matrix serves as the right (W-pass) and left (H-pass) conv operator."""
        r = lax.broadcasted_iota(jnp.int32, (n, n), 0)
        c = lax.broadcasted_iota(jnp.int32, (n, n), 1)
        d = r - c
        m = jnp.zeros((n, n), jnp.float32)
        for k, t in enumerate(taps):
            m = jnp.where(d == (k - half), jnp.float32(t), m)
        return m

    def kernel(img_ref, ref_ref, out_ref):
        # ---- masks for the masked-roll sliding box sums (built once) --------
        col = lax.broadcasted_iota(jnp.int32, (1, Wp), 1)
        rowh = lax.broadcasted_iota(jnp.int32, (Hp, 1), 0)
        col_mask = {}
        row_mask_1 = {}
        row_mask_k = {}
        for s in shifts:
            col_mask[s] = ((col >= s) & (col <= Wp - 1 + s)).astype(jnp.float32)
            m1 = ((rowh >= s) & (rowh <= Hp - 1 + s)).astype(jnp.float32)
            row_mask_1[s] = m1
            row_mask_k[s] = m1 if K == 1 else jnp.concatenate([m1] * K, axis=0)

        def box_sum(x, row_mask):
            """Zero-padded 'same' 11x11 box sum of a channel-stacked (n*Hp, Wp)
            array via masked circular rolls (XLU/VPU; keeps the MXU free for the
            Gaussian epilogue).  The row masks also zero cross-channel wrap of
            the sublane rolls at channel-block boundaries."""
            rows = x.shape[0]
            acc = x                                                 # s == 0 term
            for s in shifts:                                        # W pass (lanes)
                acc = acc + pltpu.roll(x, shift=s % Wp, axis=1) * col_mask[s]
            out = acc                                               # s == 0 term
            for s in shifts:                                        # H pass (sublanes)
                out = out + pltpu.roll(acc, shift=s % rows, axis=0) * row_mask[s]
            return out

        img = img_ref[...]                                          # (K*Hp, Wp) f32
        yimg = ref_ref[...]                                         # (Hp, Wp) f32, zero in pad

        # local mean and zero-mean signal; the validity mask re-imposes the
        # implicit zero padding of the original image so every later conv over
        # the padded canvas matches the reference exactly at valid pixels.
        mu_x = box_sum(img, row_mask_k) * inv_ws2
        x_hat = img - mu_x
        if Wp != W:
            x_hat = x_hat * (col < W).astype(jnp.float32)
        if Hp != H:
            rv = (rowh < H).astype(jnp.float32)
            x_hat = x_hat * (rv if K == 1 else jnp.concatenate([rv] * K, axis=0))

        # local signal strength per exposure
        x_hat_norm = jnp.sqrt(box_sum(x_hat * x_hat, row_mask_k)) + 0.001

        xh = [x_hat[c * Hp:(c + 1) * Hp, :] for c in range(K)]      # aligned row views
        nrm = [x_hat_norm[c * Hp:(c + 1) * Hp, :] for c in range(K)]

        c_hat = nrm[0]
        sum_x_hat = xh[0]
        sum_norm = nrm[0]
        for c in range(1, K):
            c_hat = jnp.maximum(c_hat, nrm[c])
            sum_x_hat = sum_x_hat + xh[c]
            sum_norm = sum_norm + nrm[c]

        # consistency map R and exponent p (reference semantics: R clamped into
        # [eps, 1-eps] (== [0, 1] in f32), p clipped only from above at 10)
        r_conv = box_sum(sum_x_hat * sum_x_hat, row_mask_1)
        R = (jnp.sqrt(r_conv) + 2.0 * EPS) / (sum_norm + EPS)
        R = jnp.clip(R, EPS, 1.0 - EPS)
        theta = R * (math.pi / 2.0)
        p_exp = jnp.minimum(jnp.sin(theta) / jnp.cos(theta), 10.0)   # tan(R*pi/2)

        # structure aggregation across exposures
        num = None
        den = None
        for c in range(K):
            pow_c = jnp.exp(p_exp * jnp.log(nrm[c])) + EPS           # norm**p, norm > 0
            inv_n = pl.reciprocal(nrm[c], approx=True)
            contrib = pow_c * (xh[c] * inv_n)
            num = contrib if num is None else num + contrib
            den = pow_c if den is None else den + pow_c
        s_hat_one = num * pl.reciprocal(den, approx=True)
        s_conv = box_sum(s_hat_one * s_hat_one, row_mask_1)
        s_hat_two = s_hat_one * lax.rsqrt(s_conv + EPS)              # EPS guards flat regions
        x_hat_two = c_hat * s_hat_two                                # (Hp, Wp), zero in pad

        # SSIM-style comparison against the reference image: five Gaussian
        # convolutions as banded-Toeplitz MXU matmuls; W-pass batched into one
        # stacked matmul, H-pass reuses the same (Hp, Hp) weights.
        # TODO(synk): block the contraction to a ~128-wide diagonal band for
        # large images (N^3 -> ~128*N^2 MXU FLOPs per pass).
        gauss_h = band_matrix(Hp)
        gauss_w = gauss_h if Wp == Hp else band_matrix(Wp)
        g_stk = jnp.concatenate(
            [x_hat_two, yimg, x_hat_two * x_hat_two, yimg * yimg, x_hat_two * yimg],
            axis=0)                                                  # (5*Hp, Wp)
        gw = jnp.dot(g_stk, gauss_w, preferred_element_type=jnp.float32)
        mu_x2, mu_y, e_x2sq, e_ysq, e_xy = [
            jnp.dot(gauss_h, gw[i * Hp:(i + 1) * Hp, :],
                    preferred_element_type=jnp.float32)
            for i in range(5)]
        sigma_x2_sq = e_x2sq - mu_x2 * mu_x2
        sigma_y_sq = e_ysq - mu_y * mu_y
        sigma_xy = e_xy - mu_x2 * mu_y

        ssim_map = (2.0 * sigma_xy + C2) / (sigma_x2_sq + sigma_y_sq + C2)
        # exclude the alignment pad (finite but unused) from the mean
        if Wp != W:
            ssim_map = ssim_map * (col < W).astype(jnp.float32)
        if Hp != H:
            ssim_map = ssim_map * (rowh < H).astype(jnp.float32)
        out_ref[0, 0] = jnp.sum(ssim_map) * inv_hw

    return kernel


def mef_ssim(img_seq, ref_img, window_size=WINDOW_SIZE):
    """img_seq: (1, K, H, W), ref_img: (1, 1, H, W) -> scalar MEF-SSIM."""
    B, K, H, W = img_seq.shape
    Br, Cr, Hr, Wr = ref_img.shape
    assert B == 1 and Br == 1 and Cr == 1 and (Hr, Wr) == (H, W), \
        "original module's broadcasting is only valid for batch=1, ref channel=1"

    # lane/sublane alignment padding (zero pixels; semantics preserved by the
    # in-kernel validity masking and the masked mean)
    Hp = _round_up(H, 8)
    Wp = _round_up(W, 128)

    img0 = img_seq[0].astype(jnp.float32)
    ref0 = ref_img[0, 0].astype(jnp.float32)
    if (Hp, Wp) != (H, W):
        img0 = jnp.pad(img0, ((0, 0), (0, Hp - H), (0, Wp - W)))
        ref0 = jnp.pad(ref0, ((0, Hp - H), (0, Wp - W)))
    img_stk = img0.reshape(K * Hp, Wp)

    # Explicit VMEM budget: no grid => no double-buffering to reserve for.
    try:
        cap = pltpu.get_tpu_info().vmem_capacity_bytes
        vmem_limit = min(int(cap * 0.85), 112 * 1024 * 1024)
    except Exception:
        vmem_limit = 64 * 1024 * 1024

    # advisory cost hint for the XLA scheduler around this long custom call
    n_box_chan = 2 * K + 2
    flops = (10 * Hp * Wp * (Hp + Wp)          # Gaussian Toeplitz matmuls
             + 44 * n_box_chan * Hp * Wp       # masked-roll sliding box sums
             + 60 * K * Hp * Wp)               # elementwise epilogue work
    transcendentals = (3 * K + 8) * Hp * Wp
    bytes_accessed = 4 * ((K + 1) * Hp * Wp + 1)

    kernel = _make_kernel(K, H, W, Hp, Wp, window_size)
    # TODO(synk): H-tiled grid (~20-row halos, per-tile partial SSIM sums with
    # pl.when init/finalize, "parallel" tile axis) for >VMEM images and the
    # second TensorCore on v7x.
    out = pl.pallas_call(
        kernel,
        out_shape=jax.ShapeDtypeStruct((1, 1), jnp.float32),
        in_specs=[pl.BlockSpec(memory_space=pltpu.MemorySpace.VMEM),
                  pl.BlockSpec(memory_space=pltpu.MemorySpace.VMEM)],
        out_specs=pl.BlockSpec(memory_space=pltpu.MemorySpace.SMEM),
        compiler_params=pltpu.CompilerParams(vmem_limit_bytes=vmem_limit),
        cost_estimate=pl.CostEstimate(flops=int(flops),
                                      transcendentals=int(transcendentals),
                                      bytes_accessed=int(bytes_accessed)),
    )(img_stk, ref0)
    return out[0, 0]


if __name__ == "__main__":
    key = jax.random.PRNGKey(0)
    k1, k2 = jax.random.split(key)
    # small, module-consistent shapes: 1 batch, 4 exposures, 16x16 spatial, pixel range [0, 255]
    img_seq = jax.random.uniform(k1, (1, 4, 16, 16), dtype=jnp.float32) * 255.0
    ref_img = jax.random.uniform(k2, (1, 1, 16, 16), dtype=jnp.float32) * 255.0

    result = mef_ssim(img_seq, ref_img)
    result = jax.block_until_ready(result)
    assert jnp.isfinite(result), f"non-finite MEF-SSIM result: {result}"
    print("KERNEL_OK")
</pallas_src>

<mosaic_0001>
module attributes {stable_mosaic.version = 11 : i64} {
  func.func @kernel(%arg0: memref<64x128xf32, #tpu.memory_space<vmem>>, %arg1: memref<16x128xf32, #tpu.memory_space<vmem>>, %arg2: memref<1x1xf32, #tpu.memory_space<smem>>) attributes {dimension_semantics = [], scalar_prefetch = 0 : i64, scratch_operands = 0 : i64, tpu.core_type = #tpu.core_type<tc>} {
    %0 = tpu.iota {dimensions = array<i32: 1>} : vector<1x128xi32>
    %1 = tpu.iota {dimensions = array<i32: 0>} : vector<16x1xi32>
    %c-5_i32 = arith.constant -5 : i32
    %2 = vector.broadcast %c-5_i32 : i32 to vector<1x128xi32>
    %3 = arith.cmpi sge, %0, %2 : vector<1x128xi32>
    %c122_i32 = arith.constant 122 : i32
    %4 = vector.broadcast %c122_i32 : i32 to vector<1x128xi32>
    %5 = arith.cmpi sle, %0, %4 : vector<1x128xi32>
    %6 = arith.andi %3, %5 : vector<1x128xi1>
    %7 = arith.extui %6 : vector<1x128xi1> to vector<1x128xi32>
    %8 = arith.sitofp %7 : vector<1x128xi32> to vector<1x128xf32>
    %c-5_i32_0 = arith.constant -5 : i32
    %9 = vector.broadcast %c-5_i32_0 : i32 to vector<16x1xi32>
    %10 = arith.cmpi sge, %1, %9 : vector<16x1xi32>
    %c10_i32 = arith.constant 10 : i32
    %11 = vector.broadcast %c10_i32 : i32 to vector<16x1xi32>
    %12 = arith.cmpi sle, %1, %11 : vector<16x1xi32>
    %13 = arith.andi %10, %12 : vector<16x1xi1>
    %14 = arith.extui %13 : vector<16x1xi1> to vector<16x1xi32>
    %15 = arith.sitofp %14 : vector<16x1xi32> to vector<16x1xf32>
    %16 = tpu.concatenate %15, %15, %15, %15 in 0 : vector<16x1xf32>, vector<16x1xf32>, vector<16x1xf32>, vector<16x1xf32> -> vector<64x1xf32>
    %c-4_i32 = arith.constant -4 : i32
    %17 = vector.broadcast %c-4_i32 : i32 to vector<1x128xi32>
    %18 = arith.cmpi sge, %0, %17 : vector<1x128xi32>
    %c123_i32 = arith.constant 123 : i32
    %19 = vector.broadcast %c123_i32 : i32 to vector<1x128xi32>
    %20 = arith.cmpi sle, %0, %19 : vector<1x128xi32>
    %21 = arith.andi %18, %20 : vector<1x128xi1>
    %22 = arith.extui %21 : vector<1x128xi1> to vector<1x128xi32>
    %23 = arith.sitofp %22 : vector<1x128xi32> to vector<1x128xf32>
    %c-4_i32_1 = arith.constant -4 : i32
    %24 = vector.broadcast %c-4_i32_1 : i32 to vector<16x1xi32>
    %25 = arith.cmpi sge, %1, %24 : vector<16x1xi32>
    %c11_i32 = arith.constant 11 : i32
    %26 = vector.broadcast %c11_i32 : i32 to vector<16x1xi32>
    %27 = arith.cmpi sle, %1, %26 : vector<16x1xi32>
    %28 = arith.andi %25, %27 : vector<16x1xi1>
    %29 = arith.extui %28 : vector<16x1xi1> to vector<16x1xi32>
    %30 = arith.sitofp %29 : vector<16x1xi32> to vector<16x1xf32>
    %31 = tpu.concatenate %30, %30, %30, %30 in 0 : vector<16x1xf32>, vector<16x1xf32>, vector<16x1xf32>, vector<16x1xf32> -> vector<64x1xf32>
    %c-3_i32 = arith.constant -3 : i32
    %32 = vector.broadcast %c-3_i32 : i32 to vector<1x128xi32>
    %33 = arith.cmpi sge, %0, %32 : vector<1x128xi32>
    %c124_i32 = arith.constant 124 : i32
    %34 = vector.broadcast %c124_i32 : i32 to vector<1x128xi32>
    %35 = arith.cmpi sle, %0, %34 : vector<1x128xi32>
    %36 = arith.andi %33, %35 : vector<1x128xi1>
    %37 = arith.extui %36 : vector<1x128xi1> to vector<1x128xi32>
    %38 = arith.sitofp %37 : vector<1x128xi32> to vector<1x128xf32>
    %c-3_i32_2 = arith.constant -3 : i32
    %39 = vector.broadcast %c-3_i32_2 : i32 to vector<16x1xi32>
    %40 = arith.cmpi sge, %1, %39 : vector<16x1xi32>
    %c12_i32 = arith.constant 12 : i32
    %41 = vector.broadcast %c12_i32 : i32 to vector<16x1xi32>
    %42 = arith.cmpi sle, %1, %41 : vector<16x1xi32>
    %43 = arith.andi %40, %42 : vector<16x1xi1>
    %44 = arith.extui %43 : vector<16x1xi1> to vector<16x1xi32>
    %45 = arith.sitofp %44 : vector<16x1xi32> to vector<16x1xf32>
    %46 = tpu.concatenate %45, %45, %45, %45 in 0 : vector<16x1xf32>, vector<16x1xf32>, vector<16x1xf32>, vector<16x1xf32> -> vector<64x1xf32>
    %c-2_i32 = arith.constant -2 : i32
    %47 = vector.broadcast %c-2_i32 : i32 to vector<1x128xi32>
    %48 = arith.cmpi sge, %0, %47 : vector<1x128xi32>
    %c125_i32 = arith.constant 125 : i32
    %49 = vector.broadcast %c125_i32 : i32 to vector<1x128xi32>
    %50 = arith.cmpi sle, %0, %49 : vector<1x128xi32>
    %51 = arith.andi %48, %50 : vector<1x128xi1>
    %52 = arith.extui %51 : vector<1x128xi1> to vector<1x128xi32>
    %53 = arith.sitofp %52 : vector<1x128xi32> to vector<1x128xf32>
    %c-2_i32_3 = arith.constant -2 : i32
    %54 = vector.broadcast %c-2_i32_3 : i32 to vector<16x1xi32>
    %55 = arith.cmpi sge, %1, %54 : vector<16x1xi32>
    %c13_i32 = arith.constant 13 : i32
    %56 = vector.broadcast %c13_i32 : i32 to vector<16x1xi32>
    %57 = arith.cmpi sle, %1, %56 : vector<16x1xi32>
    %58 = arith.andi %55, %57 : vector<16x1xi1>
    %59 = arith.extui %58 : vector<16x1xi1> to vector<16x1xi32>
    %60 = arith.sitofp %59 : vector<16x1xi32> to vector<16x1xf32>
    %61 = tpu.concatenate %60, %60, %60, %60 in 0 : vector<16x1xf32>, vector<16x1xf32>, vector<16x1xf32>, vector<16x1xf32> -> vector<64x1xf32>
    %c-1_i32 = arith.constant -1 : i32
    %62 = vector.broadcast %c-1_i32 : i32 to vector<1x128xi32>
    %63 = arith.cmpi sge, %0, %62 : vector<1x128xi32>
    %c126_i32 = arith.constant 126 : i32
    %64 = vector.broadcast %c126_i32 : i32 to vector<1x128xi32>
    %65 = arith.cmpi sle, %0, %64 : vector<1x128xi32>
    %66 = arith.andi %63, %65 : vector<1x128xi1>
    %67 = arith.extui %66 : vector<1x128xi1> to vector<1x128xi32>
    %68 = arith.sitofp %67 : vector<1x128xi32> to vector<1x128xf32>
    %c-1_i32_4 = arith.constant -1 : i32
    %69 = vector.broadcast %c-1_i32_4 : i32 to vector<16x1xi32>
    %70 = arith.cmpi sge, %1, %69 : vector<16x1xi32>
    %c14_i32 = arith.constant 14 : i32
    %71 = vector.broadcast %c14_i32 : i32 to vector<16x1xi32>
    %72 = arith.cmpi sle, %1, %71 : vector<16x1xi32>
    %73 = arith.andi %70, %72 : vector<16x1xi1>
    %74 = arith.extui %73 : vector<16x1xi1> to vector<16x1xi32>
    %75 = arith.sitofp %74 : vector<16x1xi32> to vector<16x1xf32>
    %76 = tpu.concatenate %75, %75, %75, %75 in 0 : vector<16x1xf32>, vector<16x1xf32>, vector<16x1xf32>, vector<16x1xf32> -> vector<64x1xf32>
    %c1_i32 = arith.constant 1 : i32
    %77 = vector.broadcast %c1_i32 : i32 to vector<1x128xi32>
    %78 = arith.cmpi sge, %0, %77 : vector<1x128xi32>
    %c128_i32 = arith.constant 128 : i32
    %79 = vector.broadcast %c128_i32 : i32 to vector<1x128xi32>
    %80 = arith.cmpi sle, %0, %79 : vector<1x128xi32>
    %81 = arith.andi %78, %80 : vector<1x128xi1>
    %82 = arith.extui %81 : vector<1x128xi1> to vector<1x128xi32>
    %83 = arith.sitofp %82 : vector<1x128xi32> to vector<1x128xf32>
    %c1_i32_5 = arith.constant 1 : i32
    %84 = vector.broadcast %c1_i32_5 : i32 to vector<16x1xi32>
    %85 = arith.cmpi sge, %1, %84 : vector<16x1xi32>
    %c16_i32 = arith.constant 16 : i32
    %86 = vector.broadcast %c16_i32 : i32 to vector<16x1xi32>
    %87 = arith.cmpi sle, %1, %86 : vector<16x1xi32>
    %88 = arith.andi %85, %87 : vector<16x1xi1>
    %89 = arith.extui %88 : vector<16x1xi1> to vector<16x1xi32>
    %90 = arith.sitofp %89 : vector<16x1xi32> to vector<16x1xf32>
    %91 = tpu.concatenate %90, %90, %90, %90 in 0 : vector<16x1xf32>, vector<16x1xf32>, vector<16x1xf32>, vector<16x1xf32> -> vector<64x1xf32>
    %c2_i32 = arith.constant 2 : i32
    %92 = vector.broadcast %c2_i32 : i32 to vector<1x128xi32>
    %93 = arith.cmpi sge, %0, %92 : vector<1x128xi32>
    %c129_i32 = arith.constant 129 : i32
    %94 = vector.broadcast %c129_i32 : i32 to vector<1x128xi32>
    %95 = arith.cmpi sle, %0, %94 : vector<1x128xi32>
    %96 = arith.andi %93, %95 : vector<1x128xi1>
    %97 = arith.extui %96 : vector<1x128xi1> to vector<1x128xi32>
    %98 = arith.sitofp %97 : vector<1x128xi32> to vector<1x128xf32>
    %c2_i32_6 = arith.constant 2 : i32
    %99 = vector.broadcast %c2_i32_6 : i32 to vector<16x1xi32>
    %100 = arith.cmpi sge, %1, %99 : vector<16x1xi32>
    %c17_i32 = arith.constant 17 : i32
    %101 = vector.broadcast %c17_i32 : i32 to vector<16x1xi32>
    %102 = arith.cmpi sle, %1, %101 : vector<16x1xi32>
    %103 = arith.andi %100, %102 : vector<16x1xi1>
    %104 = arith.extui %103 : vector<16x1xi1> to vector<16x1xi32>
    %105 = arith.sitofp %104 : vector<16x1xi32> to vector<16x1xf32>
    %106 = tpu.concatenate %105, %105, %105, %105 in 0 : vector<16x1xf32>, vector<16x1xf32>, vector<16x1xf32>, vector<16x1xf32> -> vector<64x1xf32>
    %c3_i32 = arith.constant 3 : i32
    %107 = vector.broadcast %c3_i32 : i32 to vector<1x128xi32>
    %108 = arith.cmpi sge, %0, %107 : vector<1x128xi32>
    %c130_i32 = arith.constant 130 : i32
    %109 = vector.broadcast %c130_i32 : i32 to vector<1x128xi32>
    %110 = arith.cmpi sle, %0, %109 : vector<1x128xi32>
    %111 = arith.andi %108, %110 : vector<1x128xi1>
    %112 = arith.extui %111 : vector<1x128xi1> to vector<1x128xi32>
    %113 = arith.sitofp %112 : vector<1x128xi32> to vector<1x128xf32>
    %c3_i32_7 = arith.constant 3 : i32
    %114 = vector.broadcast %c3_i32_7 : i32 to vector<16x1xi32>
    %115 = arith.cmpi sge, %1, %114 : vector<16x1xi32>
    %c18_i32 = arith.constant 18 : i32
    %116 = vector.broadcast %c18_i32 : i32 to vector<16x1xi32>
    %117 = arith.cmpi sle, %1, %116 : vector<16x1xi32>
    %118 = arith.andi %115, %117 : vector<16x1xi1>
    %119 = arith.extui %118 : vector<16x1xi1> to vector<16x1xi32>
    %120 = arith.sitofp %119 : vector<16x1xi32> to vector<16x1xf32>
    %121 = tpu.concatenate %120, %120, %120, %120 in 0 : vector<16x1xf32>, vector<16x1xf32>, vector<16x1xf32>, vector<16x1xf32> -> vector<64x1xf32>
    %c4_i32 = arith.constant 4 : i32
    %122 = vector.broadcast %c4_i32 : i32 to vector<1x128xi32>
    %123 = arith.cmpi sge, %0, %122 : vector<1x128xi32>
    %c131_i32 = arith.constant 131 : i32
    %124 = vector.broadcast %c131_i32 : i32 to vector<1x128xi32>
    %125 = arith.cmpi sle, %0, %124 : vector<1x128xi32>
    %126 = arith.andi %123, %125 : vector<1x128xi1>
    %127 = arith.extui %126 : vector<1x128xi1> to vector<1x128xi32>
    %128 = arith.sitofp %127 : vector<1x128xi32> to vector<1x128xf32>
    %c4_i32_8 = arith.constant 4 : i32
    %129 = vector.broadcast %c4_i32_8 : i32 to vector<16x1xi32>
    %130 = arith.cmpi sge, %1, %129 : vector<16x1xi32>
    %c19_i32 = arith.constant 19 : i32
    %131 = vector.broadcast %c19_i32 : i32 to vector<16x1xi32>
    %132 = arith.cmpi sle, %1, %131 : vector<16x1xi32>
    %133 = arith.andi %130, %132 : vector<16x1xi1>
    %134 = arith.extui %133 : vector<16x1xi1> to vector<16x1xi32>
    %135 = arith.sitofp %134 : vector<16x1xi32> to vector<16x1xf32>
    %136 = tpu.concatenate %135, %135, %135, %135 in 0 : vector<16x1xf32>, vector<16x1xf32>, vector<16x1xf32>, vector<16x1xf32> -> vector<64x1xf32>
    %c5_i32 = arith.constant 5 : i32
    %137 = vector.broadcast %c5_i32 : i32 to vector<1x128xi32>
    %138 = arith.cmpi sge, %0, %137 : vector<1x128xi32>
    %c132_i32 = arith.constant 132 : i32
    %139 = vector.broadcast %c132_i32 : i32 to vector<1x128xi32>
    %140 = arith.cmpi sle, %0, %139 : vector<1x128xi32>
    %141 = arith.andi %138, %140 : vector<1x128xi1>
    %142 = arith.extui %141 : vector<1x128xi1> to vector<1x128xi32>
    %143 = arith.sitofp %142 : vector<1x128xi32> to vector<1x128xf32>
    %c5_i32_9 = arith.constant 5 : i32
    %144 = vector.broadcast %c5_i32_9 : i32 to vector<16x1xi32>
    %145 = arith.cmpi sge, %1, %144 : vector<16x1xi32>
    %c20_i32 = arith.constant 20 : i32
    %146 = vector.broadcast %c20_i32 : i32 to vector<16x1xi32>
    %147 = arith.cmpi sle, %1, %146 : vector<16x1xi32>
    %148 = arith.andi %145, %147 : vector<16x1xi1>
    %149 = arith.extui %148 : vector<16x1xi1> to vector<16x1xi32>
    %150 = arith.sitofp %149 : vector<16x1xi32> to vector<16x1xf32>
    %151 = tpu.concatenate %150, %150, %150, %150 in 0 : vector<16x1xf32>, vector<16x1xf32>, vector<16x1xf32>, vector<16x1xf32> -> vector<64x1xf32>
    %c0 = arith.constant 0 : index
    %c0_10 = arith.constant 0 : index
    %152 = vector.load %arg0[%c0, %c0_10] : memref<64x128xf32, #tpu.memory_space<vmem>>, vector<64x128xf32>
    %c0_11 = arith.constant 0 : index
    %c0_12 = arith.constant 0 : index
    %153 = vector.load %arg1[%c0_11, %c0_12] : memref<16x128xf32, #tpu.memory_space<vmem>>, vector<16x128xf32>
    %c123_i32_13 = arith.constant 123 : i32
    %154 = tpu.dynamic_rotate %152 by %c123_i32_13 dim 1 : vector<64x128xf32>, i32 -> vector<64x128xf32>
    %155 = vector.broadcast %8 : vector<1x128xf32> to vector<64x128xf32>
    %156 = arith.mulf %154, %155 : vector<64x128xf32>
    %157 = arith.addf %152, %156 : vector<64x128xf32>
    %c124_i32_14 = arith.constant 124 : i32
    %158 = tpu.dynamic_rotate %152 by %c124_i32_14 dim 1 : vector<64x128xf32>, i32 -> vector<64x128xf32>
    %159 = vector.broadcast %23 : vector<1x128xf32> to vector<64x128xf32>
    %160 = arith.mulf %158, %159 : vector<64x128xf32>
    %161 = arith.addf %157, %160 : vector<64x128xf32>
    %c125_i32_15 = arith.constant 125 : i32
    %162 = tpu.dynamic_rotate %152 by %c125_i32_15 dim 1 : vector<64x128xf32>, i32 -> vector<64x128xf32>
    %163 = vector.broadcast %38 : vector<1x128xf32> to vector<64x128xf32>
    %164 = arith.mulf %162, %163 : vector<64x128xf32>
    %165 = arith.addf %161, %164 : vector<64x128xf32>
    %c126_i32_16 = arith.constant 126 : i32
    %166 = tpu.dynamic_rotate %152 by %c126_i32_16 dim 1 : vector<64x128xf32>, i32 -> vector<64x128xf32>
    %167 = vector.broadcast %53 : vector<1x128xf32> to vector<64x128xf32>
    %168 = arith.mulf %166, %167 : vector<64x128xf32>
    %169 = arith.addf %165, %168 : vector<64x128xf32>
    %c127_i32 = arith.constant 127 : i32
    %170 = tpu.dynamic_rotate %152 by %c127_i32 dim 1 : vector<64x128xf32>, i32 -> vector<64x128xf32>
    %171 = vector.broadcast %68 : vector<1x128xf32> to vector<64x128xf32>
    %172 = arith.mulf %170, %171 : vector<64x128xf32>
    %173 = arith.addf %169, %172 : vector<64x128xf32>
    %c1_i32_17 = arith.constant 1 : i32
    %174 = tpu.dynamic_rotate %152 by %c1_i32_17 dim 1 : vector<64x128xf32>, i32 -> vector<64x128xf32>
    %175 = vector.broadcast %83 : vector<1x128xf32> to vector<64x128xf32>
    %176 = arith.mulf %174, %175 : vector<64x128xf32>
    %177 = arith.addf %173, %176 : vector<64x128xf32>
    %c2_i32_18 = arith.constant 2 : i32
    %178 = tpu.dynamic_rotate %152 by %c2_i32_18 dim 1 : vector<64x128xf32>, i32 -> vector<64x128xf32>
    %179 = vector.broadcast %98 : vector<1x128xf32> to vector<64x128xf32>
    %180 = arith.mulf %178, %179 : vector<64x128xf32>
    %181 = arith.addf %177, %180 : vector<64x128xf32>
    %c3_i32_19 = arith.constant 3 : i32
    %182 = tpu.dynamic_rotate %152 by %c3_i32_19 dim 1 : vector<64x128xf32>, i32 -> vector<64x128xf32>
    %183 = vector.broadcast %113 : vector<1x128xf32> to vector<64x128xf32>
    %184 = arith.mulf %182, %183 : vector<64x128xf32>
    %185 = arith.addf %181, %184 : vector<64x128xf32>
    %c4_i32_20 = arith.constant 4 : i32
    %186 = tpu.dynamic_rotate %152 by %c4_i32_20 dim 1 : vector<64x128xf32>, i32 -> vector<64x128xf32>
    %187 = vector.broadcast %128 : vector<1x128xf32> to vector<64x128xf32>
    %188 = arith.mulf %186, %187 : vector<64x128xf32>
    %189 = arith.addf %185, %188 : vector<64x128xf32>
    %c5_i32_21 = arith.constant 5 : i32
    %190 = tpu.dynamic_rotate %152 by %c5_i32_21 dim 1 : vector<64x128xf32>, i32 -> vector<64x128xf32>
    %191 = vector.broadcast %143 : vector<1x128xf32> to vector<64x128xf32>
    %192 = arith.mulf %190, %191 : vector<64x128xf32>
    %193 = arith.addf %189, %192 : vector<64x128xf32>
    %c59_i32 = arith.constant 59 : i32
    %194 = tpu.dynamic_rotate %193 by %c59_i32 dim 0 : vector<64x128xf32>, i32 -> vector<64x128xf32>
    %195 = vector.broadcast %16 : vector<64x1xf32> to vector<64x128xf32>
    %196 = arith.mulf %194, %195 : vector<64x128xf32>
    %197 = arith.addf %193, %196 : vector<64x128xf32>
    %c60_i32 = arith.constant 60 : i32
    %198 = tpu.dynamic_rotate %193 by %c60_i32 dim 0 : vector<64x128xf32>, i32 -> vector<64x128xf32>
    %199 = vector.broadcast %31 : vector<64x1xf32> to vector<64x128xf32>
    %200 = arith.mulf %198, %199 : vector<64x128xf32>
    %201 = arith.addf %197, %200 : vector<64x128xf32>
    %c61_i32 = arith.constant 61 : i32
    %202 = tpu.dynamic_rotate %193 by %c61_i32 dim 0 : vector<64x128xf32>, i32 -> vector<64x128xf32>
    %203 = vector.broadcast %46 : vector<64x1xf32> to vector<64x128xf32>
    %204 = arith.mulf %202, %203 : vector<64x128xf32>
    %205 = arith.addf %201, %204 : vector<64x128xf32>
    %c62_i32 = arith.constant 62 : i32
    %206 = tpu.dynamic_rotate %193 by %c62_i32 dim 0 : vector<64x128xf32>, i32 -> vector<64x128xf32>
    %207 = vector.broadcast %61 : vector<64x1xf32> to vector<64x128xf32>
    %208 = arith.mulf %206, %207 : vector<64x128xf32>
    %209 = arith.addf %205, %208 : vector<64x128xf32>
    %c63_i32 = arith.constant 63 : i32
    %210 = tpu.dynamic_rotate %193 by %c63_i32 dim 0 : vector<64x128xf32>, i32 -> vector<64x128xf32>
    %211 = vector.broadcast %76 : vector<64x1xf32> to vector<64x128xf32>
    %212 = arith.mulf %210, %211 : vector<64x128xf32>
    %213 = arith.addf %209, %212 : vector<64x128xf32>
    %c1_i32_22 = arith.constant 1 : i32
    %214 = tpu.dynamic_rotate %193 by %c1_i32_22 dim 0 : vector<64x128xf32>, i32 -> vector<64x128xf32>
    %215 = vector.broadcast %91 : vector<64x1xf32> to vector<64x128xf32>
    %216 = arith.mulf %214, %215 : vector<64x128xf32>
    %217 = arith.addf %213, %216 : vector<64x128xf32>
    %c2_i32_23 = arith.constant 2 : i32
    %218 = tpu.dynamic_rotate %193 by %c2_i32_23 dim 0 : vector<64x128xf32>, i32 -> vector<64x128xf32>
    %219 = vector.broadcast %106 : vector<64x1xf32> to vector<64x128xf32>
    %220 = arith.mulf %218, %219 : vector<64x128xf32>
    %221 = arith.addf %217, %220 : vector<64x128xf32>
    %c3_i32_24 = arith.constant 3 : i32
    %222 = tpu.dynamic_rotate %193 by %c3_i32_24 dim 0 : vector<64x128xf32>, i32 -> vector<64x128xf32>
    %223 = vector.broadcast %121 : vector<64x1xf32> to vector<64x128xf32>
    %224 = arith.mulf %222, %223 : vector<64x128xf32>
    %225 = arith.addf %221, %224 : vector<64x128xf32>
    %c4_i32_25 = arith.constant 4 : i32
    %226 = tpu.dynamic_rotate %193 by %c4_i32_25 dim 0 : vector<64x128xf32>, i32 -> vector<64x128xf32>
    %227 = vector.broadcast %136 : vector<64x1xf32> to vector<64x128xf32>
    %228 = arith.mulf %226, %227 : vector<64x128xf32>
    %229 = arith.addf %225, %228 : vector<64x128xf32>
    %c5_i32_26 = arith.constant 5 : i32
    %230 = tpu.dynamic_rotate %193 by %c5_i32_26 dim 0 : vector<64x128xf32>, i32 -> vector<64x128xf32>
    %231 = vector.broadcast %151 : vector<64x1xf32> to vector<64x128xf32>
    %232 = arith.mulf %230, %231 : vector<64x128xf32>
    %233 = arith.addf %229, %232 : vector<64x128xf32>
    %cst = arith.constant 0.00826446246 : f32
    %234 = vector.broadcast %cst : f32 to vector<64x128xf32>
    %235 = arith.mulf %233, %234 : vector<64x128xf32>
    %236 = arith.subf %152, %235 : vector<64x128xf32>
    %c16_i32_27 = arith.constant 16 : i32
    %237 = vector.broadcast %c16_i32_27 : i32 to vector<1x128xi32>
    %238 = arith.cmpi slt, %0, %237 : vector<1x128xi32>
    %239 = arith.extui %238 : vector<1x128xi1> to vector<1x128xi32>
    %240 = arith.sitofp %239 : vector<1x128xi32> to vector<1x128xf32>
    %241 = vector.broadcast %240 : vector<1x128xf32> to vector<64x128xf32>
    %242 = arith.mulf %236, %241 : vector<64x128xf32>
    %243 = arith.mulf %242, %242 : vector<64x128xf32>
    %c123_i32_28 = arith.constant 123 : i32
    %244 = tpu.dynamic_rotate %243 by %c123_i32_28 dim 1 : vector<64x128xf32>, i32 -> vector<64x128xf32>
    %245 = vector.broadcast %8 : vector<1x128xf32> to vector<64x128xf32>
    %246 = arith.mulf %244, %245 : vector<64x128xf32>
    %247 = arith.addf %243, %246 : vector<64x128xf32>
    %c124_i32_29 = arith.constant 124 : i32
    %248 = tpu.dynamic_rotate %243 by %c124_i32_29 dim 1 : vector<64x128xf32>, i32 -> vector<64x128xf32>
    %249 = vector.broadcast %23 : vector<1x128xf32> to vector<64x128xf32>
    %250 = arith.mulf %248, %249 : vector<64x128xf32>
    %251 = arith.addf %247, %250 : vector<64x128xf32>
    %c125_i32_30 = arith.constant 125 : i32
    %252 = tpu.dynamic_rotate %243 by %c125_i32_30 dim 1 : vector<64x128xf32>, i32 -> vector<64x128xf32>
    %253 = vector.broadcast %38 : vector<1x128xf32> to vector<64x128xf32>
    %254 = arith.mulf %252, %253 : vector<64x128xf32>
    %255 = arith.addf %251, %254 : vector<64x128xf32>
    %c126_i32_31 = arith.constant 126 : i32
    %256 = tpu.dynamic_rotate %243 by %c126_i32_31 dim 1 : vector<64x128xf32>, i32 -> vector<64x128xf32>
    %257 = vector.broadcast %53 : vector<1x128xf32> to vector<64x128xf32>
    %258 = arith.mulf %256, %257 : vector<64x128xf32>
    %259 = arith.addf %255, %258 : vector<64x128xf32>
    %c127_i32_32 = arith.constant 127 : i32
    %260 = tpu.dynamic_rotate %243 by %c127_i32_32 dim 1 : vector<64x128xf32>, i32 -> vector<64x128xf32>
    %261 = vector.broadcast %68 : vector<1x128xf32> to vector<64x128xf32>
    %262 = arith.mulf %260, %261 : vector<64x128xf32>
    %263 = arith.addf %259, %262 : vector<64x128xf32>
    %c1_i32_33 = arith.constant 1 : i32
    %264 = tpu.dynamic_rotate %243 by %c1_i32_33 dim 1 : vector<64x128xf32>, i32 -> vector<64x128xf32>
    %265 = vector.broadcast %83 : vector<1x128xf32> to vector<64x128xf32>
    %266 = arith.mulf %264, %265 : vector<64x128xf32>
    %267 = arith.addf %263, %266 : vector<64x128xf32>
    %c2_i32_34 = arith.constant 2 : i32
    %268 = tpu.dynamic_rotate %243 by %c2_i32_34 dim 1 : vector<64x128xf32>, i32 -> vector<64x128xf32>
    %269 = vector.broadcast %98 : vector<1x128xf32> to vector<64x128xf32>
    %270 = arith.mulf %268, %269 : vector<64x128xf32>
    %271 = arith.addf %267, %270 : vector<64x128xf32>
    %c3_i32_35 = arith.constant 3 : i32
    %272 = tpu.dynamic_rotate %243 by %c3_i32_35 dim 1 : vector<64x128xf32>, i32 -> vector<64x128xf32>
    %273 = vector.broadcast %113 : vector<1x128xf32> to vector<64x128xf32>
    %274 = arith.mulf %272, %273 : vector<64x128xf32>
    %275 = arith.addf %271, %274 : vector<64x128xf32>
    %c4_i32_36 = arith.constant 4 : i32
    %276 = tpu.dynamic_rotate %243 by %c4_i32_36 dim 1 : vector<64x128xf32>, i32 -> vector<64x128xf32>
    %277 = vector.broadcast %128 : vector<1x128xf32> to vector<64x128xf32>
    %278 = arith.mulf %276, %277 : vector<64x128xf32>
    %279 = arith.addf %275, %278 : vector<64x128xf32>
    %c5_i32_37 = arith.constant 5 : i32
    %280 = tpu.dynamic_rotate %243 by %c5_i32_37 dim 1 : vector<64x128xf32>, i32 -> vector<64x128xf32>
    %281 = vector.broadcast %143 : vector<1x128xf32> to vector<64x128xf32>
    %282 = arith.mulf %280, %281 : vector<64x128xf32>
    %283 = arith.addf %279, %282 : vector<64x128xf32>
    %c59_i32_38 = arith.constant 59 : i32
    %284 = tpu.dynamic_rotate %283 by %c59_i32_38 dim 0 : vector<64x128xf32>, i32 -> vector<64x128xf32>
    %285 = vector.broadcast %16 : vector<64x1xf32> to vector<64x128xf32>
    %286 = arith.mulf %284, %285 : vector<64x128xf32>
    %287 = arith.addf %283, %286 : vector<64x128xf32>
    %c60_i32_39 = arith.constant 60 : i32
    %288 = tpu.dynamic_rotate %283 by %c60_i32_39 dim 0 : vector<64x128xf32>, i32 -> vector<64x128xf32>
    %289 = vector.broadcast %31 : vector<64x1xf32> to vector<64x128xf32>
    %290 = arith.mulf %288, %289 : vector<64x128xf32>
    %291 = arith.addf %287, %290 : vector<64x128xf32>
    %c61_i32_40 = arith.constant 61 : i32
    %292 = tpu.dynamic_rotate %283 by %c61_i32_40 dim 0 : vector<64x128xf32>, i32 -> vector<64x128xf32>
    %293 = vector.broadcast %46 : vector<64x1xf32> to vector<64x128xf32>
    %294 = arith.mulf %292, %293 : vector<64x128xf32>
    %295 = arith.addf %291, %294 : vector<64x128xf32>
    %c62_i32_41 = arith.constant 62 : i32
    %296 = tpu.dynamic_rotate %283 by %c62_i32_41 dim 0 : vector<64x128xf32>, i32 -> vector<64x128xf32>
    %297 = vector.broadcast %61 : vector<64x1xf32> to vector<64x128xf32>
    %298 = arith.mulf %296, %297 : vector<64x128xf32>
    %299 = arith.addf %295, %298 : vector<64x128xf32>
    %c63_i32_42 = arith.constant 63 : i32
    %300 = tpu.dynamic_rotate %283 by %c63_i32_42 dim 0 : vector<64x128xf32>, i32 -> vector<64x128xf32>
    %301 = vector.broadcast %76 : vector<64x1xf32> to vector<64x128xf32>
    %302 = arith.mulf %300, %301 : vector<64x128xf32>
    %303 = arith.addf %299, %302 : vector<64x128xf32>
    %c1_i32_43 = arith.constant 1 : i32
    %304 = tpu.dynamic_rotate %283 by %c1_i32_43 dim 0 : vector<64x128xf32>, i32 -> vector<64x128xf32>
    %305 = vector.broadcast %91 : vector<64x1xf32> to vector<64x128xf32>
    %306 = arith.mulf %304, %305 : vector<64x128xf32>
    %307 = arith.addf %303, %306 : vector<64x128xf32>
    %c2_i32_44 = arith.constant 2 : i32
    %308 = tpu.dynamic_rotate %283 by %c2_i32_44 dim 0 : vector<64x128xf32>, i32 -> vector<64x128xf32>
    %309 = vector.broadcast %106 : vector<64x1xf32> to vector<64x128xf32>
    %310 = arith.mulf %308, %309 : vector<64x128xf32>
    %311 = arith.addf %307, %310 : vector<64x128xf32>
    %c3_i32_45 = arith.constant 3 : i32
    %312 = tpu.dynamic_rotate %283 by %c3_i32_45 dim 0 : vector<64x128xf32>, i32 -> vector<64x128xf32>
    %313 = vector.broadcast %121 : vector<64x1xf32> to vector<64x128xf32>
    %314 = arith.mulf %312, %313 : vector<64x128xf32>
    %315 = arith.addf %311, %314 : vector<64x128xf32>
    %c4_i32_46 = arith.constant 4 : i32
    %316 = tpu.dynamic_rotate %283 by %c4_i32_46 dim 0 : vector<64x128xf32>, i32 -> vector<64x128xf32>
    %317 = vector.broadcast %136 : vector<64x1xf32> to vector<64x128xf32>
    %318 = arith.mulf %316, %317 : vector<64x128xf32>
    %319 = arith.addf %315, %318 : vector<64x128xf32>
    %c5_i32_47 = arith.constant 5 : i32
    %320 = tpu.dynamic_rotate %283 by %c5_i32_47 dim 0 : vector<64x128xf32>, i32 -> vector<64x128xf32>
    %321 = vector.broadcast %151 : vector<64x1xf32> to vector<64x128xf32>
    %322 = arith.mulf %320, %321 : vector<64x128xf32>
    %323 = arith.addf %319, %322 : vector<64x128xf32>
    %324 = math.sqrt %323 : vector<64x128xf32>
    %cst_48 = arith.constant 1.000000e-03 : f32
    %325 = vector.broadcast %cst_48 : f32 to vector<64x128xf32>
    %326 = arith.addf %324, %325 : vector<64x128xf32>
    %327 = vector.extract_strided_slice %242 {offsets = [0, 0], sizes = [16, 128], strides = [1, 1]} : vector<64x128xf32> to vector<16x128xf32>
    %328 = vector.extract_strided_slice %242 {offsets = [16, 0], sizes = [16, 128], strides = [1, 1]} : vector<64x128xf32> to vector<16x128xf32>
    %329 = vector.extract_strided_slice %242 {offsets = [32, 0], sizes = [16, 128], strides = [1, 1]} : vector<64x128xf32> to vector<16x128xf32>
    %330 = vector.extract_strided_slice %242 {offsets = [48, 0], sizes = [16, 128], strides = [1, 1]} : vector<64x128xf32> to vector<16x128xf32>
    %331 = vector.extract_strided_slice %326 {offsets = [0, 0], sizes = [16, 128], strides = [1, 1]} : vector<64x128xf32> to vector<16x128xf32>
    %332 = vector.extract_strided_slice %326 {offsets = [16, 0], sizes = [16, 128], strides = [1, 1]} : vector<64x128xf32> to vector<16x128xf32>
    %333 = vector.extract_strided_slice %326 {offsets = [32, 0], sizes = [16, 128], strides = [1, 1]} : vector<64x128xf32> to vector<16x128xf32>
    %334 = vector.extract_strided_slice %326 {offsets = [48, 0], sizes = [16, 128], strides = [1, 1]} : vector<64x128xf32> to vector<16x128xf32>
    %335 = arith.maximumf %331, %332 : vector<16x128xf32>
    %336 = arith.addf %327, %328 : vector<16x128xf32>
    %337 = arith.addf %331, %332 : vector<16x128xf32>
    %338 = arith.maximumf %335, %333 : vector<16x128xf32>
    %339 = arith.addf %336, %329 : vector<16x128xf32>
    %340 = arith.addf %337, %333 : vector<16x128xf32>
    %341 = arith.maximumf %338, %334 : vector<16x128xf32>
    %342 = arith.addf %339, %330 : vector<16x128xf32>
    %343 = arith.addf %340, %334 : vector<16x128xf32>
    %344 = arith.mulf %342, %342 : vector<16x128xf32>
    %c123_i32_49 = arith.constant 123 : i32
    %345 = tpu.dynamic_rotate %344 by %c123_i32_49 dim 1 : vector<16x128xf32>, i32 -> vector<16x128xf32>
    %346 = vector.broadcast %8 : vector<1x128xf32> to vector<16x128xf32>
    %347 = arith.mulf %345, %346 : vector<16x128xf32>
    %348 = arith.addf %344, %347 : vector<16x128xf32>
    %c124_i32_50 = arith.constant 124 : i32
    %349 = tpu.dynamic_rotate %344 by %c124_i32_50 dim 1 : vector<16x128xf32>, i32 -> vector<16x128xf32>
    %350 = vector.broadcast %23 : vector<1x128xf32> to vector<16x128xf32>
    %351 = arith.mulf %349, %350 : vector<16x128xf32>
    %352 = arith.addf %348, %351 : vector<16x128xf32>
    %c125_i32_51 = arith.constant 125 : i32
    %353 = tpu.dynamic_rotate %344 by %c125_i32_51 dim 1 : vector<16x128xf32>, i32 -> vector<16x128xf32>
    %354 = vector.broadcast %38 : vector<1x128xf32> to vector<16x128xf32>
    %355 = arith.mulf %353, %354 : vector<16x128xf32>
    %356 = arith.addf %352, %355 : vector<16x128xf32>
    %c126_i32_52 = arith.constant 126 : i32
    %357 = tpu.dynamic_rotate %344 by %c126_i32_52 dim 1 : vector<16x128xf32>, i32 -> vector<16x128xf32>
    %358 = vector.broadcast %53 : vector<1x128xf32> to vector<16x128xf32>
    %359 = arith.mulf %357, %358 : vector<16x128xf32>
    %360 = arith.addf %356, %359 : vector<16x128xf32>
    %c127_i32_53 = arith.constant 127 : i32
    %361 = tpu.dynamic_rotate %344 by %c127_i32_53 dim 1 : vector<16x128xf32>, i32 -> vector<16x128xf32>
    %362 = vector.broadcast %68 : vector<1x128xf32> to vector<16x128xf32>
    %363 = arith.mulf %361, %362 : vector<16x128xf32>
    %364 = arith.addf %360, %363 : vector<16x128xf32>
    %c1_i32_54 = arith.constant 1 : i32
    %365 = tpu.dynamic_rotate %344 by %c1_i32_54 dim 1 : vector<16x128xf32>, i32 -> vector<16x128xf32>
    %366 = vector.broadcast %83 : vector<1x128xf32> to vector<16x128xf32>
    %367 = arith.mulf %365, %366 : vector<16x128xf32>
    %368 = arith.addf %364, %367 : vector<16x128xf32>
    %c2_i32_55 = arith.constant 2 : i32
    %369 = tpu.dynamic_rotate %344 by %c2_i32_55 dim 1 : vector<16x128xf32>, i32 -> vector<16x128xf32>
    %370 = vector.broadcast %98 : vector<1x128xf32> to vector<16x128xf32>
    %371 = arith.mulf %369, %370 : vector<16x128xf32>
    %372 = arith.addf %368, %371 : vector<16x128xf32>
    %c3_i32_56 = arith.constant 3 : i32
    %373 = tpu.dynamic_rotate %344 by %c3_i32_56 dim 1 : vector<16x128xf32>, i32 -> vector<16x128xf32>
    %374 = vector.broadcast %113 : vector<1x128xf32> to vector<16x128xf32>
    %375 = arith.mulf %373, %374 : vector<16x128xf32>
    %376 = arith.addf %372, %375 : vector<16x128xf32>
    %c4_i32_57 = arith.constant 4 : i32
    %377 = tpu.dynamic_rotate %344 by %c4_i32_57 dim 1 : vector<16x128xf32>, i32 -> vector<16x128xf32>
    %378 = vector.broadcast %128 : vector<1x128xf32> to vector<16x128xf32>
    %379 = arith.mulf %377, %378 : vector<16x128xf32>
    %380 = arith.addf %376, %379 : vector<16x128xf32>
    %c5_i32_58 = arith.constant 5 : i32
    %381 = tpu.dynamic_rotate %344 by %c5_i32_58 dim 1 : vector<16x128xf32>, i32 -> vector<16x128xf32>
    %382 = vector.broadcast %143 : vector<1x128xf32> to vector<16x128xf32>
    %383 = arith.mulf %381, %382 : vector<16x128xf32>
    %384 = arith.addf %380, %383 : vector<16x128xf32>
    %c11_i32_59 = arith.constant 11 : i32
    %385 = tpu.dynamic_rotate %384 by %c11_i32_59 dim 0 : vector<16x128xf32>, i32 -> vector<16x128xf32>
    %386 = vector.broadcast %15 : vector<16x1xf32> to vector<16x128xf32>
    %387 = arith.mulf %385, %386 : vector<16x128xf32>
    %388 = arith.addf %384, %387 : vector<16x128xf32>
    %c12_i32_60 = arith.constant 12 : i32
    %389 = tpu.dynamic_rotate %384 by %c12_i32_60 dim 0 : vector<16x128xf32>, i32 -> vector<16x128xf32>
    %390 = vector.broadcast %30 : vector<16x1xf32> to vector<16x128xf32>
    %391 = arith.mulf %389, %390 : vector<16x128xf32>
    %392 = arith.addf %388, %391 : vector<16x128xf32>
    %c13_i32_61 = arith.constant 13 : i32
    %393 = tpu.dynamic_rotate %384 by %c13_i32_61 dim 0 : vector<16x128xf32>, i32 -> vector<16x128xf32>
    %394 = vector.broadcast %45 : vector<16x1xf32> to vector<16x128xf32>
    %395 = arith.mulf %393, %394 : vector<16x128xf32>
    %396 = arith.addf %392, %395 : vector<16x128xf32>
    %c14_i32_62 = arith.constant 14 : i32
    %397 = tpu.dynamic_rotate %384 by %c14_i32_62 dim 0 : vector<16x128xf32>, i32 -> vector<16x128xf32>
    %398 = vector.broadcast %60 : vector<16x1xf32> to vector<16x128xf32>
    %399 = arith.mulf %397, %398 : vector<16x128xf32>
    %400 = arith.addf %396, %399 : vector<16x128xf32>
    %c15_i32 = arith.constant 15 : i32
    %401 = tpu.dynamic_rotate %384 by %c15_i32 dim 0 : vector<16x128xf32>, i32 -> vector<16x128xf32>
    %402 = vector.broadcast %75 : vector<16x1xf32> to vector<16x128xf32>
    %403 = arith.mulf %401, %402 : vector<16x128xf32>
    %404 = arith.addf %400, %403 : vector<16x128xf32>
    %c1_i32_63 = arith.constant 1 : i32
    %405 = tpu.dynamic_rotate %384 by %c1_i32_63 dim 0 : vector<16x128xf32>, i32 -> vector<16x128xf32>
    %406 = vector.broadcast %90 : vector<16x1xf32> to vector<16x128xf32>
    %407 = arith.mulf %405, %406 : vector<16x128xf32>
    %408 = arith.addf %404, %407 : vector<16x128xf32>
    %c2_i32_64 = arith.constant 2 : i32
    %409 = tpu.dynamic_rotate %384 by %c2_i32_64 dim 0 : vector<16x128xf32>, i32 -> vector<16x128xf32>
    %410 = vector.broadcast %105 : vector<16x1xf32> to vector<16x128xf32>
    %411 = arith.mulf %409, %410 : vector<16x128xf32>
    %412 = arith.addf %408, %411 : vector<16x128xf32>
    %c3_i32_65 = arith.constant 3 : i32
    %413 = tpu.dynamic_rotate %384 by %c3_i32_65 dim 0 : vector<16x128xf32>, i32 -> vector<16x128xf32>
    %414 = vector.broadcast %120 : vector<16x1xf32> to vector<16x128xf32>
    %415 = arith.mulf %413, %414 : vector<16x128xf32>
    %416 = arith.addf %412, %415 : vector<16x128xf32>
    %c4_i32_66 = arith.constant 4 : i32
    %417 = tpu.dynamic_rotate %384 by %c4_i32_66 dim 0 : vector<16x128xf32>, i32 -> vector<16x128xf32>
    %418 = vector.broadcast %135 : vector<16x1xf32> to vector<16x128xf32>
    %419 = arith.mulf %417, %418 : vector<16x128xf32>
    %420 = arith.addf %416, %419 : vector<16x128xf32>
    %c5_i32_67 = arith.constant 5 : i32
    %421 = tpu.dynamic_rotate %384 by %c5_i32_67 dim 0 : vector<16x128xf32>, i32 -> vector<16x128xf32>
    %422 = vector.broadcast %150 : vector<16x1xf32> to vector<16x128xf32>
    %423 = arith.mulf %421, %422 : vector<16x128xf32>
    %424 = arith.addf %420, %423 : vector<16x128xf32>
    %425 = math.sqrt %424 : vector<16x128xf32>
    %cst_68 = arith.constant 4.4408921E-16 : f32
    %426 = vector.broadcast %cst_68 : f32 to vector<16x128xf32>
    %427 = arith.addf %425, %426 : vector<16x128xf32>
    %cst_69 = arith.constant 2.22044605E-16 : f32
    %428 = vector.broadcast %cst_69 : f32 to vector<16x128xf32>
    %429 = arith.addf %343, %428 : vector<16x128xf32>
    %430 = arith.divf %427, %429 : vector<16x128xf32>
    %cst_70 = arith.constant 2.22044605E-16 : f32
    %cst_71 = arith.constant 1.000000e+00 : f32
    %431 = vector.broadcast %cst_70 : f32 to vector<16x128xf32>
    %432 = arith.maximumf %431, %430 : vector<16x128xf32>
    %433 = vector.broadcast %cst_71 : f32 to vector<16x128xf32>
    %434 = arith.minimumf %433, %432 : vector<16x128xf32>
    %cst_72 = arith.constant 1.57079637 : f32
    %435 = vector.broadcast %cst_72 : f32 to vector<16x128xf32>
    %436 = arith.mulf %434, %435 : vector<16x128xf32>
    %437 = math.sin %436 : vector<16x128xf32>
    %438 = math.cos %436 : vector<16x128xf32>
    %439 = arith.divf %437, %438 : vector<16x128xf32>
    %cst_73 = arith.constant 1.000000e+01 : f32
    %440 = vector.broadcast %cst_73 : f32 to vector<16x128xf32>
    %441 = arith.minimumf %439, %440 : vector<16x128xf32>
    %442 = math.log %331 : vector<16x128xf32>
    %443 = arith.mulf %441, %442 : vector<16x128xf32>
    %444 = math.exp %443 : vector<16x128xf32>
    %cst_74 = arith.constant 2.22044605E-16 : f32
    %445 = vector.broadcast %cst_74 : f32 to vector<16x128xf32>
    %446 = arith.addf %444, %445 : vector<16x128xf32>
    %447 = tpu.reciprocal %331 {approx = true} : vector<16x128xf32> -> vector<16x128xf32>
    %448 = arith.mulf %327, %447 : vector<16x128xf32>
    %449 = arith.mulf %446, %448 : vector<16x128xf32>
    %450 = math.log %332 : vector<16x128xf32>
    %451 = arith.mulf %441, %450 : vector<16x128xf32>
    %452 = math.exp %451 : vector<16x128xf32>
    %cst_75 = arith.constant 2.22044605E-16 : f32
    %453 = vector.broadcast %cst_75 : f32 to vector<16x128xf32>
    %454 = arith.addf %452, %453 : vector<16x128xf32>
    %455 = tpu.reciprocal %332 {approx = true} : vector<16x128xf32> -> vector<16x128xf32>
    %456 = arith.mulf %328, %455 : vector<16x128xf32>
    %457 = arith.mulf %454, %456 : vector<16x128xf32>
    %458 = arith.addf %449, %457 : vector<16x128xf32>
    %459 = arith.addf %446, %454 : vector<16x128xf32>
    %460 = math.log %333 : vector<16x128xf32>
    %461 = arith.mulf %441, %460 : vector<16x128xf32>
    %462 = math.exp %461 : vector<16x128xf32>
    %cst_76 = arith.constant 2.22044605E-16 : f32
    %463 = vector.broadcast %cst_76 : f32 to vector<16x128xf32>
    %464 = arith.addf %462, %463 : vector<16x128xf32>
    %465 = tpu.reciprocal %333 {approx = true} : vector<16x128xf32> -> vector<16x128xf32>
    %466 = arith.mulf %329, %465 : vector<16x128xf32>
    %467 = arith.mulf %464, %466 : vector<16x128xf32>
    %468 = arith.addf %458, %467 : vector<16x128xf32>
    %469 = arith.addf %459, %464 : vector<16x128xf32>
    %470 = math.log %334 : vector<16x128xf32>
    %471 = arith.mulf %441, %470 : vector<16x128xf32>
    %472 = math.exp %471 : vector<16x128xf32>
    %cst_77 = arith.constant 2.22044605E-16 : f32
    %473 = vector.broadcast %cst_77 : f32 to vector<16x128xf32>
    %474 = arith.addf %472, %473 : vector<16x128xf32>
    %475 = tpu.reciprocal %334 {approx = true} : vector<16x128xf32> -> vector<16x128xf32>
    %476 = arith.mulf %330, %475 : vector<16x128xf32>
    %477 = arith.mulf %474, %476 : vector<16x128xf32>
    %478 = arith.addf %468, %477 : vector<16x128xf32>
    %479 = arith.addf %469, %474 : vector<16x128xf32>
    %480 = tpu.reciprocal %479 {approx = true} : vector<16x128xf32> -> vector<16x128xf32>
    %481 = arith.mulf %478, %480 : vector<16x128xf32>
    %482 = arith.mulf %481, %481 : vector<16x128xf32>
    %c123_i32_78 = arith.constant 123 : i32
    %483 = tpu.dynamic_rotate %482 by %c123_i32_78 dim 1 : vector<16x128xf32>, i32 -> vector<16x128xf32>
    %484 = vector.broadcast %8 : vector<1x128xf32> to vector<16x128xf32>
    %485 = arith.mulf %483, %484 : vector<16x128xf32>
    %486 = arith.addf %482, %485 : vector<16x128xf32>
    %c124_i32_79 = arith.constant 124 : i32
    %487 = tpu.dynamic_rotate %482 by %c124_i32_79 dim 1 : vector<16x128xf32>, i32 -> vector<16x128xf32>
    %488 = vector.broadcast %23 : vector<1x128xf32> to vector<16x128xf32>
    %489 = arith.mulf %487, %488 : vector<16x128xf32>
    %490 = arith.addf %486, %489 : vector<16x128xf32>
    %c125_i32_80 = arith.constant 125 : i32
    %491 = tpu.dynamic_rotate %482 by %c125_i32_80 dim 1 : vector<16x128xf32>, i32 -> vector<16x128xf32>
    %492 = vector.broadcast %38 : vector<1x128xf32> to vector<16x128xf32>
    %493 = arith.mulf %491, %492 : vector<16x128xf32>
    %494 = arith.addf %490, %493 : vector<16x128xf32>
    %c126_i32_81 = arith.constant 126 : i32
    %495 = tpu.dynamic_rotate %482 by %c126_i32_81 dim 1 : vector<16x128xf32>, i32 -> vector<16x128xf32>
    %496 = vector.broadcast %53 : vector<1x128xf32> to vector<16x128xf32>
    %497 = arith.mulf %495, %496 : vector<16x128xf32>
    %498 = arith.addf %494, %497 : vector<16x128xf32>
    %c127_i32_82 = arith.constant 127 : i32
    %499 = tpu.dynamic_rotate %482 by %c127_i32_82 dim 1 : vector<16x128xf32>, i32 -> vector<16x128xf32>
    %500 = vector.broadcast %68 : vector<1x128xf32> to vector<16x128xf32>
    %501 = arith.mulf %499, %500 : vector<16x128xf32>
    %502 = arith.addf %498, %501 : vector<16x128xf32>
    %c1_i32_83 = arith.constant 1 : i32
    %503 = tpu.dynamic_rotate %482 by %c1_i32_83 dim 1 : vector<16x128xf32>, i32 -> vector<16x128xf32>
    %504 = vector.broadcast %83 : vector<1x128xf32> to vector<16x128xf32>
    %505 = arith.mulf %503, %504 : vector<16x128xf32>
    %506 = arith.addf %502, %505 : vector<16x128xf32>
    %c2_i32_84 = arith.constant 2 : i32
    %507 = tpu.dynamic_rotate %482 by %c2_i32_84 dim 1 : vector<16x128xf32>, i32 -> vector<16x128xf32>
    %508 = vector.broadcast %98 : vector<1x128xf32> to vector<16x128xf32>
    %509 = arith.mulf %507, %508 : vector<16x128xf32>
    %510 = arith.addf %506, %509 : vector<16x128xf32>
    %c3_i32_85 = arith.constant 3 : i32
    %511 = tpu.dynamic_rotate %482 by %c3_i32_85 dim 1 : vector<16x128xf32>, i32 -> vector<16x128xf32>
    %512 = vector.broadcast %113 : vector<1x128xf32> to vector<16x128xf32>
    %513 = arith.mulf %511, %512 : vector<16x128xf32>
    %514 = arith.addf %510, %513 : vector<16x128xf32>
    %c4_i32_86 = arith.constant 4 : i32
    %515 = tpu.dynamic_rotate %482 by %c4_i32_86 dim 1 : vector<16x128xf32>, i32 -> vector<16x128xf32>
    %516 = vector.broadcast %128 : vector<1x128xf32> to vector<16x128xf32>
    %517 = arith.mulf %515, %516 : vector<16x128xf32>
    %518 = arith.addf %514, %517 : vector<16x128xf32>
    %c5_i32_87 = arith.constant 5 : i32
    %519 = tpu.dynamic_rotate %482 by %c5_i32_87 dim 1 : vector<16x128xf32>, i32 -> vector<16x128xf32>
    %520 = vector.broadcast %143 : vector<1x128xf32> to vector<16x128xf32>
    %521 = arith.mulf %519, %520 : vector<16x128xf32>
    %522 = arith.addf %518, %521 : vector<16x128xf32>
    %c11_i32_88 = arith.constant 11 : i32
    %523 = tpu.dynamic_rotate %522 by %c11_i32_88 dim 0 : vector<16x128xf32>, i32 -> vector<16x128xf32>
    %524 = vector.broadcast %15 : vector<16x1xf32> to vector<16x128xf32>
    %525 = arith.mulf %523, %524 : vector<16x128xf32>
    %526 = arith.addf %522, %525 : vector<16x128xf32>
    %c12_i32_89 = arith.constant 12 : i32
    %527 = tpu.dynamic_rotate %522 by %c12_i32_89 dim 0 : vector<16x128xf32>, i32 -> vector<16x128xf32>
    %528 = vector.broadcast %30 : vector<16x1xf32> to vector<16x128xf32>
    %529 = arith.mulf %527, %528 : vector<16x128xf32>
    %530 = arith.addf %526, %529 : vector<16x128xf32>
    %c13_i32_90 = arith.constant 13 : i32
    %531 = tpu.dynamic_rotate %522 by %c13_i32_90 dim 0 : vector<16x128xf32>, i32 -> vector<16x128xf32>
    %532 = vector.broadcast %45 : vector<16x1xf32> to vector<16x128xf32>
    %533 = arith.mulf %531, %532 : vector<16x128xf32>
    %534 = arith.addf %530, %533 : vector<16x128xf32>
    %c14_i32_91 = arith.constant 14 : i32
    %535 = tpu.dynamic_rotate %522 by %c14_i32_91 dim 0 : vector<16x128xf32>, i32 -> vector<16x128xf32>
    %536 = vector.broadcast %60 : vector<16x1xf32> to vector<16x128xf32>
    %537 = arith.mulf %535, %536 : vector<16x128xf32>
    %538 = arith.addf %534, %537 : vector<16x128xf32>
    %c15_i32_92 = arith.constant 15 : i32
    %539 = tpu.dynamic_rotate %522 by %c15_i32_92 dim 0 : vector<16x128xf32>, i32 -> vector<16x128xf32>
    %540 = vector.broadcast %75 : vector<16x1xf32> to vector<16x128xf32>
    %541 = arith.mulf %539, %540 : vector<16x128xf32>
    %542 = arith.addf %538, %541 : vector<16x128xf32>
    %c1_i32_93 = arith.constant 1 : i32
    %543 = tpu.dynamic_rotate %522 by %c1_i32_93 dim 0 : vector<16x128xf32>, i32 -> vector<16x128xf32>
    %544 = vector.broadcast %90 : vector<16x1xf32> to vector<16x128xf32>
    %545 = arith.mulf %543, %544 : vector<16x128xf32>
    %546 = arith.addf %542, %545 : vector<16x128xf32>
    %c2_i32_94 = arith.constant 2 : i32
    %547 = tpu.dynamic_rotate %522 by %c2_i32_94 dim 0 : vector<16x128xf32>, i32 -> vector<16x128xf32>
    %548 = vector.broadcast %105 : vector<16x1xf32> to vector<16x128xf32>
    %549 = arith.mulf %547, %548 : vector<16x128xf32>
    %550 = arith.addf %546, %549 : vector<16x128xf32>
    %c3_i32_95 = arith.constant 3 : i32
    %551 = tpu.dynamic_rotate %522 by %c3_i32_95 dim 0 : vector<16x128xf32>, i32 -> vector<16x128xf32>
    %552 = vector.broadcast %120 : vector<16x1xf32> to vector<16x128xf32>
    %553 = arith.mulf %551, %552 : vector<16x128xf32>
    %554 = arith.addf %550, %553 : vector<16x128xf32>
    %c4_i32_96 = arith.constant 4 : i32
    %555 = tpu.dynamic_rotate %522 by %c4_i32_96 dim 0 : vector<16x128xf32>, i32 -> vector<16x128xf32>
    %556 = vector.broadcast %135 : vector<16x1xf32> to vector<16x128xf32>
    %557 = arith.mulf %555, %556 : vector<16x128xf32>
    %558 = arith.addf %554, %557 : vector<16x128xf32>
    %c5_i32_97 = arith.constant 5 : i32
    %559 = tpu.dynamic_rotate %522 by %c5_i32_97 dim 0 : vector<16x128xf32>, i32 -> vector<16x128xf32>
    %560 = vector.broadcast %150 : vector<16x1xf32> to vector<16x128xf32>
    %561 = arith.mulf %559, %560 : vector<16x128xf32>
    %562 = arith.addf %558, %561 : vector<16x128xf32>
    %cst_98 = arith.constant 2.22044605E-16 : f32
    %563 = vector.broadcast %cst_98 : f32 to vector<16x128xf32>
    %564 = arith.addf %562, %563 : vector<16x128xf32>
    %565 = math.rsqrt %564 : vector<16x128xf32>
    %566 = arith.mulf %481, %565 : vector<16x128xf32>
    %567 = arith.mulf %341, %566 : vector<16x128xf32>
    %568 = tpu.iota {dimensions = array<i32: 0>} : vector<16x16xi32>
    %569 = tpu.iota {dimensions = array<i32: 1>} : vector<16x16xi32>
    %570 = arith.subi %568, %569 : vector<16x16xi32>
    %cst_99 = arith.constant 0.000000e+00 : f32
    %571 = vector.broadcast %cst_99 : f32 to vector<16x16xf32>
    %c-5_i32_100 = arith.constant -5 : i32
    %572 = vector.broadcast %c-5_i32_100 : i32 to vector<16x16xi32>
    %573 = arith.cmpi eq, %570, %572 : vector<16x16xi32>
    %cst_101 = arith.constant 0.00102838012 : f32
    %574 = vector.broadcast %cst_101 : f32 to vector<16x16xf32>
    %575 = arith.select %573, %574, %571 : vector<16x16xi1>, vector<16x16xf32>
    %c-4_i32_102 = arith.constant -4 : i32
    %576 = vector.broadcast %c-4_i32_102 : i32 to vector<16x16xi32>
    %577 = arith.cmpi eq, %570, %576 : vector<16x16xi32>
    %cst_103 = arith.constant 0.00759875821 : f32
    %578 = vector.broadcast %cst_103 : f32 to vector<16x16xf32>
    %579 = arith.select %577, %578, %575 : vector<16x16xi1>, vector<16x16xf32>
    %c-3_i32_104 = arith.constant -3 : i32
    %580 = vector.broadcast %c-3_i32_104 : i32 to vector<16x16xi32>
    %581 = arith.cmpi eq, %570, %580 : vector<16x16xi32>
    %cst_105 = arith.constant 0.0360007733 : f32
    %582 = vector.broadcast %cst_105 : f32 to vector<16x16xf32>
    %583 = arith.select %581, %582, %579 : vector<16x16xi1>, vector<16x16xf32>
    %c-2_i32_106 = arith.constant -2 : i32
    %584 = vector.broadcast %c-2_i32_106 : i32 to vector<16x16xi32>
    %585 = arith.cmpi eq, %570, %584 : vector<16x16xi32>
    %cst_107 = arith.constant 0.109360687 : f32
    %586 = vector.broadcast %cst_107 : f32 to vector<16x16xf32>
    %587 = arith.select %585, %586, %583 : vector<16x16xi1>, vector<16x16xf32>
    %c-1_i32_108 = arith.constant -1 : i32
    %588 = vector.broadcast %c-1_i32_108 : i32 to vector<16x16xi32>
    %589 = arith.cmpi eq, %570, %588 : vector<16x16xi32>
    %cst_109 = arith.constant 0.213005543 : f32
    %590 = vector.broadcast %cst_109 : f32 to vector<16x16xf32>
    %591 = arith.select %589, %590, %587 : vector<16x16xi1>, vector<16x16xf32>
    %c0_i32 = arith.constant 0 : i32
    %592 = vector.broadcast %c0_i32 : i32 to vector<16x16xi32>
    %593 = arith.cmpi eq, %570, %592 : vector<16x16xi32>
    %cst_110 = arith.constant 0.266011715 : f32
    %594 = vector.broadcast %cst_110 : f32 to vector<16x16xf32>
    %595 = arith.select %593, %594, %591 : vector<16x16xi1>, vector<16x16xf32>
    %c1_i32_111 = arith.constant 1 : i32
    %596 = vector.broadcast %c1_i32_111 : i32 to vector<16x16xi32>
    %597 = arith.cmpi eq, %570, %596 : vector<16x16xi32>
    %cst_112 = arith.constant 0.213005543 : f32
    %598 = vector.broadcast %cst_112 : f32 to vector<16x16xf32>
    %599 = arith.select %597, %598, %595 : vector<16x16xi1>, vector<16x16xf32>
    %c2_i32_113 = arith.constant 2 : i32
    %600 = vector.broadcast %c2_i32_113 : i32 to vector<16x16xi32>
    %601 = arith.cmpi eq, %570, %600 : vector<16x16xi32>
    %cst_114 = arith.constant 0.109360687 : f32
    %602 = vector.broadcast %cst_114 : f32 to vector<16x16xf32>
    %603 = arith.select %601, %602, %599 : vector<16x16xi1>, vector<16x16xf32>
    %c3_i32_115 = arith.constant 3 : i32
    %604 = vector.broadcast %c3_i32_115 : i32 to vector<16x16xi32>
    %605 = arith.cmpi eq, %570, %604 : vector<16x16xi32>
    %cst_116 = arith.constant 0.0360007733 : f32
    %606 = vector.broadcast %cst_116 : f32 to vector<16x16xf32>
    %607 = arith.select %605, %606, %603 : vector<16x16xi1>, vector<16x16xf32>
    %c4_i32_117 = arith.constant 4 : i32
    %608 = vector.broadcast %c4_i32_117 : i32 to vector<16x16xi32>
    %609 = arith.cmpi eq, %570, %608 : vector<16x16xi32>
    %cst_118 = arith.constant 0.00759875821 : f32
    %610 = vector.broadcast %cst_118 : f32 to vector<16x16xf32>
    %611 = arith.select %609, %610, %607 : vector<16x16xi1>, vector<16x16xf32>
    %c5_i32_119 = arith.constant 5 : i32
    %612 = vector.broadcast %c5_i32_119 : i32 to vector<16x16xi32>
    %613 = arith.cmpi eq, %570, %612 : vector<16x16xi32>
    %cst_120 = arith.constant 0.00102838012 : f32
    %614 = vector.broadcast %cst_120 : f32 to vector<16x16xf32>
    %615 = arith.select %613, %614, %611 : vector<16x16xi1>, vector<16x16xf32>
    %616 = tpu.iota {dimensions = array<i32: 0>} : vector<128x128xi32>
    %617 = tpu.iota {dimensions = array<i32: 1>} : vector<128x128xi32>
    %618 = arith.subi %616, %617 : vector<128x128xi32>
    %cst_121 = arith.constant 0.000000e+00 : f32
    %619 = vector.broadcast %cst_121 : f32 to vector<128x128xf32>
    %c-5_i32_122 = arith.constant -5 : i32
    %620 = vector.broadcast %c-5_i32_122 : i32 to vector<128x128xi32>
    %621 = arith.cmpi eq, %618, %620 : vector<128x128xi32>
    %cst_123 = arith.constant 0.00102838012 : f32
    %622 = vector.broadcast %cst_123 : f32 to vector<128x128xf32>
    %623 = arith.select %621, %622, %619 : vector<128x128xi1>, vector<128x128xf32>
    %c-4_i32_124 = arith.constant -4 : i32
    %624 = vector.broadcast %c-4_i32_124 : i32 to vector<128x128xi32>
    %625 = arith.cmpi eq, %618, %624 : vector<128x128xi32>
    %cst_125 = arith.constant 0.00759875821 : f32
    %626 = vector.broadcast %cst_125 : f32 to vector<128x128xf32>
    %627 = arith.select %625, %626, %623 : vector<128x128xi1>, vector<128x128xf32>
    %c-3_i32_126 = arith.constant -3 : i32
    %628 = vector.broadcast %c-3_i32_126 : i32 to vector<128x128xi32>
    %629 = arith.cmpi eq, %618, %628 : vector<128x128xi32>
    %cst_127 = arith.constant 0.0360007733 : f32
    %630 = vector.broadcast %cst_127 : f32 to vector<128x128xf32>
    %631 = arith.select %629, %630, %627 : vector<128x128xi1>, vector<128x128xf32>
    %c-2_i32_128 = arith.constant -2 : i32
    %632 = vector.broadcast %c-2_i32_128 : i32 to vector<128x128xi32>
    %633 = arith.cmpi eq, %618, %632 : vector<128x128xi32>
    %cst_129 = arith.constant 0.109360687 : f32
    %634 = vector.broadcast %cst_129 : f32 to vector<128x128xf32>
    %635 = arith.select %633, %634, %631 : vector<128x128xi1>, vector<128x128xf32>
    %c-1_i32_130 = arith.constant -1 : i32
    %636 = vector.broadcast %c-1_i32_130 : i32 to vector<128x128xi32>
    %637 = arith.cmpi eq, %618, %636 : vector<128x128xi32>
    %cst_131 = arith.constant 0.213005543 : f32
    %638 = vector.broadcast %cst_131 : f32 to vector<128x128xf32>
    %639 = arith.select %637, %638, %635 : vector<128x128xi1>, vector<128x128xf32>
    %c0_i32_132 = arith.constant 0 : i32
    %640 = vector.broadcast %c0_i32_132 : i32 to vector<128x128xi32>
    %641 = arith.cmpi eq, %618, %640 : vector<128x128xi32>
    %cst_133 = arith.constant 0.266011715 : f32
    %642 = vector.broadcast %cst_133 : f32 to vector<128x128xf32>
    %643 = arith.select %641, %642, %639 : vector<128x128xi1>, vector<128x128xf32>
    %c1_i32_134 = arith.constant 1 : i32
    %644 = vector.broadcast %c1_i32_134 : i32 to vector<128x128xi32>
    %645 = arith.cmpi eq, %618, %644 : vector<128x128xi32>
    %cst_135 = arith.constant 0.213005543 : f32
    %646 = vector.broadcast %cst_135 : f32 to vector<128x128xf32>
    %647 = arith.select %645, %646, %643 : vector<128x128xi1>, vector<128x128xf32>
    %c2_i32_136 = arith.constant 2 : i32
    %648 = vector.broadcast %c2_i32_136 : i32 to vector<128x128xi32>
    %649 = arith.cmpi eq, %618, %648 : vector<128x128xi32>
    %cst_137 = arith.constant 0.109360687 : f32
    %650 = vector.broadcast %cst_137 : f32 to vector<128x128xf32>
    %651 = arith.select %649, %650, %647 : vector<128x128xi1>, vector<128x128xf32>
    %c3_i32_138 = arith.constant 3 : i32
    %652 = vector.broadcast %c3_i32_138 : i32 to vector<128x128xi32>
    %653 = arith.cmpi eq, %618, %652 : vector<128x128xi32>
    %cst_139 = arith.constant 0.0360007733 : f32
    %654 = vector.broadcast %cst_139 : f32 to vector<128x128xf32>
    %655 = arith.select %653, %654, %651 : vector<128x128xi1>, vector<128x128xf32>
    %c4_i32_140 = arith.constant 4 : i32
    %656 = vector.broadcast %c4_i32_140 : i32 to vector<128x128xi32>
    %657 = arith.cmpi eq, %618, %656 : vector<128x128xi32>
    %cst_141 = arith.constant 0.00759875821 : f32
    %658 = vector.broadcast %cst_141 : f32 to vector<128x128xf32>
    %659 = arith.select %657, %658, %655 : vector<128x128xi1>, vector<128x128xf32>
    %c5_i32_142 = arith.constant 5 : i32
    %660 = vector.broadcast %c5_i32_142 : i32 to vector<128x128xi32>
    %661 = arith.cmpi eq, %618, %660 : vector<128x128xi32>
    %cst_143 = arith.constant 0.00102838012 : f32
    %662 = vector.broadcast %cst_143 : f32 to vector<128x128xf32>
    %663 = arith.select %661, %662, %659 : vector<128x128xi1>, vector<128x128xf32>
    %664 = arith.mulf %567, %567 : vector<16x128xf32>
    %665 = arith.mulf %153, %153 : vector<16x128xf32>
    %666 = arith.mulf %567, %153 : vector<16x128xf32>
    %667 = tpu.concatenate %567, %153, %664, %665, %666 in 0 : vector<16x128xf32>, vector<16x128xf32>, vector<16x128xf32>, vector<16x128xf32>, vector<16x128xf32> -> vector<80x128xf32>
    %cst_144 = arith.constant dense<0.000000e+00> : vector<80x128xf32>
    %668 = tpu.matmul %667, %663, %cst_144 {dimension_numbers = #tpu.dot_dimension_numbers<[1], [0], [0], [1], [0, 0, 1, 1], [], []>} : vector<80x128xf32>, vector<128x128xf32>, vector<80x128xf32> -> vector<80x128xf32>
    %669 = vector.extract_strided_slice %668 {offsets = [0, 0], sizes = [16, 128], strides = [1, 1]} : vector<80x128xf32> to vector<16x128xf32>
    %cst_145 = arith.constant dense<0.000000e+00> : vector<16x128xf32>
    %670 = tpu.matmul %615, %669, %cst_145 {dimension_numbers = #tpu.dot_dimension_numbers<[1], [0], [0], [1], [0, 0, 1, 1], [], []>} : vector<16x16xf32>, vector<16x128xf32>, vector<16x128xf32> -> vector<16x128xf32>
    %671 = vector.extract_strided_slice %668 {offsets = [16, 0], sizes = [16, 128], strides = [1, 1]} : vector<80x128xf32> to vector<16x128xf32>
    %cst_146 = arith.constant dense<0.000000e+00> : vector<16x128xf32>
    %672 = tpu.matmul %615, %671, %cst_146 {dimension_numbers = #tpu.dot_dimension_numbers<[1], [0], [0], [1], [0, 0, 1, 1], [], []>} : vector<16x16xf32>, vector<16x128xf32>, vector<16x128xf32> -> vector<16x128xf32>
    %673 = vector.extract_strided_slice %668 {offsets = [32, 0], sizes = [16, 128], strides = [1, 1]} : vector<80x128xf32> to vector<16x128xf32>
    %cst_147 = arith.constant dense<0.000000e+00> : vector<16x128xf32>
    %674 = tpu.matmul %615, %673, %cst_147 {dimension_numbers = #tpu.dot_dimension_numbers<[1], [0], [0], [1], [0, 0, 1, 1], [], []>} : vector<16x16xf32>, vector<16x128xf32>, vector<16x128xf32> -> vector<16x128xf32>
    %675 = vector.extract_strided_slice %668 {offsets = [48, 0], sizes = [16, 128], strides = [1, 1]} : vector<80x128xf32> to vector<16x128xf32>
    %cst_148 = arith.constant dense<0.000000e+00> : vector<16x128xf32>
    %676 = tpu.matmul %615, %675, %cst_148 {dimension_numbers = #tpu.dot_dimension_numbers<[1], [0], [0], [1], [0, 0, 1, 1], [], []>} : vector<16x16xf32>, vector<16x128xf32>, vector<16x128xf32> -> vector<16x128xf32>
    %677 = vector.extract_strided_slice %668 {offsets = [64, 0], sizes = [16, 128], strides = [1, 1]} : vector<80x128xf32> to vector<16x128xf32>
    %cst_149 = arith.constant dense<0.000000e+00> : vector<16x128xf32>
    %678 = tpu.matmul %615, %677, %cst_149 {dimension_numbers = #tpu.dot_dimension_numbers<[1], [0], [0], [1], [0, 0, 1, 1], [], []>} : vector<16x16xf32>, vector<16x128xf32>, vector<16x128xf32> -> vector<16x128xf32>
    %679 = arith.mulf %670, %670 : vector<16x128xf32>
    %680 = arith.subf %674, %679 : vector<16x128xf32>
    %681 = arith.mulf %672, %672 : vector<16x128xf32>
    %682 = arith.subf %676, %681 : vector<16x128xf32>
    %683 = arith.mulf %670, %672 : vector<16x128xf32>
    %684 = arith.subf %678, %683 : vector<16x128xf32>
    %cst_150 = arith.constant 2.000000e+00 : f32
    %685 = vector.broadcast %cst_150 : f32 to vector<16x128xf32>
    %686 = arith.mulf %685, %684 : vector<16x128xf32>
    %cst_151 = arith.constant 5.852250e+01 : f32
    %687 = vector.broadcast %cst_151 : f32 to vector<16x128xf32>
    %688 = arith.addf %686, %687 : vector<16x128xf32>
    %689 = arith.addf %680, %682 : vector<16x128xf32>
    %cst_152 = arith.constant 5.852250e+01 : f32
    %690 = vector.broadcast %cst_152 : f32 to vector<16x128xf32>
    %691 = arith.addf %689, %690 : vector<16x128xf32>
    %692 = arith.divf %688, %691 : vector<16x128xf32>
    %c16_i32_153 = arith.constant 16 : i32
    %693 = vector.broadcast %c16_i32_153 : i32 to vector<1x128xi32>
    %694 = arith.cmpi slt, %0, %693 : vector<1x128xi32>
    %695 = arith.extui %694 : vector<1x128xi1> to vector<1x128xi32>
    %696 = arith.sitofp %695 : vector<1x128xi32> to vector<1x128xf32>
    %697 = vector.broadcast %696 : vector<1x128xf32> to vector<16x128xf32>
    %698 = arith.mulf %692, %697 : vector<16x128xf32>
    %699 = vector.shape_cast %698 : vector<16x128xf32> to vector<1x16x128xf32>
    %cst_154 = arith.constant dense<0.000000e+00> : vector<1xf32>
    %700 = vector.multi_reduction <add>, %699, %cst_154 [1, 2] : vector<1x16x128xf32> to vector<1xf32>
    %701 = vector.shape_cast %700 : vector<1xf32> to vector<1x1x1xf32>
    %702 = vector.extract %701[0, 0, 0] : f32 from vector<1x1x1xf32>
    %cst_155 = arith.constant 3.906250e-03 : f32
    %703 = arith.mulf %702, %cst_155 : f32
    %c0_156 = arith.constant 0 : index
    %c0_157 = arith.constant 0 : index
    %704 = memref.load %arg2[%c0_156, %c0_157] : memref<1x1xf32, #tpu.memory_space<smem>>
    memref.store %703, %arg2[%c0_156, %c0_157] : memref<1x1xf32, #tpu.memory_space<smem>>
    return
  }
}

</mosaic_0001>

<llo_original>
// kernel: tpu_custom_call.1
$region0: #{tpu_custom_call.1}
  #allocation0 [shape = 'u32[]', space=smem, size = 0x4, offset = 0x4, fixed_abs, tag = 'smem constant byte address 0x4 - core index']
  #allocation1 [shape = 'u32[144,128]{1,0:T(1,128)}', space=vmem, size = 0x12000, scoped, tag = 'internal scratch']
  %s0 = inlined_call_operand.hbm [shape: f32[64,128], index: 0, kind: input, shape index: {}]
  %s1 = inlined_call_operand.hbm [shape: f32[16,128], index: 1, kind: input, shape index: {}]
  %s2 = inlined_call_operand.hbm [shape: f32[1,1], index: 2, kind: output, shape index: {}]
  %s3 = sld [smem:[#allocation0]]
  $region26: #{tpu_custom_call.1} parent=0
    _
  %s5 = ssub.s32 1, %s3
  %s6 = scalar_select 0, %s5, %s3
  $region1: #{tpu_custom_call.1} parent=0
    #allocation2 [shape = 'u8[32768]{0}', space=vmem, size = 0x8000, scoped, tag = 'input window, operand 0, single buffered']
    #allocation3 [shape = 's32[1]{0}', space=sflag, size = 0x4, scoped, tag = 'scoped memory for tpu_custom_call.1']
    #allocation4 [shape = 's32[1]{0}', space=sflag, size = 0x4, scoped, tag = 'scoped memory for tpu_custom_call.1']
    #allocation5 [shape = 'u8[8192]{0}', space=vmem, size = 0x2000, scoped, tag = 'input window, operand 1, single buffered']
    #allocation6 [shape = 's32[1]{0}', space=sflag, size = 0x4, scoped, tag = 'scoped memory for tpu_custom_call.1']
    #allocation7 [shape = 'u8[512]{0}', space=smem, size = 0x200, scoped, tag = 'output window, operand 0, single buffered']
    %7 = vsyncpa [#allocation3], 0
    %8 = vsyncpa [#allocation6], 0
    %9 = vsyncpa [#allocation4], 0
    // Predicated region
    $region2: #{tpu_custom_call.1} parent=1 // pred_check
      _
    $region3: #{tpu_custom_call.1} parent=1 // pred_check_branch
      %11 = sbr.rel (0) target = $region5
    $region4: #{tpu_custom_call.1} parent=1 // pred_region
      %s13 = ssub.s32 1024, 1024
      %14 = vsyncadd [#allocation3], %s13
      %s15 = sshll.u32 [#allocation2], 4
      %s16 = int_to_ptr.vmem [resolvable:$true] %s15
      %21 = dma.hbm_to_vmem [thread:$0]  %s0, 1024, %s16, [#allocation3], 128, 128, 8
    $region5: #{tpu_custom_call.1} parent=1 // pred_fallthru
      _
    // Predicated region
    $region6: #{tpu_custom_call.1} parent=1 // pred_check
      _
    $region7: #{tpu_custom_call.1} parent=1 // pred_check_branch
      %23 = sbr.rel (0) target = $region9
    $region8: #{tpu_custom_call.1} parent=1 // pred_region
      %s25 = ssub.s32 256, 256
      %26 = vsyncadd [#allocation6], %s25
      %s27 = sshll.u32 [#allocation5], 4
      %s28 = int_to_ptr.vmem [resolvable:$true] %s27
      %33 = dma.hbm_to_vmem [thread:$0]  %s1, 256, %s28, [#allocation6], 128, 128, 8
    $region9: #{tpu_custom_call.1} parent=1 // pred_fallthru
      _
    // Predicated region
    $region10: #{tpu_custom_call.1} parent=1 // pred_check
      _
    $region11: #{tpu_custom_call.1} parent=1 // pred_check_branch
      %35 = sbr.rel (0) target = $region13
    $region12: #{tpu_custom_call.1} parent=1 // pred_region
      %36 = dma.done [#allocation3], 1024
    $region13: #{tpu_custom_call.1} parent=1 // pred_fallthru
      _
    // Predicated region
    $region14: #{tpu_custom_call.1} parent=1 // pred_check
      _
    $region15: #{tpu_custom_call.1} parent=1 // pred_check_branch
      %38 = sbr.rel (0) target = $region17
    $region16: #{tpu_custom_call.1} parent=1 // pred_region
      %39 = dma.done [#allocation6], 256
    $region17: #{tpu_custom_call.1} parent=1 // pred_fallthru
      _
    %v40 = vlaneseq
    %v41 = vand.u32 %v40, 127
    %v42 = vlaneseq
    %v43 = vshrl.u32 %v42, 7
    %v44 = vadd.s32 %v43, 8
    %vm45 = vcmp.ge.s32.totalorder %v41, 4294967291
    %vm46 = vcmp.le.s32.totalorder %v41, 122
    %vm47 = vmand %vm45, %vm46
    %v48 = vsel %vm47, 1, 0
    %v49 = vcvt.s32.f32 %v48
    %vm50 = vcmp.ge.s32.totalorder %v43, 4294967291
    %vm51 = vcmp.ge.s32.totalorder %v44, 4294967291
    %vm52 = vcmp.le.s32.totalorder %v43, 10
    %vm53 = vcmp.le.s32.totalorder %v44, 10
    %vm54 = vmand %vm50, %vm52
    %vm55 = vmand %vm51, %vm53
    %v56 = vsel %vm54, 1, 0
    %v57 = vsel %vm55, 1, 0
    %v58 = vcvt.s32.f32 %v56
    %v59 = vcvt.s32.f32 %v57
    %vm60 = vcmp.ge.s32.totalorder %v41, 4294967292
    %vm61 = vcmp.le.s32.totalorder %v41, 123
    %vm62 = vmand %vm60, %vm61
    %v63 = vsel %vm62, 1, 0
    %v64 = vcvt.s32.f32 %v63
    %vm65 = vcmp.ge.s32.totalorder %v43, 4294967292
    %vm66 = vcmp.ge.s32.totalorder %v44, 4294967292
    %vm67 = vcmp.le.s32.totalorder %v43, 11
    %vm68 = vcmp.le.s32.totalorder %v44, 11
    %vm69 = vmand %vm65, %vm67
    %vm70 = vmand %vm66, %vm68
    %v71 = vsel %vm69, 1, 0
    %v72 = vsel %vm70, 1, 0
    %v73 = vcvt.s32.f32 %v71
    %v74 = vcvt.s32.f32 %v72
    %vm75 = vcmp.ge.s32.totalorder %v41, 4294967293
    %vm76 = vcmp.le.s32.totalorder %v41, 124
    %vm77 = vmand %vm75, %vm76
    %v78 = vsel %vm77, 1, 0
    %v79 = vcvt.s32.f32 %v78
    %vm80 = vcmp.ge.s32.totalorder %v43, 4294967293
    %vm81 = vcmp.ge.s32.totalorder %v44, 4294967293
    %vm82 = vcmp.le.s32.totalorder %v43, 12
    %vm83 = vcmp.le.s32.totalorder %v44, 12
    %vm84 = vmand %vm80, %vm82
    %vm85 = vmand %vm81, %vm83
    %v86 = vsel %vm84, 1, 0
    %v87 = vsel %vm85, 1, 0
    %v88 = vcvt.s32.f32 %v86
    %v89 = vcvt.s32.f32 %v87
    %vm90 = vcmp.ge.s32.totalorder %v41, 4294967294
    %vm91 = vcmp.le.s32.totalorder %v41, 125
    %vm92 = vmand %vm90, %vm91
    %v93 = vsel %vm92, 1, 0
    %v94 = vcvt.s32.f32 %v93
    %vm95 = vcmp.ge.s32.totalorder %v43, 4294967294
    %vm96 = vcmp.ge.s32.totalorder %v44, 4294967294
    %vm97 = vcmp.le.s32.totalorder %v43, 13
    %vm98 = vcmp.le.s32.totalorder %v44, 13
    %vm99 = vmand %vm95, %vm97
    %vm100 = vmand %vm96, %vm98
    %v101 = vsel %vm99, 1, 0
    %v102 = vsel %vm100, 1, 0
    %v103 = vcvt.s32.f32 %v101
    %v104 = vcvt.s32.f32 %v102
    %vm105 = vcmp.ge.s32.totalorder %v41, 4294967295
    %vm106 = vcmp.le.s32.totalorder %v41, 126
    %vm107 = vmand %vm105, %vm106
    %v108 = vsel %vm107, 1, 0
    %v109 = vcvt.s32.f32 %v108
    %vm110 = vcmp.ge.s32.totalorder %v43, 4294967295
    %vm111 = vcmp.ge.s32.totalorder %v44, 4294967295
    %vm112 = vcmp.le.s32.totalorder %v43, 14
    %vm113 = vcmp.le.s32.totalorder %v44, 14
    %vm114 = vmand %vm110, %vm112
    %vm115 = vmand %vm111, %vm113
    %v116 = vsel %vm114, 1, 0
    %v117 = vsel %vm115, 1, 0
    %v118 = vcvt.s32.f32 %v116
    %v119 = vcvt.s32.f32 %v117
    %vm120 = vcmp.ge.s32.totalorder %v41, 1
    %vm121 = vcmp.le.s32.totalorder %v41, 128
    %vm122 = vmand %vm120, %vm121
    %v123 = vsel %vm122, 1, 0
    %v124 = vcvt.s32.f32 %v123
    %vm125 = vcmp.ge.s32.totalorder %v43, 1
    %vm126 = vcmp.ge.s32.totalorder %v44, 1
    %vm127 = vcmp.le.s32.totalorder %v43, 16
    %vm128 = vcmp.le.s32.totalorder %v44, 16
    %vm129 = vmand %vm125, %vm127
    %vm130 = vmand %vm126, %vm128
    %v131 = vsel %vm129, 1, 0
    %v132 = vsel %vm130, 1, 0
    %v133 = vcvt.s32.f32 %v131
    %v134 = vcvt.s32.f32 %v132
    %vm135 = vcmp.ge.s32.totalorder %v41, 2
    %vm136 = vcmp.le.s32.totalorder %v41, 129
    %vm137 = vmand %vm135, %vm136
    %v138 = vsel %vm137, 1, 0
    %v139 = vcvt.s32.f32 %v138
    %vm140 = vcmp.ge.s32.totalorder %v43, 2
    %vm141 = vcmp.ge.s32.totalorder %v44, 2
    %vm142 = vcmp.le.s32.totalorder %v43, 17
    %vm143 = vcmp.le.s32.totalorder %v44, 17
    %vm144 = vmand %vm140, %vm142
    %vm145 = vmand %vm141, %vm143
    %v146 = vsel %vm144, 1, 0
    %v147 = vsel %vm145, 1, 0
    %v148 = vcvt.s32.f32 %v146
    %v149 = vcvt.s32.f32 %v147
    %vm150 = vcmp.ge.s32.totalorder %v41, 3
    %vm151 = vcmp.le.s32.totalorder %v41, 130
    %vm152 = vmand %vm150, %vm151
    %v153 = vsel %vm152, 1, 0
    %v154 = vcvt.s32.f32 %v153
    %vm155 = vcmp.ge.s32.totalorder %v43, 3
    %vm156 = vcmp.ge.s32.totalorder %v44, 3
    %vm157 = vcmp.le.s32.totalorder %v43, 18
    %vm158 = vcmp.le.s32.totalorder %v44, 18
    %vm159 = vmand %vm155, %vm157
    %vm160 = vmand %vm156, %vm158
    %v161 = vsel %vm159, 1, 0
    %v162 = vsel %vm160, 1, 0
    %v163 = vcvt.s32.f32 %v161
    %v164 = vcvt.s32.f32 %v162
    %vm165 = vcmp.ge.s32.totalorder %v41, 4
    %vm166 = vcmp.le.s32.totalorder %v41, 131
    %vm167 = vmand %vm165, %vm166
    %v168 = vsel %vm167, 1, 0
    %v169 = vcvt.s32.f32 %v168
    %vm170 = vcmp.ge.s32.totalorder %v43, 4
    %vm171 = vcmp.ge.s32.totalorder %v44, 4
    %vm172 = vcmp.le.s32.totalorder %v43, 19
    %vm173 = vcmp.le.s32.totalorder %v44, 19
    %vm174 = vmand %vm170, %vm172
    %vm175 = vmand %vm171, %vm173
    %v176 = vsel %vm174, 1, 0
    %v177 = vsel %vm175, 1, 0
    %v178 = vcvt.s32.f32 %v176
    %v179 = vcvt.s32.f32 %v177
    %vm180 = vcmp.ge.s32.totalorder %v41, 5
    %vm181 = vcmp.le.s32.totalorder %v41, 132
    %vm182 = vmand %vm180, %vm181
    %v183 = vsel %vm182, 1, 0
    %v184 = vcvt.s32.f32 %v183
    %vm185 = vcmp.ge.s32.totalorder %v43, 5
    %vm186 = vcmp.ge.s32.totalorder %v44, 5
    %vm187 = vcmp.le.s32.totalorder %v43, 20
    %vm188 = vcmp.le.s32.totalorder %v44, 20
    %vm189 = vmand %vm185, %vm187
    %vm190 = vmand %vm186, %vm188
    %v191 = vsel %vm189, 1, 0
    %v192 = vsel %vm190, 1, 0
    %v193 = vcvt.s32.f32 %v191
    %v194 = vcvt.s32.f32 %v192
    %v195 = vld [vmem:[#allocation2] sm:$0xff]
    %v196 = vld [vmem:[#allocation2 + $0x8] sm:$0xff]
    %v197 = vld [vmem:[#allocation2 + $0x10] sm:$0xff]
    %v198 = vld [vmem:[#allocation2 + $0x18] sm:$0xff]
    %v199 = vld [vmem:[#allocation2 + $0x20] sm:$0xff]
    %v200 = vld [vmem:[#allocation2 + $0x28] sm:$0xff]
    %v201 = vld [vmem:[#allocation2 + $0x30] sm:$0xff]
    %v202 = vld [vmem:[#allocation2 + $0x38] sm:$0xff]
    %v203 = vld [vmem:[#allocation5] sm:$0xff]
    %v204 = vld [vmem:[#allocation5 + $0x8] sm:$0xff]
    %205 = vrot.lane.b32.xlu0 %v195, 123
    %v206 = vpop.permute.xlu0 %205
    %207 = vrot.lane.b32.xlu0 %v196, 123
    %v208 = vpop.permute.xlu0 %207
    %209 = vrot.lane.b32.xlu0 %v197, 123
    %v210 = vpop.permute.xlu0 %209
    %211 = vrot.lane.b32.xlu0 %v198, 123
    %v212 = vpop.permute.xlu0 %211
    %213 = vrot.lane.b32.xlu0 %v199, 123
    %v214 = vpop.permute.xlu0 %213
    %215 = vrot.lane.b32.xlu0 %v200, 123
    %v216 = vpop.permute.xlu0 %215
    %217 = vrot.lane.b32.xlu0 %v201, 123
    %v218 = vpop.permute.xlu0 %217
    %219 = vrot.lane.b32.xlu0 %v202, 123
    %v220 = vpop.permute.xlu0 %219
    %v221 = vmul.f32 %v206, %v49
    %v222 = vmul.f32 %v208, %v49
    %v223 = vmul.f32 %v210, %v49
    %v224 = vmul.f32 %v212, %v49
    %v225 = vmul.f32 %v214, %v49
    %v226 = vmul.f32 %v216, %v49
    %v227 = vmul.f32 %v218, %v49
    %v228 = vmul.f32 %v220, %v49
    %v229 = vadd.f32 %v195, %v221
    %v230 = vadd.f32 %v196, %v222
    %v231 = vadd.f32 %v197, %v223
    %v232 = vadd.f32 %v198, %v224
    %v233 = vadd.f32 %v199, %v225
    %v234 = vadd.f32 %v200, %v226
    %v235 = vadd.f32 %v201, %v227
    %v236 = vadd.f32 %v202, %v228
    %237 = vrot.lane.b32.xlu0 %v195, 124
    %v238 = vpop.permute.xlu0 %237
    %239 = vrot.lane.b32.xlu0 %v196, 124
    %v240 = vpop.permute.xlu0 %239
    %241 = vrot.lane.b32.xlu0 %v197, 124
    %v242 = vpop.permute.xlu0 %241
    %243 = vrot.lane.b32.xlu0 %v198, 124
    %v244 = vpop.permute.xlu0 %243
    %245 = vrot.lane.b32.xlu0 %v199, 124
    %v246 = vpop.permute.xlu0 %245
    %247 = vrot.lane.b32.xlu0 %v200, 124
    %v248 = vpop.permute.xlu0 %247
    %249 = vrot.lane.b32.xlu0 %v201, 124
    %v250 = vpop.permute.xlu0 %249
    %251 = vrot.lane.b32.xlu0 %v202, 124
    %v252 = vpop.permute.xlu0 %251
    %v253 = vmul.f32 %v238, %v64
    %v254 = vmul.f32 %v240, %v64
    %v255 = vmul.f32 %v242, %v64
    %v256 = vmul.f32 %v244, %v64
    %v257 = vmul.f32 %v246, %v64
    %v258 = vmul.f32 %v248, %v64
    %v259 = vmul.f32 %v250, %v64
    %v260 = vmul.f32 %v252, %v64
    %v261 = vadd.f32 %v229, %v253
    %v262 = vadd.f32 %v230, %v254
    %v263 = vadd.f32 %v231, %v255
    %v264 = vadd.f32 %v232, %v256
    %v265 = vadd.f32 %v233, %v257
    %v266 = vadd.f32 %v234, %v258
    %v267 = vadd.f32 %v235, %v259
    %v268 = vadd.f32 %v236, %v260
    %269 = vrot.lane.b32.xlu0 %v195, 125
    %v270 = vpop.permute.xlu0 %269
    %271 = vrot.lane.b32.xlu0 %v196, 125
    %v272 = vpop.permute.xlu0 %271
    %273 = vrot.lane.b32.xlu0 %v197, 125
    %v274 = vpop.permute.xlu0 %273
    %275 = vrot.lane.b32.xlu0 %v198, 125
    %v276 = vpop.permute.xlu0 %275
    %277 = vrot.lane.b32.xlu0 %v199, 125
    %v278 = vpop.permute.xlu0 %277
    %279 = vrot.lane.b32.xlu0 %v200, 125
    %v280 = vpop.permute.xlu0 %279
    %281 = vrot.lane.b32.xlu0 %v201, 125
    %v282 = vpop.permute.xlu0 %281
    %283 = vrot.lane.b32.xlu0 %v202, 125
    %v284 = vpop.permute.xlu0 %283
    %v285 = vmul.f32 %v270, %v79
    %v286 = vmul.f32 %v272, %v79
    %v287 = vmul.f32 %v274, %v79
    %v288 = vmul.f32 %v276, %v79
    %v289 = vmul.f32 %v278, %v79
    %v290 = vmul.f32 %v280, %v79
    %v291 = vmul.f32 %v282, %v79
    %v292 = vmul.f32 %v284, %v79
    %v293 = vadd.f32 %v261, %v285
    %v294 = vadd.f32 %v262, %v286
    %v295 = vadd.f32 %v263, %v287
    %v296 = vadd.f32 %v264, %v288
    %v297 = vadd.f32 %v265, %v289
    %v298 = vadd.f32 %v266, %v290
    %v299 = vadd.f32 %v267, %v291
    %v300 = vadd.f32 %v268, %v292
    %301 = vrot.lane.b32.xlu0 %v195, 126
    %v302 = vpop.permute.xlu0 %301
    %303 = vrot.lane.b32.xlu0 %v196, 126
    %v304 = vpop.permute.xlu0 %303
    %305 = vrot.lane.b32.xlu0 %v197, 126
    %v306 = vpop.permute.xlu0 %305
    %307 = vrot.lane.b32.xlu0 %v198, 126
    %v308 = vpop.permute.xlu0 %307
    %309 = vrot.lane.b32.xlu0 %v199, 126
    %v310 = vpop.permute.xlu0 %309
    %311 = vrot.lane.b32.xlu0 %v200, 126
    %v312 = vpop.permute.xlu0 %311
    %313 = vrot.lane.b32.xlu0 %v201, 126
    %v314 = vpop.permute.xlu0 %313
    %315 = vrot.lane.b32.xlu0 %v202, 126
    %v316 = vpop.permute.xlu0 %315
    %v317 = vmul.f32 %v302, %v94
    %v318 = vmul.f32 %v304, %v94
    %v319 = vmul.f32 %v306, %v94
    %v320 = vmul.f32 %v308, %v94
    %v321 = vmul.f32 %v310, %v94
    %v322 = vmul.f32 %v312, %v94
    %v323 = vmul.f32 %v314, %v94
    %v324 = vmul.f32 %v316, %v94
    %v325 = vadd.f32 %v293, %v317
    %v326 = vadd.f32 %v294, %v318
    %v327 = vadd.f32 %v295, %v319
    %v328 = vadd.f32 %v296, %v320
    %v329 = vadd.f32 %v297, %v321
    %v330 = vadd.f32 %v298, %v322
    %v331 = vadd.f32 %v299, %v323
    %v332 = vadd.f32 %v300, %v324
    %333 = vrot.lane.b32.xlu0 %v195, 127
    %v334 = vpop.permute.xlu0 %333
    %335 = vrot.lane.b32.xlu0 %v196, 127
    %v336 = vpop.permute.xlu0 %335
    %337 = vrot.lane.b32.xlu0 %v197, 127
    %v338 = vpop.permute.xlu0 %337
    %339 = vrot.lane.b32.xlu0 %v198, 127
    %v340 = vpop.permute.xlu0 %339
    %341 = vrot.lane.b32.xlu0 %v199, 127
    %v342 = vpop.permute.xlu0 %341
    %343 = vrot.lane.b32.xlu0 %v200, 127
    %v344 = vpop.permute.xlu0 %343
    %345 = vrot.lane.b32.xlu0 %v201, 127
    %v346 = vpop.permute.xlu0 %345
    %347 = vrot.lane.b32.xlu0 %v202, 127
    %v348 = vpop.permute.xlu0 %347
    %v349 = vmul.f32 %v334, %v109
    %v350 = vmul.f32 %v336, %v109
    %v351 = vmul.f32 %v338, %v109
    %v352 = vmul.f32 %v340, %v109
    %v353 = vmul.f32 %v342, %v109
    %v354 = vmul.f32 %v344, %v109
    %v355 = vmul.f32 %v346, %v109
    %v356 = vmul.f32 %v348, %v109
    %v357 = vadd.f32 %v325, %v349
    %v358 = vadd.f32 %v326, %v350
    %v359 = vadd.f32 %v327, %v351
    %v360 = vadd.f32 %v328, %v352
    %v361 = vadd.f32 %v329, %v353
    %v362 = vadd.f32 %v330, %v354
    %v363 = vadd.f32 %v331, %v355
    %v364 = vadd.f32 %v332, %v356
    %365 = vrot.lane.b32.xlu0 %v195, 1
    %v366 = vpop.permute.xlu0 %365
    %367 = vrot.lane.b32.xlu0 %v196, 1
    %v368 = vpop.permute.xlu0 %367
    %369 = vrot.lane.b32.xlu0 %v197, 1
    %v370 = vpop.permute.xlu0 %369
    %371 = vrot.lane.b32.xlu0 %v198, 1
    %v372 = vpop.permute.xlu0 %371
    %373 = vrot.lane.b32.xlu0 %v199, 1
    %v374 = vpop.permute.xlu0 %373
    %375 = vrot.lane.b32.xlu0 %v200, 1
    %v376 = vpop.permute.xlu0 %375
    %377 = vrot.lane.b32.xlu0 %v201, 1
    %v378 = vpop.permute.xlu0 %377
    %379 = vrot.lane.b32.xlu0 %v202, 1
    %v380 = vpop.permute.xlu0 %379
    %v381 = vmul.f32 %v366, %v124
    %v382 = vmul.f32 %v368, %v124
    %v383 = vmul.f32 %v370, %v124
    %v384 = vmul.f32 %v372, %v124
    %v385 = vmul.f32 %v374, %v124
    %v386 = vmul.f32 %v376, %v124
    %v387 = vmul.f32 %v378, %v124
    %v388 = vmul.f32 %v380, %v124
    %v389 = vadd.f32 %v357, %v381
    %v390 = vadd.f32 %v358, %v382
    %v391 = vadd.f32 %v359, %v383
    %v392 = vadd.f32 %v360, %v384
    %v393 = vadd.f32 %v361, %v385
    %v394 = vadd.f32 %v362, %v386
    %v395 = vadd.f32 %v363, %v387
    %v396 = vadd.f32 %v364, %v388
    %397 = vrot.lane.b32.xlu0 %v195, 2
    %v398 = vpop.permute.xlu0 %397
    %399 = vrot.lane.b32.xlu0 %v196, 2
    %v400 = vpop.permute.xlu0 %399
    %401 = vrot.lane.b32.xlu0 %v197, 2
    %v402 = vpop.permute.xlu0 %401
    %403 = vrot.lane.b32.xlu0 %v198, 2
    %v404 = vpop.permute.xlu0 %403
    %405 = vrot.lane.b32.xlu0 %v199, 2
    %v406 = vpop.permute.xlu0 %405
    %407 = vrot.lane.b32.xlu0 %v200, 2
    %v408 = vpop.permute.xlu0 %407
    %409 = vrot.lane.b32.xlu0 %v201, 2
    %v410 = vpop.permute.xlu0 %409
    %411 = vrot.lane.b32.xlu0 %v202, 2
    %v412 = vpop.permute.xlu0 %411
    %v413 = vmul.f32 %v398, %v139
    %v414 = vmul.f32 %v400, %v139
    %v415 = vmul.f32 %v402, %v139
    %v416 = vmul.f32 %v404, %v139
    %v417 = vmul.f32 %v406, %v139
    %v418 = vmul.f32 %v408, %v139
    %v419 = vmul.f32 %v410, %v139
    %v420 = vmul.f32 %v412, %v139
    %v421 = vadd.f32 %v389, %v413
    %v422 = vadd.f32 %v390, %v414
    %v423 = vadd.f32 %v391, %v415
    %v424 = vadd.f32 %v392, %v416
    %v425 = vadd.f32 %v393, %v417
    %v426 = vadd.f32 %v394, %v418
    %v427 = vadd.f32 %v395, %v419
    %v428 = vadd.f32 %v396, %v420
    %429 = vrot.lane.b32.xlu0 %v195, 3
    %v430 = vpop.permute.xlu0 %429
    %431 = vrot.lane.b32.xlu0 %v196, 3
    %v432 = vpop.permute.xlu0 %431
    %433 = vrot.lane.b32.xlu0 %v197, 3
    %v434 = vpop.permute.xlu0 %433
    %435 = vrot.lane.b32.xlu0 %v198, 3
    %v436 = vpop.permute.xlu0 %435
    %437 = vrot.lane.b32.xlu0 %v199, 3
    %v438 = vpop.permute.xlu0 %437
    %439 = vrot.lane.b32.xlu0 %v200, 3
    %v440 = vpop.permute.xlu0 %439
    %441 = vrot.lane.b32.xlu0 %v201, 3
    %v442 = vpop.permute.xlu0 %441
    %443 = vrot.lane.b32.xlu0 %v202, 3
    %v444 = vpop.permute.xlu0 %443
    %v445 = vmul.f32 %v430, %v154
    %v446 = vmul.f32 %v432, %v154
    %v447 = vmul.f32 %v434, %v154
    %v448 = vmul.f32 %v436, %v154
    %v449 = vmul.f32 %v438, %v154
    %v450 = vmul.f32 %v440, %v154
    %v451 = vmul.f32 %v442, %v154
    %v452 = vmul.f32 %v444, %v154
    %v453 = vadd.f32 %v421, %v445
    %v454 = vadd.f32 %v422, %v446
    %v455 = vadd.f32 %v423, %v447
    %v456 = vadd.f32 %v424, %v448
    %v457 = vadd.f32 %v425, %v449
    %v458 = vadd.f32 %v426, %v450
    %v459 = vadd.f32 %v427, %v451
    %v460 = vadd.f32 %v428, %v452
    %461 = vrot.lane.b32.xlu0 %v195, 4
    %v462 = vpop.permute.xlu0 %461
    %463 = vrot.lane.b32.xlu0 %v196, 4
    %v464 = vpop.permute.xlu0 %463
    %465 = vrot.lane.b32.xlu0 %v197, 4
    %v466 = vpop.permute.xlu0 %465
    %467 = vrot.lane.b32.xlu0 %v198, 4
    %v468 = vpop.permute.xlu0 %467
    %469 = vrot.lane.b32.xlu0 %v199, 4
    %v470 = vpop.permute.xlu0 %469
    %471 = vrot.lane.b32.xlu0 %v200, 4
    %v472 = vpop.permute.xlu0 %471
    %473 = vrot.lane.b32.xlu0 %v201, 4
    %v474 = vpop.permute.xlu0 %473
    %475 = vrot.lane.b32.xlu0 %v202, 4
    %v476 = vpop.permute.xlu0 %475
    %v477 = vmul.f32 %v462, %v169
    %v478 = vmul.f32 %v464, %v169
    %v479 = vmul.f32 %v466, %v169
    %v480 = vmul.f32 %v468, %v169
    %v481 = vmul.f32 %v470, %v169
    %v482 = vmul.f32 %v472, %v169
    %v483 = vmul.f32 %v474, %v169
    %v484 = vmul.f32 %v476, %v169
    %v485 = vadd.f32 %v453, %v477
    %v486 = vadd.f32 %v454, %v478
    %v487 = vadd.f32 %v455, %v479
    %v488 = vadd.f32 %v456, %v480
    %v489 = vadd.f32 %v457, %v481
    %v490 = vadd.f32 %v458, %v482
    %v491 = vadd.f32 %v459, %v483
    %v492 = vadd.f32 %v460, %v484
    %493 = vrot.lane.b32.xlu0 %v195, 5
    %v494 = vpop.permute.xlu0 %493
    %495 = vrot.lane.b32.xlu0 %v196, 5
    %v496 = vpop.permute.xlu0 %495
    %497 = vrot.lane.b32.xlu0 %v197, 5
    %v498 = vpop.permute.xlu0 %497
    %499 = vrot.lane.b32.xlu0 %v198, 5
    %v500 = vpop.permute.xlu0 %499
    %501 = vrot.lane.b32.xlu0 %v199, 5
    %v502 = vpop.permute.xlu0 %501
    %503 = vrot.lane.b32.xlu0 %v200, 5
    %v504 = vpop.permute.xlu0 %503
    %505 = vrot.lane.b32.xlu0 %v201, 5
    %v506 = vpop.permute.xlu0 %505
    %507 = vrot.lane.b32.xlu0 %v202, 5
    %v508 = vpop.permute.xlu0 %507
    %v509 = vmul.f32 %v494, %v184
    %v510 = vmul.f32 %v496, %v184
    %v511 = vmul.f32 %v498, %v184
    %v512 = vmul.f32 %v500, %v184
    %v513 = vmul.f32 %v502, %v184
    %v514 = vmul.f32 %v504, %v184
    %v515 = vmul.f32 %v506, %v184
    %v516 = vmul.f32 %v508, %v184
    %v517 = vadd.f32 %v485, %v509
    %v518 = vadd.f32 %v486, %v510
    %v519 = vadd.f32 %v487, %v511
    %v520 = vadd.f32 %v488, %v512
    %v521 = vadd.f32 %v489, %v513
    %v522 = vadd.f32 %v490, %v514
    %v523 = vadd.f32 %v491, %v515
    %v524 = vadd.f32 %v492, %v516
    %v525 = vrot.slane %v517, 5
    %v526 = vrot.slane %v518, 5
    %v527 = vrot.slane %v519, 5
    %v528 = vrot.slane %v520, 5
    %v529 = vrot.slane %v521, 5
    %v530 = vrot.slane %v522, 5
    %v531 = vrot.slane %v523, 5
    %v532 = vrot.slane %v524, 5
    %vm533 = vcmp.lt.s32.totalorder %v43, 3
    %v534 = vsel %vm533, %v531, %v532
    %v535 = vsel %vm533, %v530, %v531
    %v536 = vsel %vm533, %v529, %v530
    %v537 = vsel %vm533, %v528, %v529
    %v538 = vsel %vm533, %v527, %v528
    %v539 = vsel %vm533, %v526, %v527
    %v540 = vsel %vm533, %v525, %v526
    %v541 = vsel %vm533, %v532, %v525
    %543 = vset.pattern.permute.xlu0 0
    %544 = vperm.xlu0 %543, %v58
    %v545 = vpop.permute.xlu0 %544
    %548 = vset.pattern.permute.xlu0 0
    %549 = vperm.xlu0 %548, %v59
    %v550 = vpop.permute.xlu0 %549
    %v552 = vmul.f32 %v540, %v545
    %v553 = vmul.f32 %v539, %v550
    %v554 = vmul.f32 %v538, %v545
    %v555 = vmul.f32 %v537, %v550
    %v556 = vmul.f32 %v536, %v545
    %v557 = vmul.f32 %v535, %v550
    %v558 = vmul.f32 %v534, %v545
    %v559 = vmul.f32 %v541, %v550
    %v560 = vadd.f32 %v517, %v552
    %v561 = vadd.f32 %v518, %v553
    %v562 = vadd.f32 %v519, %v554
    %v563 = vadd.f32 %v520, %v555
    %v564 = vadd.f32 %v521, %v556
    %v565 = vadd.f32 %v522, %v557
    %v566 = vadd.f32 %v523, %v558
    %v567 = vadd.f32 %v524, %v559
    %v568 = vrot.slane %v517, 4
    %v569 = vrot.slane %v518, 4
    %v570 = vrot.slane %v519, 4
    %v571 = vrot.slane %v520, 4
    %v572 = vrot.slane %v521, 4
    %v573 = vrot.slane %v522, 4
    %v574 = vrot.slane %v523, 4
    %v575 = vrot.slane %v524, 4
    %vm576 = vcmp.lt.s32.totalorder %v43, 4
    %v577 = vsel %vm576, %v574, %v575
    %v578 = vsel %vm576, %v573, %v574
    %v579 = vsel %vm576, %v572, %v573
    %v580 = vsel %vm576, %v571, %v572
    %v581 = vsel %vm576, %v570, %v571
    %v582 = vsel %vm576, %v569, %v570
    %v583 = vsel %vm576, %v568, %v569
    %v584 = vsel %vm576, %v575, %v568
    %586 = vset.pattern.permute.xlu0 0
    %587 = vperm.xlu0 %586, %v73
    %v588 = vpop.permute.xlu0 %587
    %591 = vset.pattern.permute.xlu0 0
    %592 = vperm.xlu0 %591, %v74
    %v593 = vpop.permute.xlu0 %592
    %v595 = vmul.f32 %v583, %v588
    %v596 = vmul.f32 %v582, %v593
    %v597 = vmul.f32 %v581, %v588
    %v598 = vmul.f32 %v580, %v593
    %v599 = vmul.f32 %v579, %v588
    %v600 = vmul.f32 %v578, %v593
    %v601 = vmul.f32 %v577, %v588
    %v602 = vmul.f32 %v584, %v593
    %v603 = vadd.f32 %v560, %v595
    %v604 = vadd.f32 %v561, %v596
    %v605 = vadd.f32 %v562, %v597
    %v606 = vadd.f32 %v563, %v598
    %v607 = vadd.f32 %v564, %v599
    %v608 = vadd.f32 %v565, %v600
    %v609 = vadd.f32 %v566, %v601
    %v610 = vadd.f32 %v567, %v602
    %v611 = vrot.slane %v517, 3
    %v612 = vrot.slane %v518, 3
    %v613 = vrot.slane %v519, 3
    %v614 = vrot.slane %v520, 3
    %v615 = vrot.slane %v521, 3
    %v616 = vrot.slane %v522, 3
    %v617 = vrot.slane %v523, 3
    %v618 = vrot.slane %v524, 3
    %vm619 = vcmp.lt.s32.totalorder %v43, 5
    %v620 = vsel %vm619, %v617, %v618
    %v621 = vsel %vm619, %v616, %v617
    %v622 = vsel %vm619, %v615, %v616
    %v623 = vsel %vm619, %v614, %v615
    %v624 = vsel %vm619, %v613, %v614
    %v625 = vsel %vm619, %v612, %v613
    %v626 = vsel %vm619, %v611, %v612
    %v627 = vsel %vm619, %v618, %v611
    %629 = vset.pattern.permute.xlu0 0
    %630 = vperm.xlu0 %629, %v88
    %v631 = vpop.permute.xlu0 %630
    %634 = vset.pattern.permute.xlu0 0
    %635 = vperm.xlu0 %634, %v89
    %v636 = vpop.permute.xlu0 %635
    %v638 = vmul.f32 %v626, %v631
    %v639 = vmul.f32 %v625, %v636
    %v640 = vmul.f32 %v624, %v631
    %v641 = vmul.f32 %v623, %v636
    %v642 = vmul.f32 %v622, %v631
    %v643 = vmul.f32 %v621, %v636
    %v644 = vmul.f32 %v620, %v631
    %v645 = vmul.f32 %v627, %v636
    %v646 = vadd.f32 %v603, %v638
    %v647 = vadd.f32 %v604, %v639
    %v648 = vadd.f32 %v605, %v640
    %v649 = vadd.f32 %v606, %v641
    %v650 = vadd.f32 %v607, %v642
    %v651 = vadd.f32 %v608, %v643
    %v652 = vadd.f32 %v609, %v644
    %v653 = vadd.f32 %v610, %v645
    %v654 = vrot.slane %v517, 2
    %v655 = vrot.slane %v518, 2
    %v656 = vrot.slane %v519, 2
    %v657 = vrot.slane %v520, 2
    %v658 = vrot.slane %v521, 2
    %v659 = vrot.slane %v522, 2
    %v660 = vrot.slane %v523, 2
    %v661 = vrot.slane %v524, 2
    %vm662 = vcmp.lt.s32.totalorder %v43, 6
    %v663 = vsel %vm662, %v660, %v661
    %v664 = vsel %vm662, %v659, %v660
    %v665 = vsel %vm662, %v658, %v659
    %v666 = vsel %vm662, %v657, %v658
    %v667 = vsel %vm662, %v656, %v657
    %v668 = vsel %vm662, %v655, %v656
    %v669 = vsel %vm662, %v654, %v655
    %v670 = vsel %vm662, %v661, %v654
    %672 = vset.pattern.permute.xlu0 0
    %673 = vperm.xlu0 %672, %v103
    %v674 = vpop.permute.xlu0 %673
    %677 = vset.pattern.permute.xlu0 0
    %678 = vperm.xlu0 %677, %v104
    %v679 = vpop.permute.xlu0 %678
    %v681 = vmul.f32 %v669, %v674
    %v682 = vmul.f32 %v668, %v679
    %v683 = vmul.f32 %v667, %v674
    %v684 = vmul.f32 %v666, %v679
    %v685 = vmul.f32 %v665, %v674
    %v686 = vmul.f32 %v664, %v679
    %v687 = vmul.f32 %v663, %v674
    %v688 = vmul.f32 %v670, %v679
    %v689 = vadd.f32 %v646, %v681
    %v690 = vadd.f32 %v647, %v682
    %v691 = vadd.f32 %v648, %v683
    %v692 = vadd.f32 %v649, %v684
    %v693 = vadd.f32 %v650, %v685
    %v694 = vadd.f32 %v651, %v686
    %v695 = vadd.f32 %v652, %v687
    %v696 = vadd.f32 %v653, %v688
    %v697 = vrot.slane %v517, 1
    %v698 = vrot.slane %v518, 1
    %v699 = vrot.slane %v519, 1
    %v700 = vrot.slane %v520, 1
    %v701 = vrot.slane %v521, 1
    %v702 = vrot.slane %v522, 1
    %v703 = vrot.slane %v523, 1
    %v704 = vrot.slane %v524, 1
    %vm705 = vcmp.lt.s32.totalorder %v43, 7
    %v706 = vsel %vm705, %v703, %v704
    %v707 = vsel %vm705, %v702, %v703
    %v708 = vsel %vm705, %v701, %v702
    %v709 = vsel %vm705, %v700, %v701
    %v710 = vsel %vm705, %v699, %v700
    %v711 = vsel %vm705, %v698, %v699
    %v712 = vsel %vm705, %v697, %v698
    %v713 = vsel %vm705, %v704, %v697
    %715 = vset.pattern.permute.xlu0 0
    %716 = vperm.xlu0 %715, %v118
    %v717 = vpop.permute.xlu0 %716
    %720 = vset.pattern.permute.xlu0 0
    %721 = vperm.xlu0 %720, %v119
    %v722 = vpop.permute.xlu0 %721
    %v724 = vmul.f32 %v712, %v717
    %v725 = vmul.f32 %v711, %v722
    %v726 = vmul.f32 %v710, %v717
    %v727 = vmul.f32 %v709, %v722
    %v728 = vmul.f32 %v708, %v717
    %v729 = vmul.f32 %v707, %v722
    %v730 = vmul.f32 %v706, %v717
    %v731 = vmul.f32 %v713, %v722
    %v732 = vadd.f32 %v689, %v724
    %v733 = vadd.f32 %v690, %v725
    %v734 = vadd.f32 %v691, %v726
    %v735 = vadd.f32 %v692, %v727
    %v736 = vadd.f32 %v693, %v728
    %v737 = vadd.f32 %v694, %v729
    %v738 = vadd.f32 %v695, %v730
    %v739 = vadd.f32 %v696, %v731
    %v740 = vrot.slane %v517, 7
    %v741 = vrot.slane %v518, 7
    %v742 = vrot.slane %v519, 7
    %v743 = vrot.slane %v520, 7
    %v744 = vrot.slane %v521, 7
    %v745 = vrot.slane %v522, 7
    %v746 = vrot.slane %v523, 7
    %v747 = vrot.slane %v524, 7
    %vm748 = vcmp.lt.s32.totalorder %v43, 1
    %v749 = vsel %vm748, %v746, %v747
    %v750 = vsel %vm748, %v745, %v746
    %v751 = vsel %vm748, %v744, %v745
    %v752 = vsel %vm748, %v743, %v744
    %v753 = vsel %vm748, %v742, %v743
    %v754 = vsel %vm748, %v741, %v742
    %v755 = vsel %vm748, %v740, %v741
    %v756 = vsel %vm748, %v747, %v740
    %758 = vset.pattern.permute.xlu0 0
    %759 = vperm.xlu0 %758, %v133
    %v760 = vpop.permute.xlu0 %759
    %763 = vset.pattern.permute.xlu0 0
    %764 = vperm.xlu0 %763, %v134
    %v765 = vpop.permute.xlu0 %764
    %v767 = vmul.f32 %v756, %v760
    %v768 = vmul.f32 %v755, %v765
    %v769 = vmul.f32 %v754, %v760
    %v770 = vmul.f32 %v753, %v765
    %v771 = vmul.f32 %v752, %v760
    %v772 = vmul.f32 %v751, %v765
    %v773 = vmul.f32 %v750, %v760
    %v774 = vmul.f32 %v749, %v765
    %v775 = vadd.f32 %v732, %v767
    %v776 = vadd.f32 %v733, %v768
    %v777 = vadd.f32 %v734, %v769
    %v778 = vadd.f32 %v735, %v770
    %v779 = vadd.f32 %v736, %v771
    %v780 = vadd.f32 %v737, %v772
    %v781 = vadd.f32 %v738, %v773
    %v782 = vadd.f32 %v739, %v774
    %v783 = vrot.slane %v517, 6
    %v784 = vrot.slane %v518, 6
    %v785 = vrot.slane %v519, 6
    %v786 = vrot.slane %v520, 6
    %v787 = vrot.slane %v521, 6
    %v788 = vrot.slane %v522, 6
    %v789 = vrot.slane %v523, 6
    %v790 = vrot.slane %v524, 6
    %vm791 = vcmp.lt.s32.totalorder %v43, 2
    %v792 = vsel %vm791, %v789, %v790
    %v793 = vsel %vm791, %v788, %v789
    %v794 = vsel %vm791, %v787, %v788
    %v795 = vsel %vm791, %v786, %v787
    %v796 = vsel %vm791, %v785, %v786
    %v797 = vsel %vm791, %v784, %v785
    %v798 = vsel %vm791, %v783, %v784
    %v799 = vsel %vm791, %v790, %v783
    %801 = vset.pattern.permute.xlu0 0
    %802 = vperm.xlu0 %801, %v148
    %v803 = vpop.permute.xlu0 %802
    %806 = vset.pattern.permute.xlu0 0
    %807 = vperm.xlu0 %806, %v149
    %v808 = vpop.permute.xlu0 %807
    %v810 = vmul.f32 %v799, %v803
    %v811 = vmul.f32 %v798, %v808
    %v812 = vmul.f32 %v797, %v803
    %v813 = vmul.f32 %v796, %v808
    %v814 = vmul.f32 %v795, %v803
    %v815 = vmul.f32 %v794, %v808
    %v816 = vmul.f32 %v793, %v803
    %v817 = vmul.f32 %v792, %v808
    %v818 = vadd.f32 %v775, %v810
    %v819 = vadd.f32 %v776, %v811
    %v820 = vadd.f32 %v777, %v812
    %v821 = vadd.f32 %v778, %v813
    %v822 = vadd.f32 %v779, %v814
    %v823 = vadd.f32 %v780, %v815
    %v824 = vadd.f32 %v781, %v816
    %v825 = vadd.f32 %v782, %v817
    %827 = vset.pattern.permute.xlu0 0
    %828 = vperm.xlu0 %827, %v163
    %v829 = vpop.permute.xlu0 %828
    %832 = vset.pattern.permute.xlu0 0
    %833 = vperm.xlu0 %832, %v164
    %v834 = vpop.permute.xlu0 %833
    %v836 = vmul.f32 %v541, %v829
    %v837 = vmul.f32 %v540, %v834
    %v838 = vmul.f32 %v539, %v829
    %v839 = vmul.f32 %v538, %v834
    %v840 = vmul.f32 %v537, %v829
    %v841 = vmul.f32 %v536, %v834
    %v842 = vmul.f32 %v535, %v829
    %v843 = vmul.f32 %v534, %v834
    %v844 = vadd.f32 %v818, %v836
    %v845 = vadd.f32 %v819, %v837
    %v846 = vadd.f32 %v820, %v838
    %v847 = vadd.f32 %v821, %v839
    %v848 = vadd.f32 %v822, %v840
    %v849 = vadd.f32 %v823, %v841
    %v850 = vadd.f32 %v824, %v842
    %v851 = vadd.f32 %v825, %v843
    %853 = vset.pattern.permute.xlu0 0
    %854 = vperm.xlu0 %853, %v178
    %v855 = vpop.permute.xlu0 %854
    %858 = vset.pattern.permute.xlu0 0
    %859 = vperm.xlu0 %858, %v179
    %v860 = vpop.permute.xlu0 %859
    %v862 = vmul.f32 %v584, %v855
    %v863 = vmul.f32 %v583, %v860
    %v864 = vmul.f32 %v582, %v855
    %v865 = vmul.f32 %v581, %v860
    %v866 = vmul.f32 %v580, %v855
    %v867 = vmul.f32 %v579, %v860
    %v868 = vmul.f32 %v578, %v855
    %v869 = vmul.f32 %v577, %v860
    %v870 = vadd.f32 %v844, %v862
    %v871 = vadd.f32 %v845, %v863
    %v872 = vadd.f32 %v846, %v864
    %v873 = vadd.f32 %v847, %v865
    %v874 = vadd.f32 %v848, %v866
    %v875 = vadd.f32 %v849, %v867
    %v876 = vadd.f32 %v850, %v868
    %v877 = vadd.f32 %v851, %v869
    %879 = vset.pattern.permute.xlu0 0
    %880 = vperm.xlu0 %879, %v193
    %v881 = vpop.permute.xlu0 %880
    %884 = vset.pattern.permute.xlu0 0
    %885 = vperm.xlu0 %884, %v194
    %v886 = vpop.permute.xlu0 %885
    %v888 = vmul.f32 %v627, %v881
    %v889 = vmul.f32 %v626, %v886
    %v890 = vmul.f32 %v625, %v881
    %v891 = vmul.f32 %v624, %v886
    %v892 = vmul.f32 %v623, %v881
    %v893 = vmul.f32 %v622, %v886
    %v894 = vmul.f32 %v621, %v881
    %v895 = vmul.f32 %v620, %v886
    %v896 = vadd.f32 %v870, %v888
    %v897 = vadd.f32 %v871, %v889
    %v898 = vadd.f32 %v872, %v890
    %v899 = vadd.f32 %v873, %v891
    %v900 = vadd.f32 %v874, %v892
    %v901 = vadd.f32 %v875, %v893
    %v902 = vadd.f32 %v876, %v894
    %v903 = vadd.f32 %v877, %v895
    %v904 = vmul.f32 %v896, 0.008264462
    %v905 = vmul.f32 %v897, 0.008264462
    %v906 = vmul.f32 %v898, 0.008264462
    %v907 = vmul.f32 %v899, 0.008264462
    %v908 = vmul.f32 %v900, 0.008264462
    %v909 = vmul.f32 %v901, 0.008264462
    %v910 = vmul.f32 %v902, 0.008264462
    %v911 = vmul.f32 %v903, 0.008264462
    %v912 = vsub.f32 %v195, %v904
    %v913 = vsub.f32 %v196, %v905
    %v914 = vsub.f32 %v197, %v906
    %v915 = vsub.f32 %v198, %v907
    %v916 = vsub.f32 %v199, %v908
    %v917 = vsub.f32 %v200, %v909
    %v918 = vsub.f32 %v201, %v910
    %v919 = vsub.f32 %v202, %v911
    %vm920 = vcmp.lt.s32.totalorder %v41, 16
    %v921 = vsel %vm920, 1, 0
    %v922 = vcvt.s32.f32 %v921
    %v923 = vmul.f32 %v912, %v922
    %v924 = vmul.f32 %v913, %v922
    %v925 = vmul.f32 %v914, %v922
    %v926 = vmul.f32 %v915, %v922
    %v927 = vmul.f32 %v916, %v922
    %v928 = vmul.f32 %v917, %v922
    %v929 = vmul.f32 %v918, %v922
    %v930 = vmul.f32 %v919, %v922
    %v931 = vmul.f32 %v923, %v923
    %v932 = vmul.f32 %v924, %v924
    %v933 = vmul.f32 %v925, %v925
    %v934 = vmul.f32 %v926, %v926
    %v935 = vmul.f32 %v927, %v927
    %v936 = vmul.f32 %v928, %v928
    %v937 = vmul.f32 %v929, %v929
    %v938 = vmul.f32 %v930, %v930
    %939 = vrot.lane.b32.xlu0 %v931, 123
    %v940 = vpop.permute.xlu0 %939
    %941 = vrot.lane.b32.xlu0 %v932, 123
    %v942 = vpop.permute.xlu0 %941
    %943 = vrot.lane.b32.xlu0 %v933, 123
    %v944 = vpop.permute.xlu0 %943
    %945 = vrot.lane.b32.xlu0 %v934, 123
    %v946 = vpop.permute.xlu0 %945
    %947 = vrot.lane.b32.xlu0 %v935, 123
    %v948 = vpop.permute.xlu0 %947
    %949 = vrot.lane.b32.xlu0 %v936, 123
    %v950 = vpop.permute.xlu0 %949
    %951 = vrot.lane.b32.xlu0 %v937, 123
    %v952 = vpop.permute.xlu0 %951
    %953 = vrot.lane.b32.xlu0 %v938, 123
    %v954 = vpop.permute.xlu0 %953
    %v955 = vmul.f32 %v940, %v49
    %v956 = vmul.f32 %v942, %v49
    %v957 = vmul.f32 %v944, %v49
    %v958 = vmul.f32 %v946, %v49
    %v959 = vmul.f32 %v948, %v49
    %v960 = vmul.f32 %v950, %v49
    %v961 = vmul.f32 %v952, %v49
    %v962 = vmul.f32 %v954, %v49
    %v963 = vadd.f32 %v931, %v955
    %v964 = vadd.f32 %v932, %v956
    %v965 = vadd.f32 %v933, %v957
    %v966 = vadd.f32 %v934, %v958
    %v967 = vadd.f32 %v935, %v959
    %v968 = vadd.f32 %v936, %v960
    %v969 = vadd.f32 %v937, %v961
    %v970 = vadd.f32 %v938, %v962
    %971 = vrot.lane.b32.xlu0 %v931, 124
    %v972 = vpop.permute.xlu0 %971
    %973 = vrot.lane.b32.xlu0 %v932, 124
    %v974 = vpop.permute.xlu0 %973
    %975 = vrot.lane.b32.xlu0 %v933, 124
    %v976 = vpop.permute.xlu0 %975
    %977 = vrot.lane.b32.xlu0 %v934, 124
    %v978 = vpop.permute.xlu0 %977
    %979 = vrot.lane.b32.xlu0 %v935, 124
    %v980 = vpop.permute.xlu0 %979
    %981 = vrot.lane.b32.xlu0 %v936, 124
    %v982 = vpop.permute.xlu0 %981
    %983 = vrot.lane.b32.xlu0 %v937, 124
    %v984 = vpop.permute.xlu0 %983
    %985 = vrot.lane.b32.xlu0 %v938, 124
    %v986 = vpop.permute.xlu0 %985
    %v987 = vmul.f32 %v972, %v64
    %v988 = vmul.f32 %v974, %v64
    %v989 = vmul.f32 %v976, %v64
    %v990 = vmul.f32 %v978, %v64
    %v991 = vmul.f32 %v980, %v64
    %v992 = vmul.f32 %v982, %v64
    %v993 = vmul.f32 %v984, %v64
    %v994 = vmul.f32 %v986, %v64
    %v995 = vadd.f32 %v963, %v987
    %v996 = vadd.f32 %v964, %v988
    %v997 = vadd.f32 %v965, %v989
    %v998 = vadd.f32 %v966, %v990
    %v999 = vadd.f32 %v967, %v991
    %v1000 = vadd.f32 %v968, %v992
    %v1001 = vadd.f32 %v969, %v993
    %v1002 = vadd.f32 %v970, %v994
    %1003 = vrot.lane.b32.xlu0 %v931, 125
    %v1004 = vpop.permute.xlu0 %1003
    %1005 = vrot.lane.b32.xlu0 %v932, 125
    %v1006 = vpop.permute.xlu0 %1005
    %1007 = vrot.lane.b32.xlu0 %v933, 125
    %v1008 = vpop.permute.xlu0 %1007
    %1009 = vrot.lane.b32.xlu0 %v934, 125
    %v1010 = vpop.permute.xlu0 %1009
    %1011 = vrot.lane.b32.xlu0 %v935, 125
    %v1012 = vpop.permute.xlu0 %1011
    %1013 = vrot.lane.b32.xlu0 %v936, 125
    %v1014 = vpop.permute.xlu0 %1013
    %1015 = vrot.lane.b32.xlu0 %v937, 125
    %v1016 = vpop.permute.xlu0 %1015
    %1017 = vrot.lane.b32.xlu0 %v938, 125
    %v1018 = vpop.permute.xlu0 %1017
    %v1019 = vmul.f32 %v1004, %v79
    %v1020 = vmul.f32 %v1006, %v79
    %v1021 = vmul.f32 %v1008, %v79
    %v1022 = vmul.f32 %v1010, %v79
    %v1023 = vmul.f32 %v1012, %v79
    %v1024 = vmul.f32 %v1014, %v79
    %v1025 = vmul.f32 %v1016, %v79
    %v1026 = vmul.f32 %v1018, %v79
    %v1027 = vadd.f32 %v995, %v1019
    %v1028 = vadd.f32 %v996, %v1020
    %v1029 = vadd.f32 %v997, %v1021
    %v1030 = vadd.f32 %v998, %v1022
    %v1031 = vadd.f32 %v999, %v1023
    %v1032 = vadd.f32 %v1000, %v1024
    %v1033 = vadd.f32 %v1001, %v1025
    %v1034 = vadd.f32 %v1002, %v1026
    %1035 = vrot.lane.b32.xlu0 %v931, 126
    %v1036 = vpop.permute.xlu0 %1035
    %1037 = vrot.lane.b32.xlu0 %v932, 126
    %v1038 = vpop.permute.xlu0 %1037
    %1039 = vrot.lane.b32.xlu0 %v933, 126
    %v1040 = vpop.permute.xlu0 %1039
    %1041 = vrot.lane.b32.xlu0 %v934, 126
    %v1042 = vpop.permute.xlu0 %1041
    %1043 = vrot.lane.b32.xlu0 %v935, 126
    %v1044 = vpop.permute.xlu0 %1043
    %1045 = vrot.lane.b32.xlu0 %v936, 126
    %v1046 = vpop.permute.xlu0 %1045
    %1047 = vrot.lane.b32.xlu0 %v937, 126
    %v1048 = vpop.permute.xlu0 %1047
    %1049 = vrot.lane.b32.xlu0 %v938, 126
    %v1050 = vpop.permute.xlu0 %1049
    %v1051 = vmul.f32 %v1036, %v94
    %v1052 = vmul.f32 %v1038, %v94
    %v1053 = vmul.f32 %v1040, %v94
    %v1054 = vmul.f32 %v1042, %v94
    %v1055 = vmul.f32 %v1044, %v94
    %v1056 = vmul.f32 %v1046, %v94
    %v1057 = vmul.f32 %v1048, %v94
    %v1058 = vmul.f32 %v1050, %v94
    %v1059 = vadd.f32 %v1027, %v1051
    %v1060 = vadd.f32 %v1028, %v1052
    %v1061 = vadd.f32 %v1029, %v1053
    %v1062 = vadd.f32 %v1030, %v1054
    %v1063 = vadd.f32 %v1031, %v1055
    %v1064 = vadd.f32 %v1032, %v1056
    %v1065 = vadd.f32 %v1033, %v1057
    %v1066 = vadd.f32 %v1034, %v1058
    %1067 = vrot.lane.b32.xlu0 %v931, 127
    %v1068 = vpop.permute.xlu0 %1067
    %1069 = vrot.lane.b32.xlu0 %v932, 127
    %v1070 = vpop.permute.xlu0 %1069
    %1071 = vrot.lane.b32.xlu0 %v933, 127
    %v1072 = vpop.permute.xlu0 %1071
    %1073 = vrot.lane.b32.xlu0 %v934, 127
    %v1074 = vpop.permute.xlu0 %1073
    %1075 = vrot.lane.b32.xlu0 %v935, 127
    %v1076 = vpop.permute.xlu0 %1075
    %1077 = vrot.lane.b32.xlu0 %v936, 127
    %v1078 = vpop.permute.xlu0 %1077
    %1079 = vrot.lane.b32.xlu0 %v937, 127
    %v1080 = vpop.permute.xlu0 %1079
    %1081 = vrot.lane.b32.xlu0 %v938, 127
    %v1082 = vpop.permute.xlu0 %1081
    %v1083 = vmul.f32 %v1068, %v109
    %v1084 = vmul.f32 %v1070, %v109
    %v1085 = vmul.f32 %v1072, %v109
    %v1086 = vmul.f32 %v1074, %v109
    %v1087 = vmul.f32 %v1076, %v109
    %v1088 = vmul.f32 %v1078, %v109
    %v1089 = vmul.f32 %v1080, %v109
    %v1090 = vmul.f32 %v1082, %v109
    %v1091 = vadd.f32 %v1059, %v1083
    %v1092 = vadd.f32 %v1060, %v1084
    %v1093 = vadd.f32 %v1061, %v1085
    %v1094 = vadd.f32 %v1062, %v1086
    %v1095 = vadd.f32 %v1063, %v1087
    %v1096 = vadd.f32 %v1064, %v1088
    %v1097 = vadd.f32 %v1065, %v1089
    %v1098 = vadd.f32 %v1066, %v1090
    %1099 = vrot.lane.b32.xlu0 %v931, 1
    %v1100 = vpop.permute.xlu0 %1099
    %1101 = vrot.lane.b32.xlu0 %v932, 1
    %v1102 = vpop.permute.xlu0 %1101
    %1103 = vrot.lane.b32.xlu0 %v933, 1
    %v1104 = vpop.permute.xlu0 %1103
    %1105 = vrot.lane.b32.xlu0 %v934, 1
    %v1106 = vpop.permute.xlu0 %1105
    %1107 = vrot.lane.b32.xlu0 %v935, 1
    %v1108 = vpop.permute.xlu0 %1107
    %1109 = vrot.lane.b32.xlu0 %v936, 1
    %v1110 = vpop.permute.xlu0 %1109
    %1111 = vrot.lane.b32.xlu0 %v937, 1
    %v1112 = vpop.permute.xlu0 %1111
    %1113 = vrot.lane.b32.xlu0 %v938, 1
    %v1114 = vpop.permute.xlu0 %1113
    %v1115 = vmul.f32 %v1100, %v124
    %v1116 = vmul.f32 %v1102, %v124
    %v1117 = vmul.f32 %v1104, %v124
    %v1118 = vmul.f32 %v1106, %v124
    %v1119 = vmul.f32 %v1108, %v124
    %v1120 = vmul.f32 %v1110, %v124
    %v1121 = vmul.f32 %v1112, %v124
    %v1122 = vmul.f32 %v1114, %v124
    %v1123 = vadd.f32 %v1091, %v1115
    %v1124 = vadd.f32 %v1092, %v1116
    %v1125 = vadd.f32 %v1093, %v1117
    %v1126 = vadd.f32 %v1094, %v1118
    %v1127 = vadd.f32 %v1095, %v1119
    %v1128 = vadd.f32 %v1096, %v1120
    %v1129 = vadd.f32 %v1097, %v1121
    %v1130 = vadd.f32 %v1098, %v1122
    %1131 = vrot.lane.b32.xlu0 %v931, 2
    %v1132 = vpop.permute.xlu0 %1131
    %1133 = vrot.lane.b32.xlu0 %v932, 2
    %v1134 = vpop.permute.xlu0 %1133
    %1135 = vrot.lane.b32.xlu0 %v933, 2
    %v1136 = vpop.permute.xlu0 %1135
    %1137 = vrot.lane.b32.xlu0 %v934, 2
    %v1138 = vpop.permute.xlu0 %1137
    %1139 = vrot.lane.b32.xlu0 %v935, 2
    %v1140 = vpop.permute.xlu0 %1139
    %1141 = vrot.lane.b32.xlu0 %v936, 2
    %v1142 = vpop.permute.xlu0 %1141
    %1143 = vrot.lane.b32.xlu0 %v937, 2
    %v1144 = vpop.permute.xlu0 %1143
    %1145 = vrot.lane.b32.xlu0 %v938, 2
    %v1146 = vpop.permute.xlu0 %1145
    %v1147 = vmul.f32 %v1132, %v139
    %v1148 = vmul.f32 %v1134, %v139
    %v1149 = vmul.f32 %v1136, %v139
    %v1150 = vmul.f32 %v1138, %v139
    %v1151 = vmul.f32 %v1140, %v139
    %v1152 = vmul.f32 %v1142, %v139
    %v1153 = vmul.f32 %v1144, %v139
    %v1154 = vmul.f32 %v1146, %v139
    %v1155 = vadd.f32 %v1123, %v1147
    %v1156 = vadd.f32 %v1124, %v1148
    %v1157 = vadd.f32 %v1125, %v1149
    %v1158 = vadd.f32 %v1126, %v1150
    %v1159 = vadd.f32 %v1127, %v1151
    %v1160 = vadd.f32 %v1128, %v1152
    %v1161 = vadd.f32 %v1129, %v1153
    %v1162 = vadd.f32 %v1130, %v1154
    %1163 = vrot.lane.b32.xlu0 %v931, 3
    %v1164 = vpop.permute.xlu0 %1163
    %1165 = vrot.lane.b32.xlu0 %v932, 3
    %v1166 = vpop.permute.xlu0 %1165
    %1167 = vrot.lane.b32.xlu0 %v933, 3
    %v1168 = vpop.permute.xlu0 %1167
    %1169 = vrot.lane.b32.xlu0 %v934, 3
    %v1170 = vpop.permute.xlu0 %1169
    %1171 = vrot.lane.b32.xlu0 %v935, 3
    %v1172 = vpop.permute.xlu0 %1171
    %1173 = vrot.lane.b32.xlu0 %v936, 3
    %v1174 = vpop.permute.xlu0 %1173
    %1175 = vrot.lane.b32.xlu0 %v937, 3
    %v1176 = vpop.permute.xlu0 %1175
    %1177 = vrot.lane.b32.xlu0 %v938, 3
    %v1178 = vpop.permute.xlu0 %1177
    %v1179 = vmul.f32 %v1164, %v154
    %v1180 = vmul.f32 %v1166, %v154
    %v1181 = vmul.f32 %v1168, %v154
    %v1182 = vmul.f32 %v1170, %v154
    %v1183 = vmul.f32 %v1172, %v154
    %v1184 = vmul.f32 %v1174, %v154
    %v1185 = vmul.f32 %v1176, %v154
    %v1186 = vmul.f32 %v1178, %v154
    %v1187 = vadd.f32 %v1155, %v1179
    %v1188 = vadd.f32 %v1156, %v1180
    %v1189 = vadd.f32 %v1157, %v1181
    %v1190 = vadd.f32 %v1158, %v1182
    %v1191 = vadd.f32 %v1159, %v1183
    %v1192 = vadd.f32 %v1160, %v1184
    %v1193 = vadd.f32 %v1161, %v1185
    %v1194 = vadd.f32 %v1162, %v1186
    %1195 = vrot.lane.b32.xlu0 %v931, 4
    %v1196 = vpop.permute.xlu0 %1195
    %1197 = vrot.lane.b32.xlu0 %v932, 4
    %v1198 = vpop.permute.xlu0 %1197
    %1199 = vrot.lane.b32.xlu0 %v933, 4
    %v1200 = vpop.permute.xlu0 %1199
    %1201 = vrot.lane.b32.xlu0 %v934, 4
    %v1202 = vpop.permute.xlu0 %1201
    %1203 = vrot.lane.b32.xlu0 %v935, 4
    %v1204 = vpop.permute.xlu0 %1203
    %1205 = vrot.lane.b32.xlu0 %v936, 4
    %v1206 = vpop.permute.xlu0 %1205
    %1207 = vrot.lane.b32.xlu0 %v937, 4
    %v1208 = vpop.permute.xlu0 %1207
    %1209 = vrot.lane.b32.xlu0 %v938, 4
    %v1210 = vpop.permute.xlu0 %1209
    %v1211 = vmul.f32 %v1196, %v169
    %v1212 = vmul.f32 %v1198, %v169
    %v1213 = vmul.f32 %v1200, %v169
    %v1214 = vmul.f32 %v1202, %v169
    %v1215 = vmul.f32 %v1204, %v169
    %v1216 = vmul.f32 %v1206, %v169
    %v1217 = vmul.f32 %v1208, %v169
    %v1218 = vmul.f32 %v1210, %v169
    %v1219 = vadd.f32 %v1187, %v1211
    %v1220 = vadd.f32 %v1188, %v1212
    %v1221 = vadd.f32 %v1189, %v1213
    %v1222 = vadd.f32 %v1190, %v1214
    %v1223 = vadd.f32 %v1191, %v1215
    %v1224 = vadd.f32 %v1192, %v1216
    %v1225 = vadd.f32 %v1193, %v1217
    %v1226 = vadd.f32 %v1194, %v1218
    %1227 = vrot.lane.b32.xlu0 %v931, 5
    %v1228 = vpop.permute.xlu0 %1227
    %1229 = vrot.lane.b32.xlu0 %v932, 5
    %v1230 = vpop.permute.xlu0 %1229
    %1231 = vrot.lane.b32.xlu0 %v933, 5
    %v1232 = vpop.permute.xlu0 %1231
    %1233 = vrot.lane.b32.xlu0 %v934, 5
    %v1234 = vpop.permute.xlu0 %1233
    %1235 = vrot.lane.b32.xlu0 %v935, 5
    %v1236 = vpop.permute.xlu0 %1235
    %1237 = vrot.lane.b32.xlu0 %v936, 5
    %v1238 = vpop.permute.xlu0 %1237
    %1239 = vrot.lane.b32.xlu0 %v937, 5
    %v1240 = vpop.permute.xlu0 %1239
    %1241 = vrot.lane.b32.xlu0 %v938, 5
    %v1242 = vpop.permute.xlu0 %1241
    %v1243 = vmul.f32 %v1228, %v184
    %v1244 = vmul.f32 %v1230, %v184
    %v1245 = vmul.f32 %v1232, %v184
    %v1246 = vmul.f32 %v1234, %v184
    %v1247 = vmul.f32 %v1236, %v184
    %v1248 = vmul.f32 %v1238, %v184
    %v1249 = vmul.f32 %v1240, %v184
    %v1250 = vmul.f32 %v1242, %v184
    %v1251 = vadd.f32 %v1219, %v1243
    %v1252 = vadd.f32 %v1220, %v1244
    %v1253 = vadd.f32 %v1221, %v1245
    %v1254 = vadd.f32 %v1222, %v1246
    %v1255 = vadd.f32 %v1223, %v1247
    %v1256 = vadd.f32 %v1224, %v1248
    %v1257 = vadd.f32 %v1225, %v1249
    %v1258 = vadd.f32 %v1226, %v1250
    %v1259 = vrot.slane %v1251, 5
    %v1260 = vrot.slane %v1252, 5
    %v1261 = vrot.slane %v1253, 5
    %v1262 = vrot.slane %v1254, 5
    %v1263 = vrot.slane %v1255, 5
    %v1264 = vrot.slane %v1256, 5
    %v1265 = vrot.slane %v1257, 5
    %v1266 = vrot.slane %v1258, 5
    %v1267 = vsel %vm533, %v1265, %v1266
    %v1268 = vsel %vm533, %v1264, %v1265
    %v1269 = vsel %vm533, %v1263, %v1264
    %v1270 = vsel %vm533, %v1262, %v1263
    %v1271 = vsel %vm533, %v1261, %v1262
    %v1272 = vsel %vm533, %v1260, %v1261
    %v1273 = vsel %vm533, %v1259, %v1260
    %v1274 = vsel %vm533, %v1266, %v1259
    %v1275 = vmul.f32 %v1273, %v545
    %v1276 = vmul.f32 %v1272, %v550
    %v1277 = vmul.f32 %v1271, %v545
    %v1278 = vmul.f32 %v1270, %v550
    %v1279 = vmul.f32 %v1269, %v545
    %v1280 = vmul.f32 %v1268, %v550
    %v1281 = vmul.f32 %v1267, %v545
    %v1282 = vmul.f32 %v1274, %v550
    %v1283 = vadd.f32 %v1251, %v1275
    %v1284 = vadd.f32 %v1252, %v1276
    %v1285 = vadd.f32 %v1253, %v1277
    %v1286 = vadd.f32 %v1254, %v1278
    %v1287 = vadd.f32 %v1255, %v1279
    %v1288 = vadd.f32 %v1256, %v1280
    %v1289 = vadd.f32 %v1257, %v1281
    %v1290 = vadd.f32 %v1258, %v1282
    %v1291 = vrot.slane %v1251, 4
    %v1292 = vrot.slane %v1252, 4
    %v1293 = vrot.slane %v1253, 4
    %v1294 = vrot.slane %v1254, 4
    %v1295 = vrot.slane %v1255, 4
    %v1296 = vrot.slane %v1256, 4
    %v1297 = vrot.slane %v1257, 4
    %v1298 = vrot.slane %v1258, 4
    %v1299 = vsel %vm576, %v1297, %v1298
    %v1300 = vsel %vm576, %v1296, %v1297
    %v1301 = vsel %vm576, %v1295, %v1296
    %v1302 = vsel %vm576, %v1294, %v1295
    %v1303 = vsel %vm576, %v1293, %v1294
    %v1304 = vsel %vm576, %v1292, %v1293
    %v1305 = vsel %vm576, %v1291, %v1292
    %v1306 = vsel %vm576, %v1298, %v1291
    %v1307 = vmul.f32 %v1305, %v588
    %v1308 = vmul.f32 %v1304, %v593
    %v1309 = vmul.f32 %v1303, %v588
    %v1310 = vmul.f32 %v1302, %v593
    %v1311 = vmul.f32 %v1301, %v588
    %v1312 = vmul.f32 %v1300, %v593
    %v1313 = vmul.f32 %v1299, %v588
    %v1314 = vmul.f32 %v1306, %v593
    %v1315 = vadd.f32 %v1283, %v1307
    %v1316 = vadd.f32 %v1284, %v1308
    %v1317 = vadd.f32 %v1285, %v1309
    %v1318 = vadd.f32 %v1286, %v1310
    %v1319 = vadd.f32 %v1287, %v1311
    %v1320 = vadd.f32 %v1288, %v1312
    %v1321 = vadd.f32 %v1289, %v1313
    %v1322 = vadd.f32 %v1290, %v1314
    %v1323 = vrot.slane %v1251, 3
    %v1324 = vrot.slane %v1252, 3
    %v1325 = vrot.slane %v1253, 3
    %v1326 = vrot.slane %v1254, 3
    %v1327 = vrot.slane %v1255, 3
    %v1328 = vrot.slane %v1256, 3
    %v1329 = vrot.slane %v1257, 3
    %v1330 = vrot.slane %v1258, 3
    %v1331 = vsel %vm619, %v1329, %v1330
    %v1332 = vsel %vm619, %v1328, %v1329
    %v1333 = vsel %vm619, %v1327, %v1328
    %v1334 = vsel %vm619, %v1326, %v1327
    %v1335 = vsel %vm619, %v1325, %v1326
    %v1336 = vsel %vm619, %v1324, %v1325
    %v1337 = vsel %vm619, %v1323, %v1324
    %v1338 = vsel %vm619, %v1330, %v1323
    %v1339 = vmul.f32 %v1337, %v631
    %v1340 = vmul.f32 %v1336, %v636
    %v1341 = vmul.f32 %v1335, %v631
    %v1342 = vmul.f32 %v1334, %v636
    %v1343 = vmul.f32 %v1333, %v631
    %v1344 = vmul.f32 %v1332, %v636
    %v1345 = vmul.f32 %v1331, %v631
    %v1346 = vmul.f32 %v1338, %v636
    %v1347 = vadd.f32 %v1315, %v1339
    %v1348 = vadd.f32 %v1316, %v1340
    %v1349 = vadd.f32 %v1317, %v1341
    %v1350 = vadd.f32 %v1318, %v1342
    %v1351 = vadd.f32 %v1319, %v1343
    %v1352 = vadd.f32 %v1320, %v1344
    %v1353 = vadd.f32 %v1321, %v1345
    %v1354 = vadd.f32 %v1322, %v1346
    %v1355 = vrot.slane %v1251, 2
    %v1356 = vrot.slane %v1252, 2
    %v1357 = vrot.slane %v1253, 2
    %v1358 = vrot.slane %v1254, 2
    %v1359 = vrot.slane %v1255, 2
    %v1360 = vrot.slane %v1256, 2
    %v1361 = vrot.slane %v1257, 2
    %v1362 = vrot.slane %v1258, 2
    %v1363 = vsel %vm662, %v1361, %v1362
    %v1364 = vsel %vm662, %v1360, %v1361
    %v1365 = vsel %vm662, %v1359, %v1360
    %v1366 = vsel %vm662, %v1358, %v1359
    %v1367 = vsel %vm662, %v1357, %v1358
    %v1368 = vsel %vm662, %v1356, %v1357
    %v1369 = vsel %vm662, %v1355, %v1356
    %v1370 = vsel %vm662, %v1362, %v1355
    %v1371 = vmul.f32 %v1369, %v674
    %v1372 = vmul.f32 %v1368, %v679
    %v1373 = vmul.f32 %v1367, %v674
    %v1374 = vmul.f32 %v1366, %v679
    %v1375 = vmul.f32 %v1365, %v674
    %v1376 = vmul.f32 %v1364, %v679
    %v1377 = vmul.f32 %v1363, %v674
    %v1378 = vmul.f32 %v1370, %v679
    %v1379 = vadd.f32 %v1347, %v1371
    %v1380 = vadd.f32 %v1348, %v1372
    %v1381 = vadd.f32 %v1349, %v1373
    %v1382 = vadd.f32 %v1350, %v1374
    %v1383 = vadd.f32 %v1351, %v1375
    %v1384 = vadd.f32 %v1352, %v1376
    %v1385 = vadd.f32 %v1353, %v1377
    %v1386 = vadd.f32 %v1354, %v1378
    %v1387 = vrot.slane %v1251, 1
    %v1388 = vrot.slane %v1252, 1
    %v1389 = vrot.slane %v1253, 1
    %v1390 = vrot.slane %v1254, 1
    %v1391 = vrot.slane %v1255, 1
    %v1392 = vrot.slane %v1256, 1
    %v1393 = vrot.slane %v1257, 1
    %v1394 = vrot.slane %v1258, 1
    %v1395 = vsel %vm705, %v1393, %v1394
    %v1396 = vsel %vm705, %v1392, %v1393
    %v1397 = vsel %vm705, %v1391, %v1392
    %v1398 = vsel %vm705, %v1390, %v1391
    %v1399 = vsel %vm705, %v1389, %v1390
    %v1400 = vsel %vm705, %v1388, %v1389
    %v1401 = vsel %vm705, %v1387, %v1388
    %v1402 = vsel %vm705, %v1394, %v1387
    %v1403 = vmul.f32 %v1401, %v717
    %v1404 = vmul.f32 %v1400, %v722
    %v1405 = vmul.f32 %v1399, %v717
    %v1406 = vmul.f32 %v1398, %v722
    %v1407 = vmul.f32 %v1397, %v717
    %v1408 = vmul.f32 %v1396, %v722
    %v1409 = vmul.f32 %v1395, %v717
    %v1410 = vmul.f32 %v1402, %v722
    %v1411 = vadd.f32 %v1379, %v1403
    %v1412 = vadd.f32 %v1380, %v1404
    %v1413 = vadd.f32 %v1381, %v1405
    %v1414 = vadd.f32 %v1382, %v1406
    %v1415 = vadd.f32 %v1383, %v1407
    %v1416 = vadd.f32 %v1384, %v1408
    %v1417 = vadd.f32 %v1385, %v1409
    %v1418 = vadd.f32 %v1386, %v1410
    %v1419 = vrot.slane %v1251, 7
    %v1420 = vrot.slane %v1252, 7
    %v1421 = vrot.slane %v1253, 7
    %v1422 = vrot.slane %v1254, 7
    %v1423 = vrot.slane %v1255, 7
    %v1424 = vrot.slane %v1256, 7
    %v1425 = vrot.slane %v1257, 7
    %v1426 = vrot.slane %v1258, 7
    %v1427 = vsel %vm748, %v1425, %v1426
    %v1428 = vsel %vm748, %v1424, %v1425
    %v1429 = vsel %vm748, %v1423, %v1424
    %v1430 = vsel %vm748, %v1422, %v1423
    %v1431 = vsel %vm748, %v1421, %v1422
    %v1432 = vsel %vm748, %v1420, %v1421
    %v1433 = vsel %vm748, %v1419, %v1420
    %v1434 = vsel %vm748, %v1426, %v1419
    %v1435 = vmul.f32 %v1434, %v760
    %v1436 = vmul.f32 %v1433, %v765
    %v1437 = vmul.f32 %v1432, %v760
    %v1438 = vmul.f32 %v1431, %v765
    %v1439 = vmul.f32 %v1430, %v760
    %v1440 = vmul.f32 %v1429, %v765
    %v1441 = vmul.f32 %v1428, %v760
    %v1442 = vmul.f32 %v1427, %v765
    %v1443 = vadd.f32 %v1411, %v1435
    %v1444 = vadd.f32 %v1412, %v1436
    %v1445 = vadd.f32 %v1413, %v1437
    %v1446 = vadd.f32 %v1414, %v1438
    %v1447 = vadd.f32 %v1415, %v1439
    %v1448 = vadd.f32 %v1416, %v1440
    %v1449 = vadd.f32 %v1417, %v1441
    %v1450 = vadd.f32 %v1418, %v1442
    %v1451 = vrot.slane %v1251, 6
    %v1452 = vrot.slane %v1252, 6
    %v1453 = vrot.slane %v1253, 6
    %v1454 = vrot.slane %v1254, 6
    %v1455 = vrot.slane %v1255, 6
    %v1456 = vrot.slane %v1256, 6
    %v1457 = vrot.slane %v1257, 6
    %v1458 = vrot.slane %v1258, 6
    %v1459 = vsel %vm791, %v1457, %v1458
    %v1460 = vsel %vm791, %v1456, %v1457
    %v1461 = vsel %vm791, %v1455, %v1456
    %v1462 = vsel %vm791, %v1454, %v1455
    %v1463 = vsel %vm791, %v1453, %v1454
    %v1464 = vsel %vm791, %v1452, %v1453
    %v1465 = vsel %vm791, %v1451, %v1452
    %v1466 = vsel %vm791, %v1458, %v1451
    %v1467 = vmul.f32 %v1466, %v803
    %v1468 = vmul.f32 %v1465, %v808
    %v1469 = vmul.f32 %v1464, %v803
    %v1470 = vmul.f32 %v1463, %v808
    %v1471 = vmul.f32 %v1462, %v803
    %v1472 = vmul.f32 %v1461, %v808
    %v1473 = vmul.f32 %v1460, %v803
    %v1474 = vmul.f32 %v1459, %v808
    %v1475 = vadd.f32 %v1443, %v1467
    %v1476 = vadd.f32 %v1444, %v1468
    %v1477 = vadd.f32 %v1445, %v1469
    %v1478 = vadd.f32 %v1446, %v1470
    %v1479 = vadd.f32 %v1447, %v1471
    %v1480 = vadd.f32 %v1448, %v1472
    %v1481 = vadd.f32 %v1449, %v1473
    %v1482 = vadd.f32 %v1450, %v1474
    %v1483 = vmul.f32 %v1274, %v829
    %v1484 = vmul.f32 %v1273, %v834
    %v1485 = vmul.f32 %v1272, %v829
    %v1486 = vmul.f32 %v1271, %v834
    %v1487 = vmul.f32 %v1270, %v829
    %v1488 = vmul.f32 %v1269, %v834
    %v1489 = vmul.f32 %v1268, %v829
    %v1490 = vmul.f32 %v1267, %v834
    %v1491 = vadd.f32 %v1475, %v1483
    %v1492 = vadd.f32 %v1476, %v1484
    %v1493 = vadd.f32 %v1477, %v1485
    %v1494 = vadd.f32 %v1478, %v1486
    %v1495 = vadd.f32 %v1479, %v1487
    %v1496 = vadd.f32 %v1480, %v1488
    %v1497 = vadd.f32 %v1481, %v1489
    %v1498 = vadd.f32 %v1482, %v1490
    %v1499 = vmul.f32 %v1306, %v855
    %v1500 = vmul.f32 %v1305, %v860
    %v1501 = vmul.f32 %v1304, %v855
    %v1502 = vmul.f32 %v1303, %v860
    %v1503 = vmul.f32 %v1302, %v855
    %v1504 = vmul.f32 %v1301, %v860
    %v1505 = vmul.f32 %v1300, %v855
    %v1506 = vmul.f32 %v1299, %v860
    %v1507 = vadd.f32 %v1491, %v1499
    %v1508 = vadd.f32 %v1492, %v1500
    %v1509 = vadd.f32 %v1493, %v1501
    %v1510 = vadd.f32 %v1494, %v1502
    %v1511 = vadd.f32 %v1495, %v1503
    %v1512 = vadd.f32 %v1496, %v1504
    %v1513 = vadd.f32 %v1497, %v1505
    %v1514 = vadd.f32 %v1498, %v1506
    %v1515 = vmul.f32 %v1338, %v881
    %v1516 = vmul.f32 %v1337, %v886
    %v1517 = vmul.f32 %v1336, %v881
    %v1518 = vmul.f32 %v1335, %v886
    %v1519 = vmul.f32 %v1334, %v881
    %v1520 = vmul.f32 %v1333, %v886
    %v1521 = vmul.f32 %v1332, %v881
    %v1522 = vmul.f32 %v1331, %v886
    %v1523 = vadd.f32 %v1507, %v1515
    %v1524 = vadd.f32 %v1508, %v1516
    %v1525 = vadd.f32 %v1509, %v1517
    %v1526 = vadd.f32 %v1510, %v1518
    %v1527 = vadd.f32 %v1511, %v1519
    %v1528 = vadd.f32 %v1512, %v1520
    %v1529 = vadd.f32 %v1513, %v1521
    %v1530 = vadd.f32 %v1514, %v1522
    %v1531 = vrsqrt.pop %v1523
    %v1532 = vmul.f32 %v1523, %v1531
    %vm1533 = vcmp.eq.f32.partialorder %v1523, inf
    %v1534 = vsel %vm1533, %v1523, %v1532
    %vm1535 = vcmp.eq.f32.partialorder %v1523, 0.0
    %v1536 = vand.u32 %v1523, 2147483648
    %v1537 = vsel %vm1535, %v1536, %v1534
    %v1538 = vrsqrt.pop %v1524
    %v1539 = vmul.f32 %v1524, %v1538
    %vm1540 = vcmp.eq.f32.partialorder %v1524, inf
    %v1541 = vsel %vm1540, %v1524, %v1539
    %vm1542 = vcmp.eq.f32.partialorder %v1524, 0.0
    %v1543 = vand.u32 %v1524, 2147483648
    %v1544 = vsel %vm1542, %v1543, %v1541
    %v1545 = vrsqrt.pop %v1525
    %v1546 = vmul.f32 %v1525, %v1545
    %vm1547 = vcmp.eq.f32.partialorder %v1525, inf
    %v1548 = vsel %vm1547, %v1525, %v1546
    %vm1549 = vcmp.eq.f32.partialorder %v1525, 0.0
    %v1550 = vand.u32 %v1525, 2147483648
    %v1551 = vsel %vm1549, %v1550, %v1548
    %v1552 = vrsqrt.pop %v1526
    %v1553 = vmul.f32 %v1526, %v1552
    %vm1554 = vcmp.eq.f32.partialorder %v1526, inf
    %v1555 = vsel %vm1554, %v1526, %v1553
    %vm1556 = vcmp.eq.f32.partialorder %v1526, 0.0
    %v1557 = vand.u32 %v1526, 2147483648
    %v1558 = vsel %vm1556, %v1557, %v1555
    %v1559 = vrsqrt.pop %v1527
    %v1560 = vmul.f32 %v1527, %v1559
    %vm1561 = vcmp.eq.f32.partialorder %v1527, inf
    %v1562 = vsel %vm1561, %v1527, %v1560
    %vm1563 = vcmp.eq.f32.partialorder %v1527, 0.0
    %v1564 = vand.u32 %v1527, 2147483648
    %v1565 = vsel %vm1563, %v1564, %v1562
    %v1566 = vrsqrt.pop %v1528
    %v1567 = vmul.f32 %v1528, %v1566
    %vm1568 = vcmp.eq.f32.partialorder %v1528, inf
    %v1569 = vsel %vm1568, %v1528, %v1567
    %vm1570 = vcmp.eq.f32.partialorder %v1528, 0.0
    %v1571 = vand.u32 %v1528, 2147483648
    %v1572 = vsel %vm1570, %v1571, %v1569
    %v1573 = vrsqrt.pop %v1529
    %v1574 = vmul.f32 %v1529, %v1573
    %vm1575 = vcmp.eq.f32.partialorder %v1529, inf
    %v1576 = vsel %vm1575, %v1529, %v1574
    %vm1577 = vcmp.eq.f32.partialorder %v1529, 0.0
    %v1578 = vand.u32 %v1529, 2147483648
    %v1579 = vsel %vm1577, %v1578, %v1576
    %v1580 = vrsqrt.pop %v1530
    %v1581 = vmul.f32 %v1530, %v1580
    %vm1582 = vcmp.eq.f32.partialorder %v1530, inf
    %v1583 = vsel %vm1582, %v1530, %v1581
    %vm1584 = vcmp.eq.f32.partialorder %v1530, 0.0
    %v1585 = vand.u32 %v1530, 2147483648
    %v1586 = vsel %vm1584, %v1585, %v1583
    %v1587 = vadd.f32 %v1537, 0.001
    %v1588 = vadd.f32 %v1544, 0.001
    %v1589 = vadd.f32 %v1551, 0.001
    %v1590 = vadd.f32 %v1558, 0.001
    %v1591 = vadd.f32 %v1565, 0.001
    %v1592 = vadd.f32 %v1572, 0.001
    %v1593 = vadd.f32 %v1579, 0.001
    %v1594 = vadd.f32 %v1586, 0.001
    %v1595 = vmax.f32 %v1587, %v1589
    %v1596 = vmax.f32 %v1588, %v1590
    %v1597 = vadd.f32 %v923, %v925
    %v1598 = vadd.f32 %v924, %v926
    %v1599 = vadd.f32 %v1587, %v1589
    %v1600 = vadd.f32 %v1588, %v1590
    %v1601 = vmax.f32 %v1595, %v1591
    %v1602 = vmax.f32 %v1596, %v1592
    %v1603 = vadd.f32 %v1597, %v927
    %v1604 = vadd.f32 %v1598, %v928
    %v1605 = vadd.f32 %v1599, %v1591
    %v1606 = vadd.f32 %v1600, %v1592
    %v1607 = vmax.f32 %v1601, %v1593
    %v1608 = vmax.f32 %v1602, %v1594
    %v1609 = vadd.f32 %v1603, %v929
    %v1610 = vadd.f32 %v1604, %v930
    %v1611 = vadd.f32 %v1605, %v1593
    %v1612 = vadd.f32 %v1606, %v1594
    %v1613 = vmul.f32 %v1609, %v1609
    %v1614 = vmul.f32 %v1610, %v1610
    %1615 = vrot.lane.b32.xlu0 %v1613, 123
    %v1616 = vpop.permute.xlu0 %1615
    %1617 = vrot.lane.b32.xlu0 %v1614, 123
    %v1618 = vpop.permute.xlu0 %1617
    %v1619 = vmul.f32 %v1616, %v49
    %v1620 = vmul.f32 %v1618, %v49
    %v1621 = vadd.f32 %v1613, %v1619
    %v1622 = vadd.f32 %v1614, %v1620
    %1623 = vrot.lane.b32.xlu0 %v1613, 124
    %v1624 = vpop.permute.xlu0 %1623
    %1625 = vrot.lane.b32.xlu0 %v1614, 124
    %v1626 = vpop.permute.xlu0 %1625
    %v1627 = vmul.f32 %v1624, %v64
    %v1628 = vmul.f32 %v1626, %v64
    %v1629 = vadd.f32 %v1621, %v1627
    %v1630 = vadd.f32 %v1622, %v1628
    %1631 = vrot.lane.b32.xlu0 %v1613, 125
    %v1632 = vpop.permute.xlu0 %1631
    %1633 = vrot.lane.b32.xlu0 %v1614, 125
    %v1634 = vpop.permute.xlu0 %1633
    %v1635 = vmul.f32 %v1632, %v79
    %v1636 = vmul.f32 %v1634, %v79
    %v1637 = vadd.f32 %v1629, %v1635
    %v1638 = vadd.f32 %v1630, %v1636
    %1639 = vrot.lane.b32.xlu0 %v1613, 126
    %v1640 = vpop.permute.xlu0 %1639
    %1641 = vrot.lane.b32.xlu0 %v1614, 126
    %v1642 = vpop.permute.xlu0 %1641
    %v1643 = vmul.f32 %v1640, %v94
    %v1644 = vmul.f32 %v1642, %v94
    %v1645 = vadd.f32 %v1637, %v1643
    %v1646 = vadd.f32 %v1638, %v1644
    %1647 = vrot.lane.b32.xlu0 %v1613, 127
    %v1648 = vpop.permute.xlu0 %1647
    %1649 = vrot.lane.b32.xlu0 %v1614, 127
    %v1650 = vpop.permute.xlu0 %1649
    %v1651 = vmul.f32 %v1648, %v109
    %v1652 = vmul.f32 %v1650, %v109
    %v1653 = vadd.f32 %v1645, %v1651
    %v1654 = vadd.f32 %v1646, %v1652
    %1655 = vrot.lane.b32.xlu0 %v1613, 1
    %v1656 = vpop.permute.xlu0 %1655
    %1657 = vrot.lane.b32.xlu0 %v1614, 1
    %v1658 = vpop.permute.xlu0 %1657
    %v1659 = vmul.f32 %v1656, %v124
    %v1660 = vmul.f32 %v1658, %v124
    %v1661 = vadd.f32 %v1653, %v1659
    %v1662 = vadd.f32 %v1654, %v1660
    %1663 = vrot.lane.b32.xlu0 %v1613, 2
    %v1664 = vpop.permute.xlu0 %1663
    %1665 = vrot.lane.b32.xlu0 %v1614, 2
    %v1666 = vpop.permute.xlu0 %1665
    %v1667 = vmul.f32 %v1664, %v139
    %v1668 = vmul.f32 %v1666, %v139
    %v1669 = vadd.f32 %v1661, %v1667
    %v1670 = vadd.f32 %v1662, %v1668
    %1671 = vrot.lane.b32.xlu0 %v1613, 3
    %v1672 = vpop.permute.xlu0 %1671
    %1673 = vrot.lane.b32.xlu0 %v1614, 3
    %v1674 = vpop.permute.xlu0 %1673
    %v1675 = vmul.f32 %v1672, %v154
    %v1676 = vmul.f32 %v1674, %v154
    %v1677 = vadd.f32 %v1669, %v1675
    %v1678 = vadd.f32 %v1670, %v1676
    %1679 = vrot.lane.b32.xlu0 %v1613, 4
    %v1680 = vpop.permute.xlu0 %1679
    %1681 = vrot.lane.b32.xlu0 %v1614, 4
    %v1682 = vpop.permute.xlu0 %1681
    %v1683 = vmul.f32 %v1680, %v169
    %v1684 = vmul.f32 %v1682, %v169
    %v1685 = vadd.f32 %v1677, %v1683
    %v1686 = vadd.f32 %v1678, %v1684
    %1687 = vrot.lane.b32.xlu0 %v1613, 5
    %v1688 = vpop.permute.xlu0 %1687
    %1689 = vrot.lane.b32.xlu0 %v1614, 5
    %v1690 = vpop.permute.xlu0 %1689
    %v1691 = vmul.f32 %v1688, %v184
    %v1692 = vmul.f32 %v1690, %v184
    %v1693 = vadd.f32 %v1685, %v1691
    %v1694 = vadd.f32 %v1686, %v1692
    %v1695 = vrot.slane %v1693, 5
    %v1696 = vrot.slane %v1694, 5
    %v1697 = vsel %vm533, %v1695, %v1696
    %v1698 = vsel %vm533, %v1696, %v1695
    %v1699 = vmul.f32 %v1697, %v58
    %v1700 = vmul.f32 %v1698, %v59
    %v1701 = vadd.f32 %v1693, %v1699
    %v1702 = vadd.f32 %v1694, %v1700
    %v1703 = vrot.slane %v1693, 4
    %v1704 = vrot.slane %v1694, 4
    %v1705 = vsel %vm576, %v1703, %v1704
    %v1706 = vsel %vm576, %v1704, %v1703
    %v1707 = vmul.f32 %v1705, %v73
    %v1708 = vmul.f32 %v1706, %v74
    %v1709 = vadd.f32 %v1701, %v1707
    %v1710 = vadd.f32 %v1702, %v1708
    %v1711 = vrot.slane %v1693, 3
    %v1712 = vrot.slane %v1694, 3
    %v1713 = vsel %vm619, %v1711, %v1712
    %v1714 = vsel %vm619, %v1712, %v1711
    %v1715 = vmul.f32 %v1713, %v88
    %v1716 = vmul.f32 %v1714, %v89
    %v1717 = vadd.f32 %v1709, %v1715
    %v1718 = vadd.f32 %v1710, %v1716
    %v1719 = vrot.slane %v1693, 2
    %v1720 = vrot.slane %v1694, 2
    %v1721 = vsel %vm662, %v1719, %v1720
    %v1722 = vsel %vm662, %v1720, %v1719
    %v1723 = vmul.f32 %v1721, %v103
    %v1724 = vmul.f32 %v1722, %v104
    %v1725 = vadd.f32 %v1717, %v1723
    %v1726 = vadd.f32 %v1718, %v1724
    %v1727 = vrot.slane %v1693, 1
    %v1728 = vrot.slane %v1694, 1
    %v1729 = vsel %vm705, %v1727, %v1728
    %v1730 = vsel %vm705, %v1728, %v1727
    %v1731 = vmul.f32 %v1729, %v118
    %v1732 = vmul.f32 %v1730, %v119
    %v1733 = vadd.f32 %v1725, %v1731
    %v1734 = vadd.f32 %v1726, %v1732
    %v1735 = vrot.slane %v1693, 7
    %v1736 = vrot.slane %v1694, 7
    %v1737 = vsel %vm748, %v1735, %v1736
    %v1738 = vsel %vm748, %v1736, %v1735
    %v1739 = vmul.f32 %v1738, %v133
    %v1740 = vmul.f32 %v1737, %v134
    %v1741 = vadd.f32 %v1733, %v1739
    %v1742 = vadd.f32 %v1734, %v1740
    %v1743 = vrot.slane %v1693, 6
    %v1744 = vrot.slane %v1694, 6
    %v1745 = vsel %vm791, %v1743, %v1744
    %v1746 = vsel %vm791, %v1744, %v1743
    %v1747 = vmul.f32 %v1746, %v148
    %v1748 = vmul.f32 %v1745, %v149
    %v1749 = vadd.f32 %v1741, %v1747
    %v1750 = vadd.f32 %v1742, %v1748
    %v1751 = vmul.f32 %v1698, %v163
    %v1752 = vmul.f32 %v1697, %v164
    %v1753 = vadd.f32 %v1749, %v1751
    %v1754 = vadd.f32 %v1750, %v1752
    %v1755 = vmul.f32 %v1706, %v178
    %v1756 = vmul.f32 %v1705, %v179
    %v1757 = vadd.f32 %v1753, %v1755
    %v1758 = vadd.f32 %v1754, %v1756
    %v1759 = vmul.f32 %v1714, %v193
    %v1760 = vmul.f32 %v1713, %v194
    %v1761 = vadd.f32 %v1757, %v1759
    %v1762 = vadd.f32 %v1758, %v1760
    %v1763 = vrsqrt.pop %v1761
    %v1764 = vmul.f32 %v1761, %v1763
    %vm1765 = vcmp.eq.f32.partialorder %v1761, inf
    %v1766 = vsel %vm1765, %v1761, %v1764
    %vm1767 = vcmp.eq.f32.partialorder %v1761, 0.0
    %v1768 = vand.u32 %v1761, 2147483648
    %v1769 = vsel %vm1767, %v1768, %v1766
    %v1770 = vrsqrt.pop %v1762
    %v1771 = vmul.f32 %v1762, %v1770
    %vm1772 = vcmp.eq.f32.partialorder %v1762, inf
    %v1773 = vsel %vm1772, %v1762, %v1771
    %vm1774 = vcmp.eq.f32.partialorder %v1762, 0.0
    %v1775 = vand.u32 %v1762, 2147483648
    %v1776 = vsel %vm1774, %v1775, %v1773
    %v1777 = vadd.f32 %v1769, 4.440892e-16
    %v1778 = vadd.f32 %v1776, 4.440892e-16
    %v1779 = vadd.f32 %v1611, 2.220446e-16
    %v1780 = vadd.f32 %v1612, 2.220446e-16
    %v1781 = vrcp.pop %v1779
    %v1782 = vmul.f32 %v1777, %v1781
    %v1783 = vrcp.pop %v1780
    %v1784 = vmul.f32 %v1778, %v1783
    %v1785 = vmax.f32 %v1782, 2.220446e-16
    %v1786 = vmax.f32 %v1784, 2.220446e-16
    %v1787 = vmin.f32 %v1785, 1.0
    %v1788 = vmin.f32 %v1786, 1.0
    %v1789 = vmul.f32 %v1787, 1.5707964
    %v1790 = vmul.f32 %v1788, 1.5707964
    %v1791 = vand.u32 2147483647, %v1789
    %vm1792 = vcmp.le.f32.partialorder %v1791, 0.7853982
    %vm1793 = vcmp.lt.s32.totalorder %v1789, 0
    %v1794 = vand.u32 %v1789, 2139095040
    %v1795 = vshrl.u32 %v1794, 23
    %v1796 = vsub.s32 %v1795, 127
    %v1797 = vand.u32 2147483647, %v1789
    %v1798 = vand.u32 %v1797, 8388607
    %v1799 = vor.u32 %v1798, 8388608
    %v1800 = vsub.s32 0, %v1799
    %v1801 = vadd.s32 %v1796, 1
    %vm1802 = vcmp.gt.s32.totalorder %v1801, 0
    %v1803 = vsel %vm1802, %v1801, 0
    %v1804 = vshrl.u32 %v1803, 5
    %v1805 = vand.u32 %v1803, 31
    %v1806 = vsub.s32 32, %v1805
    %v1807 = vshrl.u32 683565275, %v1806
    %v1808 = vshll.u32 683565275, %v1805
    %v1809 = vshrl.u32 2475754826, %v1806
    %v1810 = vor.u32 %v1808, %v1809
    %v1811 = vshll.u32 2475754826, %v1805
    %v1812 = vshrl.u32 2131351028, %v1806
    %v1813 = vor.u32 %v1811, %v1812
    %v1814 = vshll.u32 2131351028, %v1805
    %v1815 = vshrl.u32 2102212464, %v1806
    %v1816 = vor.u32 %v1814, %v1815
    %v1817 = vshll.u32 2102212464, %v1805
    %v1818 = vshrl.u32 920167782, %v1806
    %v1819 = vor.u32 %v1817, %v1818
    %v1820 = vshll.u32 920167782, %v1805
    %v1821 = vshrl.u32 1326507024, %v1806
    %v1822 = vor.u32 %v1820, %v1821
    %vm1823 = vcmp.lt.s32.totalorder %v1804, 1
    %vm1824 = vcmp.lt.s32.totalorder %v1804, 2
    %vm1825 = vcmp.lt.s32.totalorder %v1804, 3
    %vm1826 = vcmp.lt.s32.totalorder %v1804, 4
    %v1827 = vsel %vm1823, %v1807, %v1810
    %v1828 = vsel %vm1826, %v1816, 2102212464
    %v1829 = vsel %vm1825, %v1813, %v1828
    %v1830 = vsel %vm1824, %v1827, %v1829
    %v1831 = vsel %vm1823, %v1810, %v1813
    %v1832 = vsel %vm1826, %v1819, 920167782
    %v1833 = vsel %vm1825, %v1816, %v1832
    %v1834 = vsel %vm1824, %v1831, %v1833
    %v1835 = vsel %vm1823, %v1813, %v1816
    %v1836 = vsel %vm1826, %v1822, 1326507024
    %v1837 = vsel %vm1825, %v1819, %v1836
    %v1838 = vsel %vm1824, %v1835, %v1837
    %v1839 = vshll.u32 %v1799, 8
    %v1840 = vmul.u32.u64.compose %v1839, %v1838
    %v1841 = vextract.low.u32 %v1840
    %v1842 = vextract.high.u32 %v1840
    %v1843 = vmul.u32.u64.compose %v1839, %v1834
    %v1844 = vextract.low.u32 %v1843
    %v1845 = vextract.high.u32 %v1843
    %v1846 = vmul.u32 %v1839, %v1830
    %v1847 = vadd.s32 %v1842, %v1844
    %vm1848 = vc.u32 %v1842, %v1844
    %v1849 = vadd.s32 %v1845, 1
    %v1850 = vsel %vm1848, %v1849, %v1845
    %v1851 = vadd.s32 %v1846, %v1850
    %v1852 = vadd.s32 %v1851, 536870912
    %v1853 = vshrl.u32 %v1852, 30
    %v1854 = vshll.u32 %v1853, 30
    %v1855 = vsub.s32 %v1851, %v1854
    %vm1856 = vcmp.lt.s32.totalorder %v1855, 0
    %v1857 = vsub.s32 0, %v1855
    %v1858 = vsel %vm1856, %v1857, %v1855
    %v1859 = vclz %v1858
    %v1860 = vsub.s32 %v1859, 2
    %vm1861 = vcmp.gt.s32.totalorder 0, %v1860
    %v1862 = vsel %vm1861, 0, %v1860
    %v1863 = vsub.s32 32, %v1862
    %v1864 = vshll.u32 %v1855, %v1862
    %v1865 = vshrl.u32 %v1847, %v1863
    %v1866 = vor.u32 %v1864, %v1865
    %v1867 = vsub.s32 4294967266, %v1862
    %v1868 = vadd.s32 %v1867, 127
    %v1869 = vshll.u32 %v1868, 23
    %v1870 = vor.u32 4788187, %v1869
    %v1871 = vand.u32 2147483647, %v1870
    %v1873 = vcvt.s32.f32 %v1866
    %v1874 = vmul.f32 %v1873, %v1871
    %v1875 = vxor.u32 %v1874, 2147483648
    %v1876 = vsel %vm1793, %v1875, %v1874
    %v1877 = vsub.s32 4, %v1853
    %v1878 = vsel %vm1793, %v1877, %v1853
    %v1879 = vsel %vm1792, %v1789, %v1876
    %v1880 = vsel %vm1792, 0, %v1878
    %v1881 = vcosq.f32.pop %v1879
    %v1882 = vsinq.f32.pop %v1879
    %vm1883 = vweird.f32 %v1789
    %v1884 = vadd.s32 %v1880, 3
    %v1885 = vand.u32 %v1884, 3
    %vm1886 = vcmp.lt.s32.totalorder %v1885, 2
    %vm1887 = vcmp.eq.s32.totalorder %v1885, 0
    %v1888 = vxor.u32 %v1882, 2147483648
    %v1889 = vsel %vm1887, %v1881, %v1888
    %vm1890 = vcmp.eq.s32.totalorder %v1885, 2
    %v1891 = vxor.u32 %v1881, 2147483648
    %v1892 = vsel %vm1890, %v1891, %v1882
    %v1893 = vsel %vm1886, %v1889, %v1892
    %v1894 = vsel %vm1883, nan, %v1893
    %v1895 = vand.u32 2147483647, %v1790
    %vm1896 = vcmp.le.f32.partialorder %v1895, 0.7853982
    %vm1897 = vcmp.lt.s32.totalorder %v1790, 0
    %v1898 = vand.u32 %v1790, 2139095040
    %v1899 = vshrl.u32 %v1898, 23
    %v1900 = vsub.s32 %v1899, 127
    %v1901 = vand.u32 2147483647, %v1790
    %v1902 = vand.u32 %v1901, 8388607
    %v1903 = vor.u32 %v1902, 8388608
    %v1904 = vsub.s32 0, %v1903
    %v1905 = vadd.s32 %v1900, 1
    %vm1906 = vcmp.gt.s32.totalorder %v1905, 0
    %v1907 = vsel %vm1906, %v1905, 0
    %v1908 = vshrl.u32 %v1907, 5
    %v1909 = vand.u32 %v1907, 31
    %v1910 = vsub.s32 32, %v1909
    %v1911 = vshrl.u32 683565275, %v1910
    %v1912 = vshll.u32 683565275, %v1909
    %v1913 = vshrl.u32 2475754826, %v1910
    %v1914 = vor.u32 %v1912, %v1913
    %v1915 = vshll.u32 2475754826, %v1909
    %v1916 = vshrl.u32 2131351028, %v1910
    %v1917 = vor.u32 %v1915, %v1916
    %v1918 = vshll.u32 2131351028, %v1909
    %v1919 = vshrl.u32 2102212464, %v1910
    %v1920 = vor.u32 %v1918, %v1919
    %v1921 = vshll.u32 2102212464, %v1909
    %v1922 = vshrl.u32 920167782, %v1910
    %v1923 = vor.u32 %v1921, %v1922
    %v1924 = vshll.u32 920167782, %v1909
    %v1925 = vshrl.u32 1326507024, %v1910
    %v1926 = vor.u32 %v1924, %v1925
    %vm1927 = vcmp.lt.s32.totalorder %v1908, 1
    %vm1928 = vcmp.lt.s32.totalorder %v1908, 2
    %vm1929 = vcmp.lt.s32.totalorder %v1908, 3
    %vm1930 = vcmp.lt.s32.totalorder %v1908, 4
    %v1931 = vsel %vm1927, %v1911, %v1914
    %v1932 = vsel %vm1930, %v1920, 2102212464
    %v1933 = vsel %vm1929, %v1917, %v1932
    %v1934 = vsel %vm1928, %v1931, %v1933
    %v1935 = vsel %vm1927, %v1914, %v1917
    %v1936 = vsel %vm1930, %v1923, 920167782
    %v1937 = vsel %vm1929, %v1920, %v1936
    %v1938 = vsel %vm1928, %v1935, %v1937
    %v1939 = vsel %vm1927, %v1917, %v1920
    %v1940 = vsel %vm1930, %v1926, 1326507024
    %v1941 = vsel %vm1929, %v1923, %v1940
    %v1942 = vsel %vm1928, %v1939, %v1941
    %v1943 = vshll.u32 %v1903, 8
    %v1944 = vmul.u32.u64.compose %v1943, %v1942
    %v1945 = vextract.low.u32 %v1944
    %v1946 = vextract.high.u32 %v1944
    %v1947 = vmul.u32.u64.compose %v1943, %v1938
    %v1948 = vextract.low.u32 %v1947
    %v1949 = vextract.high.u32 %v1947
    %v1950 = vmul.u32 %v1943, %v1934
    %v1951 = vadd.s32 %v1946, %v1948
    %vm1952 = vc.u32 %v1946, %v1948
    %v1953 = vadd.s32 %v1949, 1
    %v1954 = vsel %vm1952, %v1953, %v1949
    %v1955 = vadd.s32 %v1950, %v1954
    %v1956 = vadd.s32 %v1955, 536870912
    %v1957 = vshrl.u32 %v1956, 30
    %v1958 = vshll.u32 %v1957, 30
    %v1959 = vsub.s32 %v1955, %v1958
    %vm1960 = vcmp.lt.s32.totalorder %v1959, 0
    %v1961 = vsub.s32 0, %v1959
    %v1962 = vsel %vm1960, %v1961, %v1959
    %v1963 = vclz %v1962
    %v1964 = vsub.s32 %v1963, 2
    %vm1965 = vcmp.gt.s32.totalorder 0, %v1964
    %v1966 = vsel %vm1965, 0, %v1964
    %v1967 = vsub.s32 32, %v1966
    %v1968 = vshll.u32 %v1959, %v1966
    %v1969 = vshrl.u32 %v1951, %v1967
    %v1970 = vor.u32 %v1968, %v1969
    %v1971 = vsub.s32 4294967266, %v1966
    %v1972 = vadd.s32 %v1971, 127
    %v1973 = vshll.u32 %v1972, 23
    %v1974 = vor.u32 4788187, %v1973
    %v1975 = vand.u32 2147483647, %v1974
    %v1977 = vcvt.s32.f32 %v1970
    %v1978 = vmul.f32 %v1977, %v1975
    %v1979 = vxor.u32 %v1978, 2147483648
    %v1980 = vsel %vm1897, %v1979, %v1978
    %v1981 = vsub.s32 4, %v1957
    %v1982 = vsel %vm1897, %v1981, %v1957
    %v1983 = vsel %vm1896, %v1790, %v1980
    %v1984 = vsel %vm1896, 0, %v1982
    %v1985 = vcosq.f32.pop %v1983
    %v1986 = vsinq.f32.pop %v1983
    %vm1987 = vweird.f32 %v1790
    %v1988 = vadd.s32 %v1984, 3
    %v1989 = vand.u32 %v1988, 3
    %vm1990 = vcmp.lt.s32.totalorder %v1989, 2
    %vm1991 = vcmp.eq.s32.totalorder %v1989, 0
    %v1992 = vxor.u32 %v1986, 2147483648
    %v1993 = vsel %vm1991, %v1985, %v1992
    %vm1994 = vcmp.eq.s32.totalorder %v1989, 2
    %v1995 = vxor.u32 %v1985, 2147483648
    %v1996 = vsel %vm1994, %v1995, %v1986
    %v1997 = vsel %vm1990, %v1993, %v1996
    %v1998 = vsel %vm1987, nan, %v1997
    %v1999 = vand.u32 2147483647, %v1789
    %vm2000 = vcmp.le.f32.partialorder %v1999, 0.7853982
    %vm2001 = vcmp.lt.s32.totalorder %v1789, 0
    %v2002 = vand.u32 %v1789, 2139095040
    %v2003 = vshrl.u32 %v2002, 23
    %v2004 = vsub.s32 %v2003, 127
    %v2005 = vand.u32 2147483647, %v1789
    %v2006 = vand.u32 %v2005, 8388607
    %v2007 = vor.u32 %v2006, 8388608
    %v2008 = vsub.s32 0, %v2007
    %v2009 = vadd.s32 %v2004, 1
    %vm2010 = vcmp.gt.s32.totalorder %v2009, 0
    %v2011 = vsel %vm2010, %v2009, 0
    %v2012 = vshrl.u32 %v2011, 5
    %v2013 = vand.u32 %v2011, 31
    %v2014 = vsub.s32 32, %v2013
    %v2015 = vshrl.u32 683565275, %v2014
    %v2016 = vshll.u32 683565275, %v2013
    %v2017 = vshrl.u32 2475754826, %v2014
    %v2018 = vor.u32 %v2016, %v2017
    %v2019 = vshll.u32 2475754826, %v2013
    %v2020 = vshrl.u32 2131351028, %v2014
    %v2021 = vor.u32 %v2019, %v2020
    %v2022 = vshll.u32 2131351028, %v2013
    %v2023 = vshrl.u32 2102212464, %v2014
    %v2024 = vor.u32 %v2022, %v2023
    %v2025 = vshll.u32 2102212464, %v2013
    %v2026 = vshrl.u32 920167782, %v2014
    %v2027 = vor.u32 %v2025, %v2026
    %v2028 = vshll.u32 920167782, %v2013
    %v2029 = vshrl.u32 1326507024, %v2014
    %v2030 = vor.u32 %v2028, %v2029
    %vm2031 = vcmp.lt.s32.totalorder %v2012, 1
    %vm2032 = vcmp.lt.s32.totalorder %v2012, 2
    %vm2033 = vcmp.lt.s32.totalorder %v2012, 3
    %vm2034 = vcmp.lt.s32.totalorder %v2012, 4
    %v2035 = vsel %vm2031, %v2015, %v2018
    %v2036 = vsel %vm2034, %v2024, 2102212464
    %v2037 = vsel %vm2033, %v2021, %v2036
    %v2038 = vsel %vm2032, %v2035, %v2037
    %v2039 = vsel %vm2031, %v2018, %v2021
    %v2040 = vsel %vm2034, %v2027, 920167782
    %v2041 = vsel %vm2033, %v2024, %v2040
    %v2042 = vsel %vm2032, %v2039, %v2041
    %v2043 = vsel %vm2031, %v2021, %v2024
    %v2044 = vsel %vm2034, %v2030, 1326507024
    %v2045 = vsel %vm2033, %v2027, %v2044
    %v2046 = vsel %vm2032, %v2043, %v2045
    %v2047 = vshll.u32 %v2007, 8
    %v2048 = vmul.u32.u64.compose %v2047, %v2046
    %v2049 = vextract.low.u32 %v2048
    %v2050 = vextract.high.u32 %v2048
    %v2051 = vmul.u32.u64.compose %v2047, %v2042
    %v2052 = vextract.low.u32 %v2051
    %v2053 = vextract.high.u32 %v2051
    %v2054 = vmul.u32 %v2047, %v2038
    %v2055 = vadd.s32 %v2050, %v2052
    %vm2056 = vc.u32 %v2050, %v2052
    %v2057 = vadd.s32 %v2053, 1
    %v2058 = vsel %vm2056, %v2057, %v2053
    %v2059 = vadd.s32 %v2054, %v2058
    %v2060 = vadd.s32 %v2059, 536870912
    %v2061 = vshrl.u32 %v2060, 30
    %v2062 = vshll.u32 %v2061, 30
    %v2063 = vsub.s32 %v2059, %v2062
    %vm2064 = vcmp.lt.s32.totalorder %v2063, 0
    %v2065 = vsub.s32 0, %v2063
    %v2066 = vsel %vm2064, %v2065, %v2063
    %v2067 = vclz %v2066
    %v2068 = vsub.s32 %v2067, 2
    %vm2069 = vcmp.gt.s32.totalorder 0, %v2068
    %v2070 = vsel %vm2069, 0, %v2068
    %v2071 = vsub.s32 32, %v2070
    %v2072 = vshll.u32 %v2063, %v2070
    %v2073 = vshrl.u32 %v2055, %v2071
    %v2074 = vor.u32 %v2072, %v2073
    %v2075 = vsub.s32 4294967266, %v2070
    %v2076 = vadd.s32 %v2075, 127
    %v2077 = vshll.u32 %v2076, 23
    %v2078 = vor.u32 4788187, %v2077
    %v2079 = vand.u32 2147483647, %v2078
    %v2081 = vcvt.s32.f32 %v2074
    %v2082 = vmul.f32 %v2081, %v2079
    %v2083 = vxor.u32 %v2082, 2147483648
    %v2084 = vsel %vm2001, %v2083, %v2082
    %v2085 = vsub.s32 4, %v2061
    %v2086 = vsel %vm2001, %v2085, %v2061
    %v2087 = vsel %vm2000, %v1789, %v2084
    %v2088 = vsel %vm2000, 0, %v2086
    %v2089 = vcosq.f32.pop %v2087
    %v2090 = vsinq.f32.pop %v2087
    %vm2091 = vweird.f32 %v1789
    %v2092 = vand.u32 %v2088, 3
    %vm2093 = vcmp.lt.s32.totalorder %v2092, 2
    %vm2094 = vcmp.eq.s32.totalorder %v2092, 0
    %v2095 = vxor.u32 %v2090, 2147483648
    %v2096 = vsel %vm2094, %v2089, %v2095
    %vm2097 = vcmp.eq.s32.totalorder %v2092, 2
    %v2098 = vxor.u32 %v2089, 2147483648
    %v2099 = vsel %vm2097, %v2098, %v2090
    %v2100 = vsel %vm2093, %v2096, %v2099
    %v2101 = vsel %vm2091, nan, %v2100
    %v2102 = vand.u32 2147483647, %v1790
    %vm2103 = vcmp.le.f32.partialorder %v2102, 0.7853982
    %vm2104 = vcmp.lt.s32.totalorder %v1790, 0
    %v2105 = vand.u32 %v1790, 2139095040
    %v2106 = vshrl.u32 %v2105, 23
    %v2107 = vsub.s32 %v2106, 127
    %v2108 = vand.u32 2147483647, %v1790
    %v2109 = vand.u32 %v2108, 8388607
    %v2110 = vor.u32 %v2109, 8388608
    %v2111 = vsub.s32 0, %v2110
    %v2112 = vadd.s32 %v2107, 1
    %vm2113 = vcmp.gt.s32.totalorder %v2112, 0
    %v2114 = vsel %vm2113, %v2112, 0
    %v2115 = vshrl.u32 %v2114, 5
    %v2116 = vand.u32 %v2114, 31
    %v2117 = vsub.s32 32, %v2116
    %v2118 = vshrl.u32 683565275, %v2117
    %v2119 = vshll.u32 683565275, %v2116
    %v2120 = vshrl.u32 2475754826, %v2117
    %v2121 = vor.u32 %v2119, %v2120
    %v2122 = vshll.u32 2475754826, %v2116
    %v2123 = vshrl.u32 2131351028, %v2117
    %v2124 = vor.u32 %v2122, %v2123
    %v2125 = vshll.u32 2131351028, %v2116
    %v2126 = vshrl.u32 2102212464, %v2117
    %v2127 = vor.u32 %v2125, %v2126
    %v2128 = vshll.u32 2102212464, %v2116
    %v2129 = vshrl.u32 920167782, %v2117
    %v2130 = vor.u32 %v2128, %v2129
    %v2131 = vshll.u32 920167782, %v2116
    %v2132 = vshrl.u32 1326507024, %v2117
    %v2133 = vor.u32 %v2131, %v2132
    %vm2134 = vcmp.lt.s32.totalorder %v2115, 1
    %vm2135 = vcmp.lt.s32.totalorder %v2115, 2
    %vm2136 = vcmp.lt.s32.totalorder %v2115, 3
    %vm2137 = vcmp.lt.s32.totalorder %v2115, 4
    %v2138 = vsel %vm2134, %v2118, %v2121
    %v2139 = vsel %vm2137, %v2127, 2102212464
    %v2140 = vsel %vm2136, %v2124, %v2139
    %v2141 = vsel %vm2135, %v2138, %v2140
    %v2142 = vsel %vm2134, %v2121, %v2124
    %v2143 = vsel %vm2137, %v2130, 920167782
    %v2144 = vsel %vm2136, %v2127, %v2143
    %v2145 = vsel %vm2135, %v2142, %v2144
    %v2146 = vsel %vm2134, %v2124, %v2127
    %v2147 = vsel %vm2137, %v2133, 1326507024
    %v2148 = vsel %vm2136, %v2130, %v2147
    %v2149 = vsel %vm2135, %v2146, %v2148
    %v2150 = vshll.u32 %v2110, 8
    %v2151 = vmul.u32.u64.compose %v2150, %v2149
    %v2152 = vextract.low.u32 %v2151
    %v2153 = vextract.high.u32 %v2151
    %v2154 = vmul.u32.u64.compose %v2150, %v2145
    %v2155 = vextract.low.u32 %v2154
    %v2156 = vextract.high.u32 %v2154
    %v2157 = vmul.u32 %v2150, %v2141
    %v2158 = vadd.s32 %v2153, %v2155
    %vm2159 = vc.u32 %v2153, %v2155
    %v2160 = vadd.s32 %v2156, 1
    %v2161 = vsel %vm2159, %v2160, %v2156
    %v2162 = vadd.s32 %v2157, %v2161
    %v2163 = vadd.s32 %v2162, 536870912
    %v2164 = vshrl.u32 %v2163, 30
    %v2165 = vshll.u32 %v2164, 30
    %v2166 = vsub.s32 %v2162, %v2165
    %vm2167 = vcmp.lt.s32.totalorder %v2166, 0
    %v2168 = vsub.s32 0, %v2166
    %v2169 = vsel %vm2167, %v2168, %v2166
    %v2170 = vclz %v2169
    %v2171 = vsub.s32 %v2170, 2
    %vm2172 = vcmp.gt.s32.totalorder 0, %v2171
    %v2173 = vsel %vm2172, 0, %v2171
    %v2174 = vsub.s32 32, %v2173
    %v2175 = vshll.u32 %v2166, %v2173
    %v2176 = vshrl.u32 %v2158, %v2174
    %v2177 = vor.u32 %v2175, %v2176
    %v2178 = vsub.s32 4294967266, %v2173
    %v2179 = vadd.s32 %v2178, 127
    %v2180 = vshll.u32 %v2179, 23
    %v2181 = vor.u32 4788187, %v2180
    %v2182 = vand.u32 2147483647, %v2181
    %v2184 = vcvt.s32.f32 %v2177
    %v2185 = vmul.f32 %v2184, %v2182
    %v2186 = vxor.u32 %v2185, 2147483648
    %v2187 = vsel %vm2104, %v2186, %v2185
    %v2188 = vsub.s32 4, %v2164
    %v2189 = vsel %vm2104, %v2188, %v2164
    %v2190 = vsel %vm2103, %v1790, %v2187
    %v2191 = vsel %vm2103, 0, %v2189
    %v2192 = vcosq.f32.pop %v2190
    %v2193 = vsinq.f32.pop %v2190
    %vm2194 = vweird.f32 %v1790
    %v2195 = vand.u32 %v2191, 3
    %vm2196 = vcmp.lt.s32.totalorder %v2195, 2
    %vm2197 = vcmp.eq.s32.totalorder %v2195, 0
    %v2198 = vxor.u32 %v2193, 2147483648
    %v2199 = vsel %vm2197, %v2192, %v2198
    %vm2200 = vcmp.eq.s32.totalorder %v2195, 2
    %v2201 = vxor.u32 %v2192, 2147483648
    %v2202 = vsel %vm2200, %v2201, %v2193
    %v2203 = vsel %vm2196, %v2199, %v2202
    %v2204 = vsel %vm2194, nan, %v2203
    %v2205 = vrcp.pop %v2101
    %v2206 = vmul.f32 %v1894, %v2205
    %v2207 = vrcp.pop %v2204
    %v2208 = vmul.f32 %v1998, %v2207
    %v2209 = vmin.f32 %v2206, 10.0
    %v2210 = vmin.f32 %v2208, 10.0
    %v2211 = vlog2.pop %v1587
    %v2212 = vmul.f32 %v2211, 0.6931472
    %v2213 = vlog2.pop %v1588
    %v2214 = vmul.f32 %v2213, 0.6931472
    %v2215 = vmul.f32 %v2209, %v2212
    %v2216 = vmul.f32 %v2210, %v2214
    %v2217 = vmul.f32 %v2215, 1.442695
    %v2218 = vpow.pop %v2217
    %v2219 = vmul.f32 %v2216, 1.442695
    %v2220 = vpow.pop %v2219
    %v2221 = vadd.f32 %v2218, 2.220446e-16
    %v2222 = vadd.f32 %v2220, 2.220446e-16
    %v2223 = vrcp.pop %v1587
    %v2224 = vrcp.pop %v1588
    %v2225 = vmul.f32 %v923, %v2223
    %v2226 = vmul.f32 %v924, %v2224
    %v2227 = vmul.f32 %v2221, %v2225
    %v2228 = vmul.f32 %v2222, %v2226
    %v2229 = vlog2.pop %v1589
    %v2230 = vmul.f32 %v2229, 0.6931472
    %v2231 = vlog2.pop %v1590
    %v2232 = vmul.f32 %v2231, 0.6931472
    %v2233 = vmul.f32 %v2209, %v2230
    %v2234 = vmul.f32 %v2210, %v2232
    %v2235 = vmul.f32 %v2233, 1.442695
    %v2236 = vpow.pop %v2235
    %v2237 = vmul.f32 %v2234, 1.442695
    %v2238 = vpow.pop %v2237
    %v2239 = vadd.f32 %v2236, 2.220446e-16
    %v2240 = vadd.f32 %v2238, 2.220446e-16
    %v2241 = vrcp.pop %v1589
    %v2242 = vrcp.pop %v1590
    %v2243 = vmul.f32 %v925, %v2241
    %v2244 = vmul.f32 %v926, %v2242
    %v2245 = vmul.f32 %v2239, %v2243
    %v2246 = vmul.f32 %v2240, %v2244
    %v2247 = vadd.f32 %v2227, %v2245
    %v2248 = vadd.f32 %v2228, %v2246
    %v2249 = vadd.f32 %v2221, %v2239
    %v2250 = vadd.f32 %v2222, %v2240
    %v2251 = vlog2.pop %v1591
    %v2252 = vmul.f32 %v2251, 0.6931472
    %v2253 = vlog2.pop %v1592
    %v2254 = vmul.f32 %v2253, 0.6931472
    %v2255 = vmul.f32 %v2209, %v2252
    %v2256 = vmul.f32 %v2210, %v2254
    %v2257 = vmul.f32 %v2255, 1.442695
    %v2258 = vpow.pop %v2257
    %v2259 = vmul.f32 %v2256, 1.442695
    %v2260 = vpow.pop %v2259
    %v2261 = vadd.f32 %v2258, 2.220446e-16
    %v2262 = vadd.f32 %v2260, 2.220446e-16
    %v2263 = vrcp.pop %v1591
    %v2264 = vrcp.pop %v1592
    %v2265 = vmul.f32 %v927, %v2263
    %v2266 = vmul.f32 %v928, %v2264
    %v2267 = vmul.f32 %v2261, %v2265
    %v2268 = vmul.f32 %v2262, %v2266
    %v2269 = vadd.f32 %v2247, %v2267
    %v2270 = vadd.f32 %v2248, %v2268
    %v2271 = vadd.f32 %v2249, %v2261
    %v2272 = vadd.f32 %v2250, %v2262
    %v2273 = vlog2.pop %v1593
    %v2274 = vmul.f32 %v2273, 0.6931472
    %v2275 = vlog2.pop %v1594
    %v2276 = vmul.f32 %v2275, 0.6931472
    %v2277 = vmul.f32 %v2209, %v2274
    %v2278 = vmul.f32 %v2210, %v2276
    %v2279 = vmul.f32 %v2277, 1.442695
    %v2280 = vpow.pop %v2279
    %v2281 = vmul.f32 %v2278, 1.442695
    %v2282 = vpow.pop %v2281
    %v2283 = vadd.f32 %v2280, 2.220446e-16
    %v2284 = vadd.f32 %v2282, 2.220446e-16
    %v2285 = vrcp.pop %v1593
    %v2286 = vrcp.pop %v1594
    %v2287 = vmul.f32 %v929, %v2285
    %v2288 = vmul.f32 %v930, %v2286
    %v2289 = vmul.f32 %v2283, %v2287
    %v2290 = vmul.f32 %v2284, %v2288
    %v2291 = vadd.f32 %v2269, %v2289
    %v2292 = vadd.f32 %v2270, %v2290
    %v2293 = vadd.f32 %v2271, %v2283
    %v2294 = vadd.f32 %v2272, %v2284
    %v2295 = vrcp.pop %v2293
    %v2296 = vrcp.pop %v2294
    %v2297 = vmul.f32 %v2291, %v2295
    %v2298 = vmul.f32 %v2292, %v2296
    %v2299 = vmul.f32 %v2297, %v2297
    %v2300 = vmul.f32 %v2298, %v2298
    %2301 = vrot.lane.b32.xlu0 %v2299, 123
    %v2302 = vpop.permute.xlu0 %2301
    %2303 = vrot.lane.b32.xlu0 %v2300, 123
    %v2304 = vpop.permute.xlu0 %2303
    %v2305 = vmul.f32 %v2302, %v49
    %v2306 = vmul.f32 %v2304, %v49
    %v2307 = vadd.f32 %v2299, %v2305
    %v2308 = vadd.f32 %v2300, %v2306
    %2309 = vrot.lane.b32.xlu0 %v2299, 124
    %v2310 = vpop.permute.xlu0 %2309
    %2311 = vrot.lane.b32.xlu0 %v2300, 124
    %v2312 = vpop.permute.xlu0 %2311
    %v2313 = vmul.f32 %v2310, %v64
    %v2314 = vmul.f32 %v2312, %v64
    %v2315 = vadd.f32 %v2307, %v2313
    %v2316 = vadd.f32 %v2308, %v2314
    %2317 = vrot.lane.b32.xlu0 %v2299, 125
    %v2318 = vpop.permute.xlu0 %2317
    %2319 = vrot.lane.b32.xlu0 %v2300, 125
    %v2320 = vpop.permute.xlu0 %2319
    %v2321 = vmul.f32 %v2318, %v79
    %v2322 = vmul.f32 %v2320, %v79
    %v2323 = vadd.f32 %v2315, %v2321
    %v2324 = vadd.f32 %v2316, %v2322
    %2325 = vrot.lane.b32.xlu0 %v2299, 126
    %v2326 = vpop.permute.xlu0 %2325
    %2327 = vrot.lane.b32.xlu0 %v2300, 126
    %v2328 = vpop.permute.xlu0 %2327
    %v2329 = vmul.f32 %v2326, %v94
    %v2330 = vmul.f32 %v2328, %v94
    %v2331 = vadd.f32 %v2323, %v2329
    %v2332 = vadd.f32 %v2324, %v2330
    %2333 = vrot.lane.b32.xlu0 %v2299, 127
    %v2334 = vpop.permute.xlu0 %2333
    %2335 = vrot.lane.b32.xlu0 %v2300, 127
    %v2336 = vpop.permute.xlu0 %2335
    %v2337 = vmul.f32 %v2334, %v109
    %v2338 = vmul.f32 %v2336, %v109
    %v2339 = vadd.f32 %v2331, %v2337
    %v2340 = vadd.f32 %v2332, %v2338
    %2341 = vrot.lane.b32.xlu0 %v2299, 1
    %v2342 = vpop.permute.xlu0 %2341
    %2343 = vrot.lane.b32.xlu0 %v2300, 1
    %v2344 = vpop.permute.xlu0 %2343
    %v2345 = vmul.f32 %v2342, %v124
    %v2346 = vmul.f32 %v2344, %v124
    %v2347 = vadd.f32 %v2339, %v2345
    %v2348 = vadd.f32 %v2340, %v2346
    %2349 = vrot.lane.b32.xlu0 %v2299, 2
    %v2350 = vpop.permute.xlu0 %2349
    %2351 = vrot.lane.b32.xlu0 %v2300, 2
    %v2352 = vpop.permute.xlu0 %2351
    %v2353 = vmul.f32 %v2350, %v139
    %v2354 = vmul.f32 %v2352, %v139
    %v2355 = vadd.f32 %v2347, %v2353
    %v2356 = vadd.f32 %v2348, %v2354
    %2357 = vrot.lane.b32.xlu0 %v2299, 3
    %v2358 = vpop.permute.xlu0 %2357
    %2359 = vrot.lane.b32.xlu0 %v2300, 3
    %v2360 = vpop.permute.xlu0 %2359
    %v2361 = vmul.f32 %v2358, %v154
    %v2362 = vmul.f32 %v2360, %v154
    %v2363 = vadd.f32 %v2355, %v2361
    %v2364 = vadd.f32 %v2356, %v2362
    %2365 = vrot.lane.b32.xlu0 %v2299, 4
    %v2366 = vpop.permute.xlu0 %2365
    %2367 = vrot.lane.b32.xlu0 %v2300, 4
    %v2368 = vpop.permute.xlu0 %2367
    %v2369 = vmul.f32 %v2366, %v169
    %v2370 = vmul.f32 %v2368, %v169
    %v2371 = vadd.f32 %v2363, %v2369
    %v2372 = vadd.f32 %v2364, %v2370
    %2373 = vrot.lane.b32.xlu0 %v2299, 5
    %v2374 = vpop.permute.xlu0 %2373
    %2375 = vrot.lane.b32.xlu0 %v2300, 5
    %v2376 = vpop.permute.xlu0 %2375
    %v2377 = vmul.f32 %v2374, %v184
    %v2378 = vmul.f32 %v2376, %v184
    %v2379 = vadd.f32 %v2371, %v2377
    %v2380 = vadd.f32 %v2372, %v2378
    %v2381 = vrot.slane %v2379, 5
    %v2382 = vrot.slane %v2380, 5
    %v2383 = vsel %vm533, %v2381, %v2382
    %v2384 = vsel %vm533, %v2382, %v2381
    %v2385 = vmul.f32 %v2383, %v58
    %v2386 = vmul.f32 %v2384, %v59
    %v2387 = vadd.f32 %v2379, %v2385
    %v2388 = vadd.f32 %v2380, %v2386
    %v2389 = vrot.slane %v2379, 4
    %v2390 = vrot.slane %v2380, 4
    %v2391 = vsel %vm576, %v2389, %v2390
    %v2392 = vsel %vm576, %v2390, %v2389
    %v2393 = vmul.f32 %v2391, %v73
    %v2394 = vmul.f32 %v2392, %v74
    %v2395 = vadd.f32 %v2387, %v2393
    %v2396 = vadd.f32 %v2388, %v2394
    %v2397 = vrot.slane %v2379, 3
    %v2398 = vrot.slane %v2380, 3
    %v2399 = vsel %vm619, %v2397, %v2398
    %v2400 = vsel %vm619, %v2398, %v2397
    %v2401 = vmul.f32 %v2399, %v88
    %v2402 = vmul.f32 %v2400, %v89
    %v2403 = vadd.f32 %v2395, %v2401
    %v2404 = vadd.f32 %v2396, %v2402
    %v2405 = vrot.slane %v2379, 2
    %v2406 = vrot.slane %v2380, 2
    %v2407 = vsel %vm662, %v2405, %v2406
    %v2408 = vsel %vm662, %v2406, %v2405
    %v2409 = vmul.f32 %v2407, %v103
    %v2410 = vmul.f32 %v2408, %v104
    %v2411 = vadd.f32 %v2403, %v2409
    %v2412 = vadd.f32 %v2404, %v2410
    %v2413 = vrot.slane %v2379, 1
    %v2414 = vrot.slane %v2380, 1
    %v2415 = vsel %vm705, %v2413, %v2414
    %v2416 = vsel %vm705, %v2414, %v2413
    %v2417 = vmul.f32 %v2415, %v118
    %v2418 = vmul.f32 %v2416, %v119
    %v2419 = vadd.f32 %v2411, %v2417
    %v2420 = vadd.f32 %v2412, %v2418
    %v2421 = vrot.slane %v2379, 7
    %v2422 = vrot.slane %v2380, 7
    %v2423 = vsel %vm748, %v2421, %v2422
    %v2424 = vsel %vm748, %v2422, %v2421
    %v2425 = vmul.f32 %v2424, %v133
    %v2426 = vmul.f32 %v2423, %v134
    %v2427 = vadd.f32 %v2419, %v2425
    %v2428 = vadd.f32 %v2420, %v2426
    %v2429 = vrot.slane %v2379, 6
    %v2430 = vrot.slane %v2380, 6
    %v2431 = vsel %vm791, %v2429, %v2430
    %v2432 = vsel %vm791, %v2430, %v2429
    %v2433 = vmul.f32 %v2432, %v148
    %v2434 = vmul.f32 %v2431, %v149
    %v2435 = vadd.f32 %v2427, %v2433
    %v2436 = vadd.f32 %v2428, %v2434
    %v2437 = vmul.f32 %v2384, %v163
    %v2438 = vmul.f32 %v2383, %v164
    %v2439 = vadd.f32 %v2435, %v2437
    %v2440 = vadd.f32 %v2436, %v2438
    %v2441 = vmul.f32 %v2392, %v178
    %v2442 = vmul.f32 %v2391, %v179
    %v2443 = vadd.f32 %v2439, %v2441
    %v2444 = vadd.f32 %v2440, %v2442
    %v2445 = vmul.f32 %v2400, %v193
    %v2446 = vmul.f32 %v2399, %v194
    %v2447 = vadd.f32 %v2443, %v2445
    %v2448 = vadd.f32 %v2444, %v2446
    %v2449 = vadd.f32 %v2447, 2.220446e-16
    %v2450 = vadd.f32 %v2448, 2.220446e-16
    %v2451 = vrsqrt.pop %v2449
    %v2452 = vrsqrt.pop %v2450
    %v2453 = vmul.f32 %v2297, %v2451
    %v2454 = vmul.f32 %v2298, %v2452
    %v2455 = vmul.f32 %v1607, %v2453
    %v2456 = vmul.f32 %v1608, %v2454
    %v2457 = vsub.s32 %v43, %v41
    %v2458 = vsub.s32 %v44, %v41
    %vm2459 = vcmp.eq.s32.totalorder %v2457, 4294967291
    %vm2460 = vcmp.eq.s32.totalorder %v2458, 4294967291
    %v2461 = vsel %vm2459, 0.0010283801, 0.0
    %v2462 = vsel %vm2460, 0.0010283801, 0.0
    %vm2463 = vcmp.eq.s32.totalorder %v2457, 4294967292
    %vm2464 = vcmp.eq.s32.totalorder %v2458, 4294967292
    %v2465 = vsel %vm2463, 0.007598758, %v2461
    %v2466 = vsel %vm2464, 0.007598758, %v2462
    %vm2467 = vcmp.eq.s32.totalorder %v2457, 4294967293
    %vm2468 = vcmp.eq.s32.totalorder %v2458, 4294967293
    %v2469 = vsel %vm2467, 0.036000773, %v2465
    %v2470 = vsel %vm2468, 0.036000773, %v2466
    %vm2471 = vcmp.eq.s32.totalorder %v2457, 4294967294
    %vm2472 = vcmp.eq.s32.totalorder %v2458, 4294967294
    %v2473 = vsel %vm2471, 0.10936069, %v2469
    %v2474 = vsel %vm2472, 0.10936069, %v2470
    %vm2475 = vcmp.eq.s32.totalorder %v2457, 4294967295
    %vm2476 = vcmp.eq.s32.totalorder %v2458, 4294967295
    %v2477 = vsel %vm2475, 0.21300554, %v2473
    %v2478 = vsel %vm2476, 0.21300554, %v2474
    %vm2479 = vcmp.eq.s32.totalorder %v2457, 0
    %vm2480 = vcmp.eq.s32.totalorder %v2458, 0
    %v2481 = vsel %vm2479, 0.26601171, %v2477
    %v2482 = vsel %vm2480, 0.26601171, %v2478
    %vm2483 = vcmp.eq.s32.totalorder %v2457, 1
    %vm2484 = vcmp.eq.s32.totalorder %v2458, 1
    %v2485 = vsel %vm2483, 0.21300554, %v2481
    %v2486 = vsel %vm2484, 0.21300554, %v2482
    %vm2487 = vcmp.eq.s32.totalorder %v2457, 2
    %vm2488 = vcmp.eq.s32.totalorder %v2458, 2
    %v2489 = vsel %vm2487, 0.10936069, %v2485
    %v2490 = vsel %vm2488, 0.10936069, %v2486
    %vm2491 = vcmp.eq.s32.totalorder %v2457, 3
    %vm2492 = vcmp.eq.s32.totalorder %v2458, 3
    %v2493 = vsel %vm2491, 0.036000773, %v2489
    %v2494 = vsel %vm2492, 0.036000773, %v2490
    %vm2495 = vcmp.eq.s32.totalorder %v2457, 4
    %vm2496 = vcmp.eq.s32.totalorder %v2458, 4
    %v2497 = vsel %vm2495, 0.007598758, %v2493
    %v2498 = vsel %vm2496, 0.007598758, %v2494
    %vm2499 = vcmp.eq.s32.totalorder %v2457, 5
    %vm2500 = vcmp.eq.s32.totalorder %v2458, 5
    %v2501 = vsel %vm2499, 0.0010283801, %v2497
    %v2502 = vsel %vm2500, 0.0010283801, %v2498
    %v2503 = vadd.s32 %v43, 16
    %v2504 = vadd.s32 %v43, 24
    %v2505 = vadd.s32 %v43, 32
    %v2506 = vadd.s32 %v43, 40
    %v2507 = vadd.s32 %v43, 48
    %v2508 = vadd.s32 %v43, 56
    %v2509 = vadd.s32 %v43, 64
    %v2510 = vadd.s32 %v43, 72
    %v2511 = vadd.s32 %v43, 80
    %v2512 = vadd.s32 %v43, 88
    %v2513 = vadd.s32 %v43, 96
    %v2514 = vadd.s32 %v43, 104
    %v2515 = vadd.s32 %v43, 112
    %v2516 = vadd.s32 %v43, 120
    %v2517 = vsub.s32 %v2503, %v41
    %v2518 = vsub.s32 %v2504, %v41
    %v2519 = vsub.s32 %v2505, %v41
    %v2520 = vsub.s32 %v2506, %v41
    %v2521 = vsub.s32 %v2507, %v41
    %v2522 = vsub.s32 %v2508, %v41
    %v2523 = vsub.s32 %v2509, %v41
    %v2524 = vsub.s32 %v2510, %v41
    %v2525 = vsub.s32 %v2511, %v41
    %v2526 = vsub.s32 %v2512, %v41
    %v2527 = vsub.s32 %v2513, %v41
    %v2528 = vsub.s32 %v2514, %v41
    %v2529 = vsub.s32 %v2515, %v41
    %v2530 = vsub.s32 %v2516, %v41
    %vm2531 = vcmp.eq.s32.totalorder %v2517, 4294967291
    %vm2532 = vcmp.eq.s32.totalorder %v2518, 4294967291
    %vm2533 = vcmp.eq.s32.totalorder %v2519, 4294967291
    %vm2534 = vcmp.eq.s32.totalorder %v2520, 4294967291
    %vm2535 = vcmp.eq.s32.totalorder %v2521, 4294967291
    %vm2536 = vcmp.eq.s32.totalorder %v2522, 4294967291
    %vm2537 = vcmp.eq.s32.totalorder %v2523, 4294967291
    %vm2538 = vcmp.eq.s32.totalorder %v2524, 4294967291
    %vm2539 = vcmp.eq.s32.totalorder %v2525, 4294967291
    %vm2540 = vcmp.eq.s32.totalorder %v2526, 4294967291
    %vm2541 = vcmp.eq.s32.totalorder %v2527, 4294967291
    %vm2542 = vcmp.eq.s32.totalorder %v2528, 4294967291
    %vm2543 = vcmp.eq.s32.totalorder %v2529, 4294967291
    %vm2544 = vcmp.eq.s32.totalorder %v2530, 4294967291
    %v2545 = vsel %vm2531, 0.0010283801, 0.0
    %v2546 = vsel %vm2532, 0.0010283801, 0.0
    %v2547 = vsel %vm2533, 0.0010283801, 0.0
    %v2548 = vsel %vm2534, 0.0010283801, 0.0
    %v2549 = vsel %vm2535, 0.0010283801, 0.0
    %v2550 = vsel %vm2536, 0.0010283801, 0.0
    %v2551 = vsel %vm2537, 0.0010283801, 0.0
    %v2552 = vsel %vm2538, 0.0010283801, 0.0
    %v2553 = vsel %vm2539, 0.0010283801, 0.0
    %v2554 = vsel %vm2540, 0.0010283801, 0.0
    %v2555 = vsel %vm2541, 0.0010283801, 0.0
    %v2556 = vsel %vm2542, 0.0010283801, 0.0
    %v2557 = vsel %vm2543, 0.0010283801, 0.0
    %v2558 = vsel %vm2544, 0.0010283801, 0.0
    %vm2559 = vcmp.eq.s32.totalorder %v2517, 4294967292
    %vm2560 = vcmp.eq.s32.totalorder %v2518, 4294967292
    %vm2561 = vcmp.eq.s32.totalorder %v2519, 4294967292
    %vm2562 = vcmp.eq.s32.totalorder %v2520, 4294967292
    %vm2563 = vcmp.eq.s32.totalorder %v2521, 4294967292
    %vm2564 = vcmp.eq.s32.totalorder %v2522, 4294967292
    %vm2565 = vcmp.eq.s32.totalorder %v2523, 4294967292
    %vm2566 = vcmp.eq.s32.totalorder %v2524, 4294967292
    %vm2567 = vcmp.eq.s32.totalorder %v2525, 4294967292
    %vm2568 = vcmp.eq.s32.totalorder %v2526, 4294967292
    %vm2569 = vcmp.eq.s32.totalorder %v2527, 4294967292
    %vm2570 = vcmp.eq.s32.totalorder %v2528, 4294967292
    %vm2571 = vcmp.eq.s32.totalorder %v2529, 4294967292
    %vm2572 = vcmp.eq.s32.totalorder %v2530, 4294967292
    %v2573 = vsel %vm2559, 0.007598758, %v2545
    %v2574 = vsel %vm2560, 0.007598758, %v2546
    %v2575 = vsel %vm2561, 0.007598758, %v2547
    %v2576 = vsel %vm2562, 0.007598758, %v2548
    %v2577 = vsel %vm2563, 0.007598758, %v2549
    %v2578 = vsel %vm2564, 0.007598758, %v2550
    %v2579 = vsel %vm2565, 0.007598758, %v2551
    %v2580 = vsel %vm2566, 0.007598758, %v2552
    %v2581 = vsel %vm2567, 0.007598758, %v2553
    %v2582 = vsel %vm2568, 0.007598758, %v2554
    %v2583 = vsel %vm2569, 0.007598758, %v2555
    %v2584 = vsel %vm2570, 0.007598758, %v2556
    %v2585 = vsel %vm2571, 0.007598758, %v2557
    %v2586 = vsel %vm2572, 0.007598758, %v2558
    %vm2587 = vcmp.eq.s32.totalorder %v2517, 4294967293
    %vm2588 = vcmp.eq.s32.totalorder %v2518, 4294967293
    %vm2589 = vcmp.eq.s32.totalorder %v2519, 4294967293
    %vm2590 = vcmp.eq.s32.totalorder %v2520, 4294967293
    %vm2591 = vcmp.eq.s32.totalorder %v2521, 4294967293
    %vm2592 = vcmp.eq.s32.totalorder %v2522, 4294967293
    %vm2593 = vcmp.eq.s32.totalorder %v2523, 4294967293
    %vm2594 = vcmp.eq.s32.totalorder %v2524, 4294967293
    %vm2595 = vcmp.eq.s32.totalorder %v2525, 4294967293
    %vm2596 = vcmp.eq.s32.totalorder %v2526, 4294967293
    %vm2597 = vcmp.eq.s32.totalorder %v2527, 4294967293
    %vm2598 = vcmp.eq.s32.totalorder %v2528, 4294967293
    %vm2599 = vcmp.eq.s32.totalorder %v2529, 4294967293
    %vm2600 = vcmp.eq.s32.totalorder %v2530, 4294967293
    %v2601 = vsel %vm2587, 0.036000773, %v2573
    %v2602 = vsel %vm2588, 0.036000773, %v2574
    %v2603 = vsel %vm2589, 0.036000773, %v2575
    %v2604 = vsel %vm2590, 0.036000773, %v2576
    %v2605 = vsel %vm2591, 0.036000773, %v2577
    %v2606 = vsel %vm2592, 0.036000773, %v2578
    %v2607 = vsel %vm2593, 0.036000773, %v2579
    %v2608 = vsel %vm2594, 0.036000773, %v2580
    %v2609 = vsel %vm2595, 0.036000773, %v2581
    %v2610 = vsel %vm2596, 0.036000773, %v2582
    %v2611 = vsel %vm2597, 0.036000773, %v2583
    %v2612 = vsel %vm2598, 0.036000773, %v2584
    %v2613 = vsel %vm2599, 0.036000773, %v2585
    %v2614 = vsel %vm2600, 0.036000773, %v2586
    %vm2615 = vcmp.eq.s32.totalorder %v2517, 4294967294
    %vm2616 = vcmp.eq.s32.totalorder %v2518, 4294967294
    %vm2617 = vcmp.eq.s32.totalorder %v2519, 4294967294
    %vm2618 = vcmp.eq.s32.totalorder %v2520, 4294967294
    %vm2619 = vcmp.eq.s32.totalorder %v2521, 4294967294
    %vm2620 = vcmp.eq.s32.totalorder %v2522, 4294967294
    %vm2621 = vcmp.eq.s32.totalorder %v2523, 4294967294
    %vm2622 = vcmp.eq.s32.totalorder %v2524, 4294967294
    %vm2623 = vcmp.eq.s32.totalorder %v2525, 4294967294
    %vm2624 = vcmp.eq.s32.totalorder %v2526, 4294967294
    %vm2625 = vcmp.eq.s32.totalorder %v2527, 4294967294
    %vm2626 = vcmp.eq.s32.totalorder %v2528, 4294967294
    %vm2627 = vcmp.eq.s32.totalorder %v2529, 4294967294
    %vm2628 = vcmp.eq.s32.totalorder %v2530, 4294967294
    %v2629 = vsel %vm2615, 0.10936069, %v2601
    %v2630 = vsel %vm2616, 0.10936069, %v2602
    %v2631 = vsel %vm2617, 0.10936069, %v2603
    %v2632 = vsel %vm2618, 0.10936069, %v2604
    %v2633 = vsel %vm2619, 0.10936069, %v2605
    %v2634 = vsel %vm2620, 0.10936069, %v2606
    %v2635 = vsel %vm2621, 0.10936069, %v2607
    %v2636 = vsel %vm2622, 0.10936069, %v2608
    %v2637 = vsel %vm2623, 0.10936069, %v2609
    %v2638 = vsel %vm2624, 0.10936069, %v2610
    %v2639 = vsel %vm2625, 0.10936069, %v2611
    %v2640 = vsel %vm2626, 0.10936069, %v2612
    %v2641 = vsel %vm2627, 0.10936069, %v2613
    %v2642 = vsel %vm2628, 0.10936069, %v2614
    %vm2643 = vcmp.eq.s32.totalorder %v2517, 4294967295
    %vm2644 = vcmp.eq.s32.totalorder %v2518, 4294967295
    %vm2645 = vcmp.eq.s32.totalorder %v2519, 4294967295
    %vm2646 = vcmp.eq.s32.totalorder %v2520, 4294967295
    %vm2647 = vcmp.eq.s32.totalorder %v2521, 4294967295
    %vm2648 = vcmp.eq.s32.totalorder %v2522, 4294967295
    %vm2649 = vcmp.eq.s32.totalorder %v2523, 4294967295
    %vm2650 = vcmp.eq.s32.totalorder %v2524, 4294967295
    %vm2651 = vcmp.eq.s32.totalorder %v2525, 4294967295
    %vm2652 = vcmp.eq.s32.totalorder %v2526, 4294967295
    %vm2653 = vcmp.eq.s32.totalorder %v2527, 4294967295
    %vm2654 = vcmp.eq.s32.totalorder %v2528, 4294967295
    %vm2655 = vcmp.eq.s32.totalorder %v2529, 4294967295
    %vm2656 = vcmp.eq.s32.totalorder %v2530, 4294967295
    %v2657 = vsel %vm2643, 0.21300554, %v2629
    %v2658 = vsel %vm2644, 0.21300554, %v2630
    %v2659 = vsel %vm2645, 0.21300554, %v2631
    %v2660 = vsel %vm2646, 0.21300554, %v2632
    %v2661 = vsel %vm2647, 0.21300554, %v2633
    %v2662 = vsel %vm2648, 0.21300554, %v2634
    %v2663 = vsel %vm2649, 0.21300554, %v2635
    %v2664 = vsel %vm2650, 0.21300554, %v2636
    %v2665 = vsel %vm2651, 0.21300554, %v2637
    %v2666 = vsel %vm2652, 0.21300554, %v2638
    %v2667 = vsel %vm2653, 0.21300554, %v2639
    %v2668 = vsel %vm2654, 0.21300554, %v2640
    %v2669 = vsel %vm2655, 0.21300554, %v2641
    %v2670 = vsel %vm2656, 0.21300554, %v2642
    %vm2671 = vcmp.eq.s32.totalorder %v2517, 0
    %vm2672 = vcmp.eq.s32.totalorder %v2518, 0
    %vm2673 = vcmp.eq.s32.totalorder %v2519, 0
    %vm2674 = vcmp.eq.s32.totalorder %v2520, 0
    %vm2675 = vcmp.eq.s32.totalorder %v2521, 0
    %vm2676 = vcmp.eq.s32.totalorder %v2522, 0
    %vm2677 = vcmp.eq.s32.totalorder %v2523, 0
    %vm2678 = vcmp.eq.s32.totalorder %v2524, 0
    %vm2679 = vcmp.eq.s32.totalorder %v2525, 0
    %vm2680 = vcmp.eq.s32.totalorder %v2526, 0
    %vm2681 = vcmp.eq.s32.totalorder %v2527, 0
    %vm2682 = vcmp.eq.s32.totalorder %v2528, 0
    %vm2683 = vcmp.eq.s32.totalorder %v2529, 0
    %vm2684 = vcmp.eq.s32.totalorder %v2530, 0
    %v2685 = vsel %vm2671, 0.26601171, %v2657
    %v2686 = vsel %vm2672, 0.26601171, %v2658
    %v2687 = vsel %vm2673, 0.26601171, %v2659
    %v2688 = vsel %vm2674, 0.26601171, %v2660
    %v2689 = vsel %vm2675, 0.26601171, %v2661
    %v2690 = vsel %vm2676, 0.26601171, %v2662
    %v2691 = vsel %vm2677, 0.26601171, %v2663
    %v2692 = vsel %vm2678, 0.26601171, %v2664
    %v2693 = vsel %vm2679, 0.26601171, %v2665
    %v2694 = vsel %vm2680, 0.26601171, %v2666
    %v2695 = vsel %vm2681, 0.26601171, %v2667
    %v2696 = vsel %vm2682, 0.26601171, %v2668
    %v2697 = vsel %vm2683, 0.26601171, %v2669
    %v2698 = vsel %vm2684, 0.26601171, %v2670
    %vm2699 = vcmp.eq.s32.totalorder %v2517, 1
    %vm2700 = vcmp.eq.s32.totalorder %v2518, 1
    %vm2701 = vcmp.eq.s32.totalorder %v2519, 1
    %vm2702 = vcmp.eq.s32.totalorder %v2520, 1
    %vm2703 = vcmp.eq.s32.totalorder %v2521, 1
    %vm2704 = vcmp.eq.s32.totalorder %v2522, 1
    %vm2705 = vcmp.eq.s32.totalorder %v2523, 1
    %vm2706 = vcmp.eq.s32.totalorder %v2524, 1
    %vm2707 = vcmp.eq.s32.totalorder %v2525, 1
    %vm2708 = vcmp.eq.s32.totalorder %v2526, 1
    %vm2709 = vcmp.eq.s32.totalorder %v2527, 1
    %vm2710 = vcmp.eq.s32.totalorder %v2528, 1
    %vm2711 = vcmp.eq.s32.totalorder %v2529, 1
    %vm2712 = vcmp.eq.s32.totalorder %v2530, 1
    %v2713 = vsel %vm2699, 0.21300554, %v2685
    %v2714 = vsel %vm2700, 0.21300554, %v2686
    %v2715 = vsel %vm2701, 0.21300554, %v2687
    %v2716 = vsel %vm2702, 0.21300554, %v2688
    %v2717 = vsel %vm2703, 0.21300554, %v2689
    %v2718 = vsel %vm2704, 0.21300554, %v2690
    %v2719 = vsel %vm2705, 0.21300554, %v2691
    %v2720 = vsel %vm2706, 0.21300554, %v2692
    %v2721 = vsel %vm2707, 0.21300554, %v2693
    %v2722 = vsel %vm2708, 0.21300554, %v2694
    %v2723 = vsel %vm2709, 0.21300554, %v2695
    %v2724 = vsel %vm2710, 0.21300554, %v2696
    %v2725 = vsel %vm2711, 0.21300554, %v2697
    %v2726 = vsel %vm2712, 0.21300554, %v2698
    %vm2727 = vcmp.eq.s32.totalorder %v2517, 2
    %vm2728 = vcmp.eq.s32.totalorder %v2518, 2
    %vm2729 = vcmp.eq.s32.totalorder %v2519, 2
    %vm2730 = vcmp.eq.s32.totalorder %v2520, 2
    %vm2731 = vcmp.eq.s32.totalorder %v2521, 2
    %vm2732 = vcmp.eq.s32.totalorder %v2522, 2
    %vm2733 = vcmp.eq.s32.totalorder %v2523, 2
    %vm2734 = vcmp.eq.s32.totalorder %v2524, 2
    %vm2735 = vcmp.eq.s32.totalorder %v2525, 2
    %vm2736 = vcmp.eq.s32.totalorder %v2526, 2
    %vm2737 = vcmp.eq.s32.totalorder %v2527, 2
    %vm2738 = vcmp.eq.s32.totalorder %v2528, 2
    %vm2739 = vcmp.eq.s32.totalorder %v2529, 2
    %vm2740 = vcmp.eq.s32.totalorder %v2530, 2
    %v2741 = vsel %vm2727, 0.10936069, %v2713
    %v2742 = vsel %vm2728, 0.10936069, %v2714
    %v2743 = vsel %vm2729, 0.10936069, %v2715
    %v2744 = vsel %vm2730, 0.10936069, %v2716
    %v2745 = vsel %vm2731, 0.10936069, %v2717
    %v2746 = vsel %vm2732, 0.10936069, %v2718
    %v2747 = vsel %vm2733, 0.10936069, %v2719
    %v2748 = vsel %vm2734, 0.10936069, %v2720
    %v2749 = vsel %vm2735, 0.10936069, %v2721
    %v2750 = vsel %vm2736, 0.10936069, %v2722
    %v2751 = vsel %vm2737, 0.10936069, %v2723
    %v2752 = vsel %vm2738, 0.10936069, %v2724
    %v2753 = vsel %vm2739, 0.10936069, %v2725
    %v2754 = vsel %vm2740, 0.10936069, %v2726
    %vm2755 = vcmp.eq.s32.totalorder %v2517, 3
    %vm2756 = vcmp.eq.s32.totalorder %v2518, 3
    %vm2757 = vcmp.eq.s32.totalorder %v2519, 3
    %vm2758 = vcmp.eq.s32.totalorder %v2520, 3
    %vm2759 = vcmp.eq.s32.totalorder %v2521, 3
    %vm2760 = vcmp.eq.s32.totalorder %v2522, 3
    %vm2761 = vcmp.eq.s32.totalorder %v2523, 3
    %vm2762 = vcmp.eq.s32.totalorder %v2524, 3
    %vm2763 = vcmp.eq.s32.totalorder %v2525, 3
    %vm2764 = vcmp.eq.s32.totalorder %v2526, 3
    %vm2765 = vcmp.eq.s32.totalorder %v2527, 3
    %vm2766 = vcmp.eq.s32.totalorder %v2528, 3
    %vm2767 = vcmp.eq.s32.totalorder %v2529, 3
    %vm2768 = vcmp.eq.s32.totalorder %v2530, 3
    %v2769 = vsel %vm2755, 0.036000773, %v2741
    %v2770 = vsel %vm2756, 0.036000773, %v2742
    %v2771 = vsel %vm2757, 0.036000773, %v2743
    %v2772 = vsel %vm2758, 0.036000773, %v2744
    %v2773 = vsel %vm2759, 0.036000773, %v2745
    %v2774 = vsel %vm2760, 0.036000773, %v2746
    %v2775 = vsel %vm2761, 0.036000773, %v2747
    %v2776 = vsel %vm2762, 0.036000773, %v2748
    %v2777 = vsel %vm2763, 0.036000773, %v2749
    %v2778 = vsel %vm2764, 0.036000773, %v2750
    %v2779 = vsel %vm2765, 0.036000773, %v2751
    %v2780 = vsel %vm2766, 0.036000773, %v2752
    %v2781 = vsel %vm2767, 0.036000773, %v2753
    %v2782 = vsel %vm2768, 0.036000773, %v2754
    %vm2783 = vcmp.eq.s32.totalorder %v2517, 4
    %vm2784 = vcmp.eq.s32.totalorder %v2518, 4
    %vm2785 = vcmp.eq.s32.totalorder %v2519, 4
    %vm2786 = vcmp.eq.s32.totalorder %v2520, 4
    %vm2787 = vcmp.eq.s32.totalorder %v2521, 4
    %vm2788 = vcmp.eq.s32.totalorder %v2522, 4
    %vm2789 = vcmp.eq.s32.totalorder %v2523, 4
    %vm2790 = vcmp.eq.s32.totalorder %v2524, 4
    %vm2791 = vcmp.eq.s32.totalorder %v2525, 4
    %vm2792 = vcmp.eq.s32.totalorder %v2526, 4
    %vm2793 = vcmp.eq.s32.totalorder %v2527, 4
    %vm2794 = vcmp.eq.s32.totalorder %v2528, 4
    %vm2795 = vcmp.eq.s32.totalorder %v2529, 4
    %vm2796 = vcmp.eq.s32.totalorder %v2530, 4
    %v2797 = vsel %vm2783, 0.007598758, %v2769
    %v2798 = vsel %vm2784, 0.007598758, %v2770
    %v2799 = vsel %vm2785, 0.007598758, %v2771
    %v2800 = vsel %vm2786, 0.007598758, %v2772
    %v2801 = vsel %vm2787, 0.007598758, %v2773
    %v2802 = vsel %vm2788, 0.007598758, %v2774
    %v2803 = vsel %vm2789, 0.007598758, %v2775
    %v2804 = vsel %vm2790, 0.007598758, %v2776
    %v2805 = vsel %vm2791, 0.007598758, %v2777
    %v2806 = vsel %vm2792, 0.007598758, %v2778
    %v2807 = vsel %vm2793, 0.007598758, %v2779
    %v2808 = vsel %vm2794, 0.007598758, %v2780
    %v2809 = vsel %vm2795, 0.007598758, %v2781
    %v2810 = vsel %vm2796, 0.007598758, %v2782
    %vm2811 = vcmp.eq.s32.totalorder %v2517, 5
    %vm2812 = vcmp.eq.s32.totalorder %v2518, 5
    %vm2813 = vcmp.eq.s32.totalorder %v2519, 5
    %vm2814 = vcmp.eq.s32.totalorder %v2520, 5
    %vm2815 = vcmp.eq.s32.totalorder %v2521, 5
    %vm2816 = vcmp.eq.s32.totalorder %v2522, 5
    %vm2817 = vcmp.eq.s32.totalorder %v2523, 5
    %vm2818 = vcmp.eq.s32.totalorder %v2524, 5
    %vm2819 = vcmp.eq.s32.totalorder %v2525, 5
    %vm2820 = vcmp.eq.s32.totalorder %v2526, 5
    %vm2821 = vcmp.eq.s32.totalorder %v2527, 5
    %vm2822 = vcmp.eq.s32.totalorder %v2528, 5
    %vm2823 = vcmp.eq.s32.totalorder %v2529, 5
    %vm2824 = vcmp.eq.s32.totalorder %v2530, 5
    %v2825 = vsel %vm2811, 0.0010283801, %v2797
    %v2826 = vsel %vm2812, 0.0010283801, %v2798
    %v2827 = vsel %vm2813, 0.0010283801, %v2799
    %v2828 = vsel %vm2814, 0.0010283801, %v2800
    %v2829 = vsel %vm2815, 0.0010283801, %v2801
    %v2830 = vsel %vm2816, 0.0010283801, %v2802
    %v2831 = vsel %vm2817, 0.0010283801, %v2803
    %v2832 = vsel %vm2818, 0.0010283801, %v2804
    %v2833 = vsel %vm2819, 0.0010283801, %v2805
    %v2834 = vsel %vm2820, 0.0010283801, %v2806
    %v2835 = vsel %vm2821, 0.0010283801, %v2807
    %v2836 = vsel %vm2822, 0.0010283801, %v2808
    %v2837 = vsel %vm2823, 0.0010283801, %v2809
    %v2838 = vsel %vm2824, 0.0010283801, %v2810
    %v2839 = vmul.f32 %v2455, %v2455
    %v2840 = vmul.f32 %v2456, %v2456
    %v2841 = vmul.f32 %v203, %v203
    %v2842 = vmul.f32 %v204, %v204
    %v2843 = vmul.f32 %v2455, %v203
    %v2844 = vmul.f32 %v2456, %v204
    %2845 = vmatprep.subr.mxu0 0.0
    %2846 = vmatpush1.msra.mxu0 %v2501
    %2847 = vmatprep.subr.mxu0 0.0
    %2848 = vmatpush1.msra.mxu0 %v2502
    %2849 = vmatprep.subr.mxu0 0.0
    %2850 = vmatpush1.msra.mxu0 %v2825
    %2851 = vmatprep.subr.mxu0 0.0
    %2852 = vmatpush1.msra.mxu0 %v2826
    %2853 = vmatprep.subr.mxu0 0.0
    %2854 = vmatpush1.msra.mxu0 %v2827
    %2855 = vmatprep.subr.mxu0 0.0
    %2856 = vmatpush1.msra.mxu0 %v2828
    %2857 = vmatprep.subr.mxu0 0.0
    %2858 = vmatpush1.msra.mxu0 %v2829
    %2859 = vmatprep.subr.mxu0 0.0
    %2860 = vmatpush1.msra.mxu0 %v2830
    %2861 = vmatprep.subr.mxu0 0.0
    %2862 = vmatpush1.msra.mxu0 %v2831
    %2863 = vmatprep.subr.mxu0 0.0
    %2864 = vmatpush1.msra.mxu0 %v2832
    %2865 = vmatprep.subr.mxu0 0.0
    %2866 = vmatpush1.msra.mxu0 %v2833
    %2867 = vmatprep.subr.mxu0 0.0
    %2868 = vmatpush1.msra.mxu0 %v2834
    %2869 = vmatprep.subr.mxu0 0.0
    %2870 = vmatpush1.msra.mxu0 %v2835
    %2871 = vmatprep.subr.mxu0 0.0
    %2872 = vmatpush1.msra.mxu0 %v2836
    %2873 = vmatprep.subr.mxu0 0.0
    %2874 = vmatpush1.msra.mxu0 %v2837
    %2875 = vmatprep.subr.mxu0 0.0
    %2876 = vmatpush1.msra.mxu0 %v2838
    %2877 = vmatprep.subr.mxu0 0.0
    %2878 = vmatpush1.msra.mxu0 0.0
    %2879 = vmatprep.subr.mxu0 0.0
    %2880 = vmatpush1.msra.mxu0 0.0
    %2881 = vmatprep.subr.mxu0 0.0
    %2882 = vmatpush1.msra.mxu0 0.0
    %2883 = vmatprep.subr.mxu0 0.0
    %2884 = vmatpush1.msra.mxu0 0.0
    %2885 = vmatprep.subr.mxu0 0.0
    %2886 = vmatpush1.msra.mxu0 0.0
    %2887 = vmatprep.subr.mxu0 0.0
    %2888 = vmatpush1.msra.mxu0 0.0
    %2889 = vmatprep.subr.mxu0 0.0
    %2890 = vmatpush1.msra.mxu0 0.0
    %2891 = vmatprep.subr.mxu0 0.0
    %2892 = vmatpush1.msra.mxu0 0.0
    %2893 = vmatprep.subr.mxu0 0.0
    %2894 = vmatpush1.msra.mxu0 0.0
    %2895 = vmatprep.subr.mxu0 0.0
    %2896 = vmatpush1.msra.mxu0 0.0
    %2897 = vmatprep.subr.mxu0 0.0
    %2898 = vmatpush1.msra.mxu0 0.0
    %2899 = vmatprep.subr.mxu0 0.0
    %2900 = vmatpush1.msra.mxu0 0.0
    %2901 = vmatprep.subr.mxu0 0.0
    %2902 = vmatpush1.msra.mxu0 0.0
    %2903 = vmatprep.subr.mxu0 0.0
    %2904 = vmatpush1.msra.mxu0 0.0
    %2905 = vmatprep.subr.mxu0 0.0
    %2906 = vmatpush1.msra.mxu0 0.0
    %2907 = vmatprep.subr.mxu0 0.0
    %2908 = vmatpush1.msra.mxu0 0.0
    %2909 = vmatprep.mubr.f32.mxu0 0.0
    %2910 = vmatmul.mubr.f32.gmra.mrb[0].mxu0 %v2455
    %v2911 = vpop.f32.mrb[0].mxu0
    %v2912 = vadd.f32 0.0, %v2911
    %v2913 = vpop.f32.mrb[0].mxu0
    %2914 = vmatprep.mubr.f32.mxu0 0.0
    %2915 = vmatmul.mubr.f32.gmra.mrb[0].mxu0 %v2456
    %v2916 = vpop.f32.mrb[0].mxu0
    %v2917 = vadd.f32 0.0, %v2916
    %v2918 = vpop.f32.mrb[0].mxu0
    %2919 = vmatprep.mubr.f32.mxu0 0.0
    %2920 = vmatmul.mubr.f32.gmra.mrb[0].mxu0 %v203
    %v2921 = vpop.f32.mrb[0].mxu0
    %v2922 = vadd.f32 0.0, %v2921
    %v2923 = vpop.f32.mrb[0].mxu0
    %2924 = vmatprep.mubr.f32.mxu0 0.0
    %2925 = vmatmul.mubr.f32.gmra.mrb[0].mxu0 %v204
    %v2926 = vpop.f32.mrb[0].mxu0
    %v2927 = vadd.f32 0.0, %v2926
    %v2928 = vpop.f32.mrb[0].mxu0
    %2929 = vmatprep.mubr.f32.mxu0 0.0
    %2930 = vmatmul.mubr.f32.gmra.mrb[0].mxu0 %v2839
    %v2931 = vpop.f32.mrb[0].mxu0
    %v2932 = vadd.f32 0.0, %v2931
    %v2933 = vpop.f32.mrb[0].mxu0
    %2934 = vmatprep.mubr.f32.mxu0 0.0
    %2935 = vmatmul.mubr.f32.gmra.mrb[0].mxu0 %v2840
    %v2936 = vpop.f32.mrb[0].mxu0
    %v2937 = vadd.f32 0.0, %v2936
    %v2938 = vpop.f32.mrb[0].mxu0
    %2939 = vmatprep.mubr.f32.mxu0 0.0
    %2940 = vmatmul.mubr.f32.gmra.mrb[0].mxu0 %v2841
    %v2941 = vpop.f32.mrb[0].mxu0
    %v2942 = vadd.f32 0.0, %v2941
    %v2943 = vpop.f32.mrb[0].mxu0
    %2944 = vmatprep.mubr.f32.mxu0 0.0
    %2945 = vmatmul.mubr.f32.gmra.mrb[0].mxu0 %v2842
    %v2946 = vpop.f32.mrb[0].mxu0
    %v2947 = vadd.f32 0.0, %v2946
    %v2948 = vpop.f32.mrb[0].mxu0
    %2949 = vmatprep.mubr.f32.mxu0 0.0
    %2950 = vmatmul.mubr.f32.gmra.mrb[0].mxu0 %v2843
    %v2951 = vpop.f32.mrb[0].mxu0
    %v2952 = vadd.f32 0.0, %v2951
    %v2953 = vpop.f32.mrb[0].mxu0
    %2954 = vmatprep.mubr.f32.mxu0 0.0
    %2955 = vmatmul.mubr.f32.gmra.mrb[0].mxu0 %v2844
    %v2956 = vpop.f32.mrb[0].mxu0
    %v2957 = vadd.f32 0.0, %v2956
    %v2958 = vpop.f32.mrb[0].mxu0
    %2959 = vdwg.mxu0
    %vm2960 = vcmask 130048
    %v2962 = vsel %vm2960, %v2501, 0
    %v2965 = vsel %vm2960, %v2502, 0
    %2967 = vmatprep.subr.mxu0 0.0
    %2968 = vmatpush1.msra.mxu0 %v2912
    %2969 = vmatprep.subr.mxu0 0.0
    %2970 = vmatpush1.msra.mxu0 %v2917
    %2971 = vmatprep.subr.mxu0 0.0
    %2972 = vmatpush1.msra.mxu0 0.0
    %2973 = vmatprep.subr.mxu0 0.0
    %2974 = vmatpush1.msra.mxu0 0.0
    %2975 = vmatprep.subr.mxu0 0.0
    %2976 = vmatpush1.msra.mxu0 0.0
    %2977 = vmatprep.subr.mxu0 0.0
    %2978 = vmatpush1.msra.mxu0 0.0
    %2979 = vmatprep.subr.mxu0 0.0
    %2980 = vmatpush1.msra.mxu0 0.0
    %2981 = vmatprep.subr.mxu0 0.0
    %2982 = vmatpush1.msra.mxu0 0.0
    %2983 = vmatprep.subr.mxu0 0.0
    %2984 = vmatpush1.msra.mxu0 0.0
    %2985 = vmatprep.subr.mxu0 0.0
    %2986 = vmatpush1.msra.mxu0 0.0
    %2987 = vmatprep.subr.mxu0 0.0
    %2988 = vmatpush1.msra.mxu0 0.0
    %2989 = vmatprep.subr.mxu0 0.0
    %2990 = vmatpush1.msra.mxu0 0.0
    %2991 = vmatprep.subr.mxu0 0.0
    %2992 = vmatpush1.msra.mxu0 0.0
    %2993 = vmatprep.subr.mxu0 0.0
    %2994 = vmatpush1.msra.mxu0 0.0
    %2995 = vmatprep.subr.mxu0 0.0
    %2996 = vmatpush1.msra.mxu0 0.0
    %2997 = vmatprep.subr.mxu0 0.0
    %2998 = vmatpush1.msra.mxu0 0.0
    %2999 = vmatprep.subr.mxu0 0.0
    %3000 = vmatpush1.msra.mxu0 0.0
    %3001 = vmatprep.subr.mxu0 0.0
    %3002 = vmatpush1.msra.mxu0 0.0
    %3003 = vmatprep.subr.mxu0 0.0
    %3004 = vmatpush1.msra.mxu0 0.0
    %3005 = vmatprep.subr.mxu0 0.0
    %3006 = vmatpush1.msra.mxu0 0.0
    %3007 = vmatprep.subr.mxu0 0.0
    %3008 = vmatpush1.msra.mxu0 0.0
    %3009 = vmatprep.subr.mxu0 0.0
    %3010 = vmatpush1.msra.mxu0 0.0
    %3011 = vmatprep.subr.mxu0 0.0
    %3012 = vmatpush1.msra.mxu0 0.0
    %3013 = vmatprep.subr.mxu0 0.0
    %3014 = vmatpush1.msra.mxu0 0.0
    %3015 = vmatprep.subr.mxu0 0.0
    %3016 = vmatpush1.msra.mxu0 0.0
    %3017 = vmatprep.subr.mxu0 0.0
    %3018 = vmatpush1.msra.mxu0 0.0
    %3019 = vmatprep.subr.mxu0 0.0
    %3020 = vmatpush1.msra.mxu0 0.0
    %3021 = vmatprep.subr.mxu0 0.0
    %3022 = vmatpush1.msra.mxu0 0.0
    %3023 = vmatprep.subr.mxu0 0.0
    %3024 = vmatpush1.msra.mxu0 0.0
    %3025 = vmatprep.subr.mxu0 0.0
    %3026 = vmatpush1.msra.mxu0 0.0
    %3027 = vmatprep.subr.mxu0 0.0
    %3028 = vmatpush1.msra.mxu0 0.0
    %3029 = vmatprep.subr.mxu0 0.0
    %3030 = vmatpush1.msra.mxu0 0.0
    %3031 = vmatprep.mubr.f32.mxu0 0.0
    %3032 = vmatmul.mubr.f32.gmra.mrb[0].mxu0 %v2962
    %v3033 = vpop.f32.mrb[0].mxu0
    %v3034 = vadd.f32 0.0, %v3033
    %v3035 = vpop.f32.mrb[0].mxu0
    %3036 = vmatprep.mubr.f32.mxu0 0.0
    %3037 = vmatmul.mubr.f32.gmra.mrb[0].mxu0 %v2965
    %v3038 = vpop.f32.mrb[0].mxu0
    %v3039 = vadd.f32 0.0, %v3038
    %v3040 = vpop.f32.mrb[0].mxu0
    %3041 = vdwg.mxu0
    %3042 = vmatprep.subr.mxu0 0.0
    %3043 = vmatpush1.msra.mxu0 %v2922
    %3044 = vmatprep.subr.mxu0 0.0
    %3045 = vmatpush1.msra.mxu0 %v2927
    %3046 = vmatprep.subr.mxu0 0.0
    %3047 = vmatpush1.msra.mxu0 0.0
    %3048 = vmatprep.subr.mxu0 0.0
    %3049 = vmatpush1.msra.mxu0 0.0
    %3050 = vmatprep.subr.mxu0 0.0
    %3051 = vmatpush1.msra.mxu0 0.0
    %3052 = vmatprep.subr.mxu0 0.0
    %3053 = vmatpush1.msra.mxu0 0.0
    %3054 = vmatprep.subr.mxu0 0.0
    %3055 = vmatpush1.msra.mxu0 0.0
    %3056 = vmatprep.subr.mxu0 0.0
    %3057 = vmatpush1.msra.mxu0 0.0
    %3058 = vmatprep.subr.mxu0 0.0
    %3059 = vmatpush1.msra.mxu0 0.0
    %3060 = vmatprep.subr.mxu0 0.0
    %3061 = vmatpush1.msra.mxu0 0.0
    %3062 = vmatprep.subr.mxu0 0.0
    %3063 = vmatpush1.msra.mxu0 0.0
    %3064 = vmatprep.subr.mxu0 0.0
    %3065 = vmatpush1.msra.mxu0 0.0
    %3066 = vmatprep.subr.mxu0 0.0
    %3067 = vmatpush1.msra.mxu0 0.0
    %3068 = vmatprep.subr.mxu0 0.0
    %3069 = vmatpush1.msra.mxu0 0.0
    %3070 = vmatprep.subr.mxu0 0.0
    %3071 = vmatpush1.msra.mxu0 0.0
    %3072 = vmatprep.subr.mxu0 0.0
    %3073 = vmatpush1.msra.mxu0 0.0
    %3074 = vmatprep.subr.mxu0 0.0
    %3075 = vmatpush1.msra.mxu0 0.0
    %3076 = vmatprep.subr.mxu0 0.0
    %3077 = vmatpush1.msra.mxu0 0.0
    %3078 = vmatprep.subr.mxu0 0.0
    %3079 = vmatpush1.msra.mxu0 0.0
    %3080 = vmatprep.subr.mxu0 0.0
    %3081 = vmatpush1.msra.mxu0 0.0
    %3082 = vmatprep.subr.mxu0 0.0
    %3083 = vmatpush1.msra.mxu0 0.0
    %3084 = vmatprep.subr.mxu0 0.0
    %3085 = vmatpush1.msra.mxu0 0.0
    %3086 = vmatprep.subr.mxu0 0.0
    %3087 = vmatpush1.msra.mxu0 0.0
    %3088 = vmatprep.subr.mxu0 0.0
    %3089 = vmatpush1.msra.mxu0 0.0
    %3090 = vmatprep.subr.mxu0 0.0
    %3091 = vmatpush1.msra.mxu0 0.0
    %3092 = vmatprep.subr.mxu0 0.0
    %3093 = vmatpush1.msra.mxu0 0.0
    %3094 = vmatprep.subr.mxu0 0.0
    %3095 = vmatpush1.msra.mxu0 0.0
    %3096 = vmatprep.subr.mxu0 0.0
    %3097 = vmatpush1.msra.mxu0 0.0
    %3098 = vmatprep.subr.mxu0 0.0
    %3099 = vmatpush1.msra.mxu0 0.0
    %3100 = vmatprep.subr.mxu0 0.0
    %3101 = vmatpush1.msra.mxu0 0.0
    %3102 = vmatprep.subr.mxu0 0.0
    %3103 = vmatpush1.msra.mxu0 0.0
    %3104 = vmatprep.subr.mxu0 0.0
    %3105 = vmatpush1.msra.mxu0 0.0
    %3106 = vmatprep.mubr.f32.mxu0 0.0
    %3107 = vmatmul.mubr.f32.gmra.mrb[0].mxu0 %v2962
    %v3108 = vpop.f32.mrb[0].mxu0
    %v3109 = vadd.f32 0.0, %v3108
    %v3110 = vpop.f32.mrb[0].mxu0
    %3111 = vmatprep.mubr.f32.mxu0 0.0
    %3112 = vmatmul.mubr.f32.gmra.mrb[0].mxu0 %v2965
    %v3113 = vpop.f32.mrb[0].mxu0
    %v3114 = vadd.f32 0.0, %v3113
    %v3115 = vpop.f32.mrb[0].mxu0
    %3116 = vdwg.mxu0
    %3117 = vmatprep.subr.mxu0 0.0
    %3118 = vmatpush1.msra.mxu0 %v2932
    %3119 = vmatprep.subr.mxu0 0.0
    %3120 = vmatpush1.msra.mxu0 %v2937
    %3121 = vmatprep.subr.mxu0 0.0
    %3122 = vmatpush1.msra.mxu0 0.0
    %3123 = vmatprep.subr.mxu0 0.0
    %3124 = vmatpush1.msra.mxu0 0.0
    %3125 = vmatprep.subr.mxu0 0.0
    %3126 = vmatpush1.msra.mxu0 0.0
    %3127 = vmatprep.subr.mxu0 0.0
    %3128 = vmatpush1.msra.mxu0 0.0
    %3129 = vmatprep.subr.mxu0 0.0
    %3130 = vmatpush1.msra.mxu0 0.0
    %3131 = vmatprep.subr.mxu0 0.0
    %3132 = vmatpush1.msra.mxu0 0.0
    %3133 = vmatprep.subr.mxu0 0.0
    %3134 = vmatpush1.msra.mxu0 0.0
    %3135 = vmatprep.subr.mxu0 0.0
    %3136 = vmatpush1.msra.mxu0 0.0
    %3137 = vmatprep.subr.mxu0 0.0
    %3138 = vmatpush1.msra.mxu0 0.0
    %3139 = vmatprep.subr.mxu0 0.0
    %3140 = vmatpush1.msra.mxu0 0.0
    %3141 = vmatprep.subr.mxu0 0.0
    %3142 = vmatpush1.msra.mxu0 0.0
    %3143 = vmatprep.subr.mxu0 0.0
    %3144 = vmatpush1.msra.mxu0 0.0
    %3145 = vmatprep.subr.mxu0 0.0
    %3146 = vmatpush1.msra.mxu0 0.0
    %3147 = vmatprep.subr.mxu0 0.0
    %3148 = vmatpush1.msra.mxu0 0.0
    %3149 = vmatprep.subr.mxu0 0.0
    %3150 = vmatpush1.msra.mxu0 0.0
    %3151 = vmatprep.subr.mxu0 0.0
    %3152 = vmatpush1.msra.mxu0 0.0
    %3153 = vmatprep.subr.mxu0 0.0
    %3154 = vmatpush1.msra.mxu0 0.0
    %3155 = vmatprep.subr.mxu0 0.0
    %3156 = vmatpush1.msra.mxu0 0.0
    %3157 = vmatprep.subr.mxu0 0.0
    %3158 = vmatpush1.msra.mxu0 0.0
    %3159 = vmatprep.subr.mxu0 0.0
    %3160 = vmatpush1.msra.mxu0 0.0
    %3161 = vmatprep.subr.mxu0 0.0
    %3162 = vmatpush1.msra.mxu0 0.0
    %3163 = vmatprep.subr.mxu0 0.0
    %3164 = vmatpush1.msra.mxu0 0.0
    %3165 = vmatprep.subr.mxu0 0.0
    %3166 = vmatpush1.msra.mxu0 0.0
    %3167 = vmatprep.subr.mxu0 0.0
    %3168 = vmatpush1.msra.mxu0 0.0
    %3169 = vmatprep.subr.mxu0 0.0
    %3170 = vmatpush1.msra.mxu0 0.0
    %3171 = vmatprep.subr.mxu0 0.0
    %3172 = vmatpush1.msra.mxu0 0.0
    %3173 = vmatprep.subr.mxu0 0.0
    %3174 = vmatpush1.msra.mxu0 0.0
    %3175 = vmatprep.subr.mxu0 0.0
    %3176 = vmatpush1.msra.mxu0 0.0
    %3177 = vmatprep.subr.mxu0 0.0
    %3178 = vmatpush1.msra.mxu0 0.0
    %3179 = vmatprep.subr.mxu0 0.0
    %3180 = vmatpush1.msra.mxu0 0.0
    %3181 = vmatprep.mubr.f32.mxu0 0.0
    %3182 = vmatmul.mubr.f32.gmra.mrb[0].mxu0 %v2962
    %v3183 = vpop.f32.mrb[0].mxu0
    %v3184 = vadd.f32 0.0, %v3183
    %v3185 = vpop.f32.mrb[0].mxu0
    %3186 = vmatprep.mubr.f32.mxu0 0.0
    %3187 = vmatmul.mubr.f32.gmra.mrb[0].mxu0 %v2965
    %v3188 = vpop.f32.mrb[0].mxu0
    %v3189 = vadd.f32 0.0, %v3188
    %v3190 = vpop.f32.mrb[0].mxu0
    %3191 = vdwg.mxu0
    %3192 = vmatprep.subr.mxu0 0.0
    %3193 = vmatpush1.msra.mxu0 %v2942
    %3194 = vmatprep.subr.mxu0 0.0
    %3195 = vmatpush1.msra.mxu0 %v2947
    %3196 = vmatprep.subr.mxu0 0.0
    %3197 = vmatpush1.msra.mxu0 0.0
    %3198 = vmatprep.subr.mxu0 0.0
    %3199 = vmatpush1.msra.mxu0 0.0
    %3200 = vmatprep.subr.mxu0 0.0
    %3201 = vmatpush1.msra.mxu0 0.0
    %3202 = vmatprep.subr.mxu0 0.0
    %3203 = vmatpush1.msra.mxu0 0.0
    %3204 = vmatprep.subr.mxu0 0.0
    %3205 = vmatpush1.msra.mxu0 0.0
    %3206 = vmatprep.subr.mxu0 0.0
    %3207 = vmatpush1.msra.mxu0 0.0
    %3208 = vmatprep.subr.mxu0 0.0
    %3209 = vmatpush1.msra.mxu0 0.0
    %3210 = vmatprep.subr.mxu0 0.0
    %3211 = vmatpush1.msra.mxu0 0.0
    %3212 = vmatprep.subr.mxu0 0.0
    %3213 = vmatpush1.msra.mxu0 0.0
    %3214 = vmatprep.subr.mxu0 0.0
    %3215 = vmatpush1.msra.mxu0 0.0
    %3216 = vmatprep.subr.mxu0 0.0
    %3217 = vmatpush1.msra.mxu0 0.0
    %3218 = vmatprep.subr.mxu0 0.0
    %3219 = vmatpush1.msra.mxu0 0.0
    %3220 = vmatprep.subr.mxu0 0.0
    %3221 = vmatpush1.msra.mxu0 0.0
    %3222 = vmatprep.subr.mxu0 0.0
    %3223 = vmatpush1.msra.mxu0 0.0
    %3224 = vmatprep.subr.mxu0 0.0
    %3225 = vmatpush1.msra.mxu0 0.0
    %3226 = vmatprep.subr.mxu0 0.0
    %3227 = vmatpush1.msra.mxu0 0.0
    %3228 = vmatprep.subr.mxu0 0.0
    %3229 = vmatpush1.msra.mxu0 0.0
    %3230 = vmatprep.subr.mxu0 0.0
    %3231 = vmatpush1.msra.mxu0 0.0
    %3232 = vmatprep.subr.mxu0 0.0
    %3233 = vmatpush1.msra.mxu0 0.0
    %3234 = vmatprep.subr.mxu0 0.0
    %3235 = vmatpush1.msra.mxu0 0.0
    %3236 = vmatprep.subr.mxu0 0.0
    %3237 = vmatpush1.msra.mxu0 0.0
    %3238 = vmatprep.subr.mxu0 0.0
    %3239 = vmatpush1.msra.mxu0 0.0
    %3240 = vmatprep.subr.mxu0 0.0
    %3241 = vmatpush1.msra.mxu0 0.0
    %3242 = vmatprep.subr.mxu0 0.0
    %3243 = vmatpush1.msra.mxu0 0.0
    %3244 = vmatprep.subr.mxu0 0.0
    %3245 = vmatpush1.msra.mxu0 0.0
    %3246 = vmatprep.subr.mxu0 0.0
    %3247 = vmatpush1.msra.mxu0 0.0
    %3248 = vmatprep.subr.mxu0 0.0
    %3249 = vmatpush1.msra.mxu0 0.0
    %3250 = vmatprep.subr.mxu0 0.0
    %3251 = vmatpush1.msra.mxu0 0.0
    %3252 = vmatprep.subr.mxu0 0.0
    %3253 = vmatpush1.msra.mxu0 0.0
    %3254 = vmatprep.subr.mxu0 0.0
    %3255 = vmatpush1.msra.mxu0 0.0
    %3256 = vmatprep.mubr.f32.mxu0 0.0
    %3257 = vmatmul.mubr.f32.gmra.mrb[0].mxu0 %v2962
    %v3258 = vpop.f32.mrb[0].mxu0
    %v3259 = vadd.f32 0.0, %v3258
    %v3260 = vpop.f32.mrb[0].mxu0
    %3261 = vmatprep.mubr.f32.mxu0 0.0
    %3262 = vmatmul.mubr.f32.gmra.mrb[0].mxu0 %v2965
    %v3263 = vpop.f32.mrb[0].mxu0
    %v3264 = vadd.f32 0.0, %v3263
    %v3265 = vpop.f32.mrb[0].mxu0
    %3266 = vdwg.mxu0
    %3267 = vmatprep.subr.mxu0 0.0
    %3268 = vmatpush1.msra.mxu0 %v2952
    %3269 = vmatprep.subr.mxu0 0.0
    %3270 = vmatpush1.msra.mxu0 %v2957
    %3271 = vmatprep.subr.mxu0 0.0
    %3272 = vmatpush1.msra.mxu0 0.0
    %3273 = vmatprep.subr.mxu0 0.0
    %3274 = vmatpush1.msra.mxu0 0.0
    %3275 = vmatprep.subr.mxu0 0.0
    %3276 = vmatpush1.msra.mxu0 0.0
    %3277 = vmatprep.subr.mxu0 0.0
    %3278 = vmatpush1.msra.mxu0 0.0
    %3279 = vmatprep.subr.mxu0 0.0
    %3280 = vmatpush1.msra.mxu0 0.0
    %3281 = vmatprep.subr.mxu0 0.0
    %3282 = vmatpush1.msra.mxu0 0.0
    %3283 = vmatprep.subr.mxu0 0.0
    %3284 = vmatpush1.msra.mxu0 0.0
    %3285 = vmatprep.subr.mxu0 0.0
    %3286 = vmatpush1.msra.mxu0 0.0
    %3287 = vmatprep.subr.mxu0 0.0
    %3288 = vmatpush1.msra.mxu0 0.0
    %3289 = vmatprep.subr.mxu0 0.0
    %3290 = vmatpush1.msra.mxu0 0.0
    %3291 = vmatprep.subr.mxu0 0.0
    %3292 = vmatpush1.msra.mxu0 0.0
    %3293 = vmatprep.subr.mxu0 0.0
    %3294 = vmatpush1.msra.mxu0 0.0
    %3295 = vmatprep.subr.mxu0 0.0
    %3296 = vmatpush1.msra.mxu0 0.0
    %3297 = vmatprep.subr.mxu0 0.0
    %3298 = vmatpush1.msra.mxu0 0.0
    %3299 = vmatprep.subr.mxu0 0.0
    %3300 = vmatpush1.msra.mxu0 0.0
    %3301 = vmatprep.subr.mxu0 0.0
    %3302 = vmatpush1.msra.mxu0 0.0
    %3303 = vmatprep.subr.mxu0 0.0
    %3304 = vmatpush1.msra.mxu0 0.0
    %3305 = vmatprep.subr.mxu0 0.0
    %3306 = vmatpush1.msra.mxu0 0.0
    %3307 = vmatprep.subr.mxu0 0.0
    %3308 = vmatpush1.msra.mxu0 0.0
    %3309 = vmatprep.subr.mxu0 0.0
    %3310 = vmatpush1.msra.mxu0 0.0
    %3311 = vmatprep.subr.mxu0 0.0
    %3312 = vmatpush1.msra.mxu0 0.0
    %3313 = vmatprep.subr.mxu0 0.0
    %3314 = vmatpush1.msra.mxu0 0.0
    %3315 = vmatprep.subr.mxu0 0.0
    %3316 = vmatpush1.msra.mxu0 0.0
    %3317 = vmatprep.subr.mxu0 0.0
    %3318 = vmatpush1.msra.mxu0 0.0
    %3319 = vmatprep.subr.mxu0 0.0
    %3320 = vmatpush1.msra.mxu0 0.0
    %3321 = vmatprep.subr.mxu0 0.0
    %3322 = vmatpush1.msra.mxu0 0.0
    %3323 = vmatprep.subr.mxu0 0.0
    %3324 = vmatpush1.msra.mxu0 0.0
    %3325 = vmatprep.subr.mxu0 0.0
    %3326 = vmatpush1.msra.mxu0 0.0
    %3327 = vmatprep.subr.mxu0 0.0
    %3328 = vmatpush1.msra.mxu0 0.0
    %3329 = vmatprep.subr.mxu0 0.0
    %3330 = vmatpush1.msra.mxu0 0.0
    %3331 = vmatprep.mubr.f32.mxu0 0.0
    %3332 = vmatmul.mubr.f32.gmra.mrb[0].mxu0 %v2962
    %v3333 = vpop.f32.mrb[0].mxu0
    %v3334 = vadd.f32 0.0, %v3333
    %v3335 = vpop.f32.mrb[0].mxu0
    %3336 = vmatprep.mubr.f32.mxu0 0.0
    %3337 = vmatmul.mubr.f32.gmra.mrb[0].mxu0 %v2965
    %v3338 = vpop.f32.mrb[0].mxu0
    %v3339 = vadd.f32 0.0, %v3338
    %v3340 = vpop.f32.mrb[0].mxu0
    %3341 = vdwg.mxu0
    %v3342 = vmul.f32 %v3034, %v3034
    %v3343 = vmul.f32 %v3039, %v3039
    %v3344 = vsub.f32 %v3184, %v3342
    %v3345 = vsub.f32 %v3189, %v3343
    %v3346 = vmul.f32 %v3109, %v3109
    %v3347 = vmul.f32 %v3114, %v3114
    %v3348 = vsub.f32 %v3259, %v3346
    %v3349 = vsub.f32 %v3264, %v3347
    %v3350 = vmul.f32 %v3034, %v3109
    %v3351 = vmul.f32 %v3039, %v3114
    %v3352 = vsub.f32 %v3334, %v3350
    %v3353 = vsub.f32 %v3339, %v3351
    %v3354 = vmul.f32 %v3352, 2.0
    %v3355 = vmul.f32 %v3353, 2.0
    %v3356 = vadd.f32 %v3354, 58.5225
    %v3357 = vadd.f32 %v3355, 58.5225
    %v3358 = vadd.f32 %v3344, %v3348
    %v3359 = vadd.f32 %v3345, %v3349
    %v3360 = vadd.f32 %v3358, 58.5225
    %v3361 = vadd.f32 %v3359, 58.5225
    %v3362 = vrcp.pop %v3360
    %v3363 = vmul.f32 %v3356, %v3362
    %v3364 = vrcp.pop %v3361
    %v3365 = vmul.f32 %v3357, %v3364
    %v3366 = vmul.f32 %v3363, %v922
    %v3367 = vmul.f32 %v3365, %v922
    %v3368 = vadd.f32 %v3366, %v3367
    %3369 = vadd.xlane.f32.xlu0 %v3368
    %v3370 = vpop.xlane.xlu0 %3369
    %v3371 = vrot.slane %v3370, 4
    %v3372 = vadd.f32 %v3370, %v3371
    %v3373 = vrot.slane %v3372, 2
    %v3374 = vadd.f32 %v3372, %v3373
    %v3375 = vrot.slane %v3374, 1
    %v3376 = vadd.f32 %v3374, %v3375
    %s3377 = vtos %v3376
    %s3378 = smul.f32 %s3377, 0.00390625
    %s3379 = scalar_lea.smem [#allocation7], 0
    %3380 = sst [smem:[%s3379]] %s3378
    // Predicated region
    $region18: #{tpu_custom_call.1} parent=1 // pred_check
      _
    $region19: #{tpu_custom_call.1} parent=1 // pred_check_branch
      %3382 = sbr.rel (0) target = $region21
    $region20: #{tpu_custom_call.1} parent=1 // pred_region
      %s3384 = ssub.s32 16, 16
      %3385 = vsyncadd [#allocation4], %s3384
      %3388 = dma.smem_to_hbm [#allocation7], 16, %s2, [#allocation4]
    $region21: #{tpu_custom_call.1} parent=1 // pred_fallthru
      _
    // Predicated region
    $region22: #{tpu_custom_call.1} parent=1 // pred_check
      _
    $region23: #{tpu_custom_call.1} parent=1 // pred_check_branch
      %3390 = sbr.rel (0) target = $region25
    $region24: #{tpu_custom_call.1} parent=1 // pred_region
      %3391 = dma.done [#allocation4], 16
    $region25: #{tpu_custom_call.1} parent=1 // pred_fallthru
      _
    %3392 = sfence
    %3393 = vsyncpa [#allocation3], 1
    %3394 = vsyncpa [#allocation6], 1
    %3395 = vsyncpa [#allocation4], 1

</llo_original>
